<compile_context>
chip_gen: v7x
topology: tpu7x:2x2x1
jax: 0.10.0
libtpu: 0.0.40
codegen_flags: <defaults>
</compile_context>

<pallas_src>
import math

import jax
import jax.numpy as jnp
from jax.experimental import pallas as pl
from jax.experimental.pallas import tpu as pltpu


def _make_mlp_kernel(hidden, hidden_chunk):
    if hidden_chunk <= 0 or hidden % hidden_chunk != 0:
        hidden_chunk = hidden
    n_chunks = hidden // hidden_chunk

    def mlp_kernel(xt_ref, w1t_ref, b1_ref, w2t_ref, b2_ref, ot_ref):
        # xt_ref : (n_units, tm)  bf16  -- streamed over M (lane-dense)
        # w1t_ref: (H, n_units)   bf16  -- VMEM-resident
        # b1_ref : (H, 1)         f32   -- VMEM-resident
        # w2t_ref: (n_units, H)   bf16  -- VMEM-resident
        # b2_ref : (n_units, 1)   f32   -- VMEM-resident
        # ot_ref : (n_units, tm)  f32   -- streamed over M (lane-dense)
        xt = xt_ref[...]
        acc = jnp.zeros(ot_ref.shape, jnp.float32)
        # Static loop over hidden chunks: live hidden slab is only
        # (hidden_chunk, tm) f32, never the full (2048, tm).
        for c in range(n_chunks):
            off = c * hidden_chunk
            w1c = w1t_ref[pl.ds(off, hidden_chunk), :]                 # (hc, n_units) bf16
            h = jnp.dot(w1c, xt, preferred_element_type=jnp.float32)   # (hc, tm) f32 (MXU)
            h = h + b1_ref[pl.ds(off, hidden_chunk), :]                # f32 bias (VPU)
            h = jnp.maximum(h, 0.0)                                    # f32 ReLU (VPU)
            # dropout == identity (eval mode)
            acc = acc + jnp.dot(                                       # (n_units, tm) f32
                w2t_ref[:, pl.ds(off, hidden_chunk)],
                h.astype(jnp.bfloat16),
                preferred_element_type=jnp.float32)
        ot_ref[...] = (acc + b2_ref[...]).astype(ot_ref.dtype)

    return mlp_kernel


def _round_up(x, m):
    return ((x + m - 1) // m) * m


def mlp_forward(x, w1, b1, w2, b2, *, block_m=512, hidden_chunk=512):
    """x: (..., n_units) f32. w1: (n_units, H), b1: (H,), w2: (H, n_units), b2: (n_units,)."""
    n_units = x.shape[-1]
    hidden = w1.shape[1]
    lead_shape = x.shape[:-1]
    M = int(math.prod(lead_shape)) if lead_shape else 1

    # Feature-major (transposed) activations, cast to bf16 in the wrapper:
    # lane-dense streaming blocks and half the activation HBM traffic.
    xt = x.reshape(M, n_units).astype(jnp.bfloat16).T                  # (n_units, M)

    # bf16 weights (MXU-native, half the weight HBM traffic); f32 biases as
    # column vectors so they broadcast along the lane (tm) axis in-kernel.
    w1t = w1.T.astype(jnp.bfloat16)                                    # (H, n_units)
    w2t = w2.T.astype(jnp.bfloat16)                                    # (n_units, H)
    b1c = b1.reshape(hidden, 1).astype(jnp.float32)
    b2c = b2.reshape(n_units, 1).astype(jnp.float32)

    # Lane-dense M tile (multiple of 128).  For mid-size M, force >= 2 grid
    # steps so the "parallel" axis can shard across v7x's 2 TensorCores.
    block_m = max(128, _round_up(block_m, 128))
    if M <= 256:
        tm = _round_up(max(M, 1), 128)
    else:
        tm = min(block_m, _round_up(pl.cdiv(M, 2), 128))
    m_pad = _round_up(M, tm)
    if m_pad != M:
        xt = jnp.pad(xt, ((0, 0), (0, m_pad - M)))
    grid = (m_pad // tm,)

    kernel = _make_mlp_kernel(hidden, hidden_chunk)

    out_t = pl.pallas_call(
        kernel,
        out_shape=jax.ShapeDtypeStruct((n_units, m_pad), x.dtype),
        grid=grid,
        in_specs=[
            pl.BlockSpec((n_units, tm), lambda i: (0, i)),             # xT: streamed over M
            pl.BlockSpec((hidden, n_units), lambda i: (0, 0)),         # w1T: VMEM-resident
            pl.BlockSpec((hidden, 1), lambda i: (0, 0)),               # b1:  VMEM-resident
            pl.BlockSpec((n_units, hidden), lambda i: (0, 0)),         # w2T: VMEM-resident
            pl.BlockSpec((n_units, 1), lambda i: (0, 0)),              # b2:  VMEM-resident
        ],
        out_specs=pl.BlockSpec((n_units, tm), lambda i: (0, i)),       # yT: streamed over M
        compiler_params=pltpu.CompilerParams(
            dimension_semantics=("parallel",),                         # shard M across TCs (v7x)
        ),
    )(xt, w1t, b1c, w2t, b2c)

    out = out_t.T[:M]                                                  # (M, n_units)
    return out.reshape(*lead_shape, n_units)


def _reference(x, w1, b1, w2, b2):
    h = jnp.maximum(jnp.einsum("...i,ij->...j", x, w1) + b1, 0.0)
    return jnp.einsum("...h,hj->...j", h, w2) + b2


if __name__ == "__main__":
    n_units = 32       # small model dim (MLP(n_units=32))
    hidden = 2048      # fixed by the module definition

    key = jax.random.PRNGKey(0)
    k_x, k_w1, k_b1, k_w2, k_b2, k_x2 = jax.random.split(key, 6)

    # Deterministic synthetic parameters (stored transposed vs torch so the
    # math is row-major x @ W + b; the wrapper re-transposes for the kernel).
    w1 = jax.random.normal(k_w1, (n_units, hidden), dtype=jnp.float32) * 0.02
    b1 = jax.random.normal(k_b1, (hidden,), dtype=jnp.float32) * 0.02
    w2 = jax.random.normal(k_w2, (hidden, n_units), dtype=jnp.float32) * 0.02
    b2 = jax.random.normal(k_b2, (n_units,), dtype=jnp.float32) * 0.02

    # Case 1: small (batch=2, seq=8) -> M=16 -> single 128-wide padded tile.
    batch, seq = 2, 8
    x = jax.random.normal(k_x, (batch, seq, n_units), dtype=jnp.float32)
    y = jax.block_until_ready(mlp_forward(x, w1, b1, w2, b2))
    y_ref = _reference(x, w1, b1, w2, b2)
    assert y.shape == (batch, seq, n_units)
    # bf16 weights/activations with f32 accumulation -> loosened tolerance.
    assert jnp.allclose(y, y_ref, atol=1e-2, rtol=1e-2)

    # Case 2: M=320 -> tm=256, m_pad=512, 2 grid steps (exercises M-tiling,
    # padding, and the >=2-step parallel axis used by v7x's 2 TensorCores).
    batch2, seq2 = 5, 64
    x2 = jax.random.normal(k_x2, (batch2, seq2, n_units), dtype=jnp.float32)
    y2 = jax.block_until_ready(mlp_forward(x2, w1, b1, w2, b2))
    y2_ref = _reference(x2, w1, b1, w2, b2)
    assert y2.shape == (batch2, seq2, n_units)
    assert jnp.allclose(y2, y2_ref, atol=1e-2, rtol=1e-2)

    print("KERNEL_OK")
</pallas_src>

<mosaic_0001>
module attributes {stable_mosaic.version = 11 : i64} {
  func.func @mlp_kernel(%arg0: i32, %arg1: memref<32x128xbf16, #tpu.memory_space<vmem>>, %arg2: memref<2048x32xbf16, #tpu.memory_space<vmem>>, %arg3: memref<2048x1xf32, #tpu.memory_space<vmem>>, %arg4: memref<32x2048xbf16, #tpu.memory_space<vmem>>, %arg5: memref<32x1xf32, #tpu.memory_space<vmem>>, %arg6: memref<32x128xf32, #tpu.memory_space<vmem>>) attributes {dimension_semantics = [#tpu.dimension_semantics<parallel>], iteration_bounds = array<i64: 1>, scalar_prefetch = 0 : i64, scratch_operands = 0 : i64, tpu.core_type = #tpu.core_type<tc>, window_params = [{transform_indices = @transform_0, window_bounds = array<i64: 32, 128>}, {pipeline_mode = #tpu.pipeline_mode<synchronous>, transform_indices = @transform_1, window_bounds = array<i64: 2048, 32>}, {pipeline_mode = #tpu.pipeline_mode<synchronous>, transform_indices = @transform_2, window_bounds = array<i64: 2048, 1>}, {pipeline_mode = #tpu.pipeline_mode<synchronous>, transform_indices = @transform_3, window_bounds = array<i64: 32, 2048>}, {pipeline_mode = #tpu.pipeline_mode<synchronous>, transform_indices = @transform_4, window_bounds = array<i64: 32, 1>}, {transform_indices = @transform_5, window_bounds = array<i64: 32, 128>}]} {
    %c0 = arith.constant 0 : index
    %c0_0 = arith.constant 0 : index
    %0 = vector.load %arg1[%c0, %c0_0] : memref<32x128xbf16, #tpu.memory_space<vmem>>, vector<32x128xbf16>
    %cst = arith.constant 0.000000e+00 : f32
    %1 = vector.broadcast %cst : f32 to vector<32x128xf32>
    %c0_1 = arith.constant 0 : index
    %c0_2 = arith.constant 0 : index
    %2 = vector.load %arg2[%c0_1, %c0_2] : memref<2048x32xbf16, #tpu.memory_space<vmem>>, vector<512x32xbf16>
    %cst_3 = arith.constant dense<0.000000e+00> : vector<512x128xf32>
    %3 = tpu.matmul %2, %0, %cst_3 {dimension_numbers = #tpu.dot_dimension_numbers<[1], [0], [0], [1], [0, 0, 1, 1], [], []>} : vector<512x32xbf16>, vector<32x128xbf16>, vector<512x128xf32> -> vector<512x128xf32>
    %c0_4 = arith.constant 0 : index
    %c0_5 = arith.constant 0 : index
    %4 = vector.load %arg3[%c0_4, %c0_5] : memref<2048x1xf32, #tpu.memory_space<vmem>>, vector<512x1xf32>
    %5 = vector.broadcast %4 : vector<512x1xf32> to vector<512x128xf32>
    %6 = arith.addf %3, %5 : vector<512x128xf32>
    %cst_6 = arith.constant 0.000000e+00 : f32
    %7 = vector.broadcast %cst_6 : f32 to vector<512x128xf32>
    %8 = arith.maximumf %6, %7 : vector<512x128xf32>
    %c0_7 = arith.constant 0 : index
    %c0_8 = arith.constant 0 : index
    %9 = vector.load %arg4[%c0_7, %c0_8] : memref<32x2048xbf16, #tpu.memory_space<vmem>>, vector<32x512xbf16>
    %10 = arith.truncf %8 : vector<512x128xf32> to vector<512x128xbf16>
    %cst_9 = arith.constant dense<0.000000e+00> : vector<32x128xf32>
    %11 = tpu.matmul %9, %10, %cst_9 {dimension_numbers = #tpu.dot_dimension_numbers<[1], [0], [0], [1], [0, 0, 1, 1], [], []>} : vector<32x512xbf16>, vector<512x128xbf16>, vector<32x128xf32> -> vector<32x128xf32>
    %12 = arith.addf %1, %11 : vector<32x128xf32>
    %c512 = arith.constant 512 : index
    %c0_10 = arith.constant 0 : index
    %13 = vector.load %arg2[%c512, %c0_10] : memref<2048x32xbf16, #tpu.memory_space<vmem>>, vector<512x32xbf16>
    %cst_11 = arith.constant dense<0.000000e+00> : vector<512x128xf32>
    %14 = tpu.matmul %13, %0, %cst_11 {dimension_numbers = #tpu.dot_dimension_numbers<[1], [0], [0], [1], [0, 0, 1, 1], [], []>} : vector<512x32xbf16>, vector<32x128xbf16>, vector<512x128xf32> -> vector<512x128xf32>
    %c512_12 = arith.constant 512 : index
    %c0_13 = arith.constant 0 : index
    %15 = vector.load %arg3[%c512_12, %c0_13] : memref<2048x1xf32, #tpu.memory_space<vmem>>, vector<512x1xf32>
    %16 = vector.broadcast %15 : vector<512x1xf32> to vector<512x128xf32>
    %17 = arith.addf %14, %16 : vector<512x128xf32>
    %cst_14 = arith.constant 0.000000e+00 : f32
    %18 = vector.broadcast %cst_14 : f32 to vector<512x128xf32>
    %19 = arith.maximumf %17, %18 : vector<512x128xf32>
    %c0_15 = arith.constant 0 : index
    %c512_16 = arith.constant 512 : index
    %20 = vector.load %arg4[%c0_15, %c512_16] : memref<32x2048xbf16, #tpu.memory_space<vmem>>, vector<32x512xbf16>
    %21 = arith.truncf %19 : vector<512x128xf32> to vector<512x128xbf16>
    %cst_17 = arith.constant dense<0.000000e+00> : vector<32x128xf32>
    %22 = tpu.matmul %20, %21, %cst_17 {dimension_numbers = #tpu.dot_dimension_numbers<[1], [0], [0], [1], [0, 0, 1, 1], [], []>} : vector<32x512xbf16>, vector<512x128xbf16>, vector<32x128xf32> -> vector<32x128xf32>
    %23 = arith.addf %12, %22 : vector<32x128xf32>
    %c1024 = arith.constant 1024 : index
    %c0_18 = arith.constant 0 : index
    %24 = vector.load %arg2[%c1024, %c0_18] : memref<2048x32xbf16, #tpu.memory_space<vmem>>, vector<512x32xbf16>
    %cst_19 = arith.constant dense<0.000000e+00> : vector<512x128xf32>
    %25 = tpu.matmul %24, %0, %cst_19 {dimension_numbers = #tpu.dot_dimension_numbers<[1], [0], [0], [1], [0, 0, 1, 1], [], []>} : vector<512x32xbf16>, vector<32x128xbf16>, vector<512x128xf32> -> vector<512x128xf32>
    %c1024_20 = arith.constant 1024 : index
    %c0_21 = arith.constant 0 : index
    %26 = vector.load %arg3[%c1024_20, %c0_21] : memref<2048x1xf32, #tpu.memory_space<vmem>>, vector<512x1xf32>
    %27 = vector.broadcast %26 : vector<512x1xf32> to vector<512x128xf32>
    %28 = arith.addf %25, %27 : vector<512x128xf32>
    %cst_22 = arith.constant 0.000000e+00 : f32
    %29 = vector.broadcast %cst_22 : f32 to vector<512x128xf32>
    %30 = arith.maximumf %28, %29 : vector<512x128xf32>
    %c0_23 = arith.constant 0 : index
    %c1024_24 = arith.constant 1024 : index
    %31 = vector.load %arg4[%c0_23, %c1024_24] : memref<32x2048xbf16, #tpu.memory_space<vmem>>, vector<32x512xbf16>
    %32 = arith.truncf %30 : vector<512x128xf32> to vector<512x128xbf16>
    %cst_25 = arith.constant dense<0.000000e+00> : vector<32x128xf32>
    %33 = tpu.matmul %31, %32, %cst_25 {dimension_numbers = #tpu.dot_dimension_numbers<[1], [0], [0], [1], [0, 0, 1, 1], [], []>} : vector<32x512xbf16>, vector<512x128xbf16>, vector<32x128xf32> -> vector<32x128xf32>
    %34 = arith.addf %23, %33 : vector<32x128xf32>
    %c1536 = arith.constant 1536 : index
    %c0_26 = arith.constant 0 : index
    %35 = vector.load %arg2[%c1536, %c0_26] : memref<2048x32xbf16, #tpu.memory_space<vmem>>, vector<512x32xbf16>
    %cst_27 = arith.constant dense<0.000000e+00> : vector<512x128xf32>
    %36 = tpu.matmul %35, %0, %cst_27 {dimension_numbers = #tpu.dot_dimension_numbers<[1], [0], [0], [1], [0, 0, 1, 1], [], []>} : vector<512x32xbf16>, vector<32x128xbf16>, vector<512x128xf32> -> vector<512x128xf32>
    %c1536_28 = arith.constant 1536 : index
    %c0_29 = arith.constant 0 : index
    %37 = vector.load %arg3[%c1536_28, %c0_29] : memref<2048x1xf32, #tpu.memory_space<vmem>>, vector<512x1xf32>
    %38 = vector.broadcast %37 : vector<512x1xf32> to vector<512x128xf32>
    %39 = arith.addf %36, %38 : vector<512x128xf32>
    %cst_30 = arith.constant 0.000000e+00 : f32
    %40 = vector.broadcast %cst_30 : f32 to vector<512x128xf32>
    %41 = arith.maximumf %39, %40 : vector<512x128xf32>
    %c0_31 = arith.constant 0 : index
    %c1536_32 = arith.constant 1536 : index
    %42 = vector.load %arg4[%c0_31, %c1536_32] : memref<32x2048xbf16, #tpu.memory_space<vmem>>, vector<32x512xbf16>
    %43 = arith.truncf %41 : vector<512x128xf32> to vector<512x128xbf16>
    %cst_33 = arith.constant dense<0.000000e+00> : vector<32x128xf32>
    %44 = tpu.matmul %42, %43, %cst_33 {dimension_numbers = #tpu.dot_dimension_numbers<[1], [0], [0], [1], [0, 0, 1, 1], [], []>} : vector<32x512xbf16>, vector<512x128xbf16>, vector<32x128xf32> -> vector<32x128xf32>
    %45 = arith.addf %34, %44 : vector<32x128xf32>
    %c0_34 = arith.constant 0 : index
    %c0_35 = arith.constant 0 : index
    %46 = vector.load %arg5[%c0_34, %c0_35] : memref<32x1xf32, #tpu.memory_space<vmem>>, vector<32x1xf32>
    %47 = vector.broadcast %46 : vector<32x1xf32> to vector<32x128xf32>
    %48 = arith.addf %45, %47 : vector<32x128xf32>
    %c0_36 = arith.constant 0 : index
    %c0_37 = arith.constant 0 : index
    %49 = vector.load %arg6[%c0_36, %c0_37] : memref<32x128xf32, #tpu.memory_space<vmem>>, vector<32x128xf32>
    tpu.vector_store %arg6[%c0_36, %c0_37], %48 {strides = array<i32>} : memref<32x128xf32, #tpu.memory_space<vmem>>, vector<32x128xf32>,
    return
  }
  func.func @transform_0(%arg0: i32) -> (i32, i32) {
    %c0_i32 = arith.constant 0 : i32
    %c0_i32_0 = arith.constant 0 : i32
    return %c0_i32, %arg0 : i32, i32
  }
  func.func @transform_1(%arg0: i32) -> (i32, i32) {
    %c0_i32 = arith.constant 0 : i32
    %c0_i32_0 = arith.constant 0 : i32
    %c0_i32_1 = arith.constant 0 : i32
    return %c0_i32, %c0_i32_0 : i32, i32
  }
  func.func @transform_2(%arg0: i32) -> (i32, i32) {
    %c0_i32 = arith.constant 0 : i32
    %c0_i32_0 = arith.constant 0 : i32
    %c0_i32_1 = arith.constant 0 : i32
    return %c0_i32, %c0_i32_0 : i32, i32
  }
  func.func @transform_3(%arg0: i32) -> (i32, i32) {
    %c0_i32 = arith.constant 0 : i32
    %c0_i32_0 = arith.constant 0 : i32
    %c0_i32_1 = arith.constant 0 : i32
    return %c0_i32, %c0_i32_0 : i32, i32
  }
  func.func @transform_4(%arg0: i32) -> (i32, i32) {
    %c0_i32 = arith.constant 0 : i32
    %c0_i32_0 = arith.constant 0 : i32
    %c0_i32_1 = arith.constant 0 : i32
    return %c0_i32, %c0_i32_0 : i32, i32
  }
  func.func @transform_5(%arg0: i32) -> (i32, i32) {
    %c0_i32 = arith.constant 0 : i32
    %c0_i32_0 = arith.constant 0 : i32
    return %c0_i32, %arg0 : i32, i32
  }
}

</mosaic_0001>

<llo_original>
// kernel: tpu_custom_call.1
$region0: #{tpu_custom_call.1}
  #allocation0 [shape = 'u32[]', space=smem, size = 0x4, offset = 0x4, fixed_abs, tag = 'smem constant byte address 0x4 - core index']
  #allocation1 [shape = 'u32[144,128]{1,0:T(1,128)}', space=vmem, size = 0x12000, scoped, tag = 'internal scratch']
  %s0 = inlined_call_operand.vmem [shape: bf16[32,128], index: 0, kind: input, shape index: {}]
  %s1 = inlined_call_operand.vmem [shape: bf16[2048,32], index: 1, kind: input, shape index: {}]
  %s2 = inlined_call_operand.vmem [shape: f32[2048,1], index: 2, kind: input, shape index: {}]
  %s3 = inlined_call_operand.vmem [shape: bf16[32,2048], index: 3, kind: input, shape index: {}]
  %s4 = inlined_call_operand.vmem [shape: f32[32,1], index: 4, kind: input, shape index: {}]
  %s5 = inlined_call_operand.hbm [shape: f32[32,128], index: 5, kind: output, shape index: {}]
  %s6 = sld [smem:[#allocation0]]
  $region30: #{tpu_custom_call.1} parent=0
    _
  %s8 = ssub.s32 1, %s6
  %s9 = scalar_select 0, %s8, %s6
  $region1: #{tpu_custom_call.1} parent=0
    #allocation2 [shape = 'u8[16384]{0}', space=vmem, size = 0x4000, scoped, tag = 'output window, operand 0, single buffered']
    #allocation3 [shape = 's32[1]{0}', space=sflag, size = 0x4, scoped, tag = 'scoped memory for tpu_custom_call.1']
    %10 = vsyncpa [#allocation3], 0
    // Predicated region
    $region2: #{tpu_custom_call.1} parent=1 // pred_check
      _
    $region3: #{tpu_custom_call.1} parent=1 // pred_check_branch
      %12 = sbr.rel (0) target = $region5
    $region4: #{tpu_custom_call.1} parent=1 // pred_region
      _
    $region5: #{tpu_custom_call.1} parent=1 // pred_fallthru
      _
    // Predicated region
    $region6: #{tpu_custom_call.1} parent=1 // pred_check
      _
    $region7: #{tpu_custom_call.1} parent=1 // pred_check_branch
      %14 = sbr.rel (0) target = $region9
    $region8: #{tpu_custom_call.1} parent=1 // pred_region
      _
    $region9: #{tpu_custom_call.1} parent=1 // pred_fallthru
      _
    // Predicated region
    $region10: #{tpu_custom_call.1} parent=1 // pred_check
      _
    $region11: #{tpu_custom_call.1} parent=1 // pred_check_branch
      %16 = sbr.rel (0) target = $region13
    $region12: #{tpu_custom_call.1} parent=1 // pred_region
      _
    $region13: #{tpu_custom_call.1} parent=1 // pred_fallthru
      _
    // Predicated region
    $region14: #{tpu_custom_call.1} parent=1 // pred_check
      _
    $region15: #{tpu_custom_call.1} parent=1 // pred_check_branch
      %18 = sbr.rel (0) target = $region17
    $region16: #{tpu_custom_call.1} parent=1 // pred_region
      _
    $region17: #{tpu_custom_call.1} parent=1 // pred_fallthru
      _
    // Predicated region
    $region18: #{tpu_custom_call.1} parent=1 // pred_check
      _
    $region19: #{tpu_custom_call.1} parent=1 // pred_check_branch
      %20 = sbr.rel (0) target = $region21
    $region20: #{tpu_custom_call.1} parent=1 // pred_region
      _
    $region21: #{tpu_custom_call.1} parent=1 // pred_fallthru
      _
    %v22 = vld [vmem:[%s0] sm:$0xf]
    %v23 = vld [vmem:[%s0 + $0x4] sm:$0xf]
    %v24 = vld [vmem:[%s0 + $0x8] sm:$0xf]
    %v25 = vld [vmem:[%s0 + $0xc] sm:$0xf]
    %v26 = vld [vmem:[%s1] sm:$0xf]
    %v27 = vld [vmem:[%s1 + $0x4] sm:$0xf]
    %v28 = vld [vmem:[%s1 + $0x8] sm:$0xf]
    %v29 = vld [vmem:[%s1 + $0xc] sm:$0xf]
    %v30 = vld [vmem:[%s1 + $0x10] sm:$0xf]
    %v31 = vld [vmem:[%s1 + $0x14] sm:$0xf]
    %v32 = vld [vmem:[%s1 + $0x18] sm:$0xf]
    %v33 = vld [vmem:[%s1 + $0x1c] sm:$0xf]
    %v34 = vld [vmem:[%s1 + $0x20] sm:$0xf]
    %v35 = vld [vmem:[%s1 + $0x24] sm:$0xf]
    %v36 = vld [vmem:[%s1 + $0x28] sm:$0xf]
    %v37 = vld [vmem:[%s1 + $0x2c] sm:$0xf]
    %v38 = vld [vmem:[%s1 + $0x30] sm:$0xf]
    %v39 = vld [vmem:[%s1 + $0x34] sm:$0xf]
    %v40 = vld [vmem:[%s1 + $0x38] sm:$0xf]
    %v41 = vld [vmem:[%s1 + $0x3c] sm:$0xf]
    %v42 = vld [vmem:[%s1 + $0x40] sm:$0xf]
    %v43 = vld [vmem:[%s1 + $0x44] sm:$0xf]
    %v44 = vld [vmem:[%s1 + $0x48] sm:$0xf]
    %v45 = vld [vmem:[%s1 + $0x4c] sm:$0xf]
    %v46 = vld [vmem:[%s1 + $0x50] sm:$0xf]
    %v47 = vld [vmem:[%s1 + $0x54] sm:$0xf]
    %v48 = vld [vmem:[%s1 + $0x58] sm:$0xf]
    %v49 = vld [vmem:[%s1 + $0x5c] sm:$0xf]
    %v50 = vld [vmem:[%s1 + $0x60] sm:$0xf]
    %v51 = vld [vmem:[%s1 + $0x64] sm:$0xf]
    %v52 = vld [vmem:[%s1 + $0x68] sm:$0xf]
    %v53 = vld [vmem:[%s1 + $0x6c] sm:$0xf]
    %v54 = vld [vmem:[%s1 + $0x70] sm:$0xf]
    %v55 = vld [vmem:[%s1 + $0x74] sm:$0xf]
    %v56 = vld [vmem:[%s1 + $0x78] sm:$0xf]
    %v57 = vld [vmem:[%s1 + $0x7c] sm:$0xf]
    %v58 = vld [vmem:[%s1 + $0x80] sm:$0xf]
    %v59 = vld [vmem:[%s1 + $0x84] sm:$0xf]
    %v60 = vld [vmem:[%s1 + $0x88] sm:$0xf]
    %v61 = vld [vmem:[%s1 + $0x8c] sm:$0xf]
    %v62 = vld [vmem:[%s1 + $0x90] sm:$0xf]
    %v63 = vld [vmem:[%s1 + $0x94] sm:$0xf]
    %v64 = vld [vmem:[%s1 + $0x98] sm:$0xf]
    %v65 = vld [vmem:[%s1 + $0x9c] sm:$0xf]
    %v66 = vld [vmem:[%s1 + $0xa0] sm:$0xf]
    %v67 = vld [vmem:[%s1 + $0xa4] sm:$0xf]
    %v68 = vld [vmem:[%s1 + $0xa8] sm:$0xf]
    %v69 = vld [vmem:[%s1 + $0xac] sm:$0xf]
    %v70 = vld [vmem:[%s1 + $0xb0] sm:$0xf]
    %v71 = vld [vmem:[%s1 + $0xb4] sm:$0xf]
    %v72 = vld [vmem:[%s1 + $0xb8] sm:$0xf]
    %v73 = vld [vmem:[%s1 + $0xbc] sm:$0xf]
    %v74 = vld [vmem:[%s1 + $0xc0] sm:$0xf]
    %v75 = vld [vmem:[%s1 + $0xc4] sm:$0xf]
    %v76 = vld [vmem:[%s1 + $0xc8] sm:$0xf]
    %v77 = vld [vmem:[%s1 + $0xcc] sm:$0xf]
    %v78 = vld [vmem:[%s1 + $0xd0] sm:$0xf]
    %v79 = vld [vmem:[%s1 + $0xd4] sm:$0xf]
    %v80 = vld [vmem:[%s1 + $0xd8] sm:$0xf]
    %v81 = vld [vmem:[%s1 + $0xdc] sm:$0xf]
    %v82 = vld [vmem:[%s1 + $0xe0] sm:$0xf]
    %v83 = vld [vmem:[%s1 + $0xe4] sm:$0xf]
    %v84 = vld [vmem:[%s1 + $0xe8] sm:$0xf]
    %v85 = vld [vmem:[%s1 + $0xec] sm:$0xf]
    %v86 = vld [vmem:[%s1 + $0xf0] sm:$0xf]
    %v87 = vld [vmem:[%s1 + $0xf4] sm:$0xf]
    %v88 = vld [vmem:[%s1 + $0xf8] sm:$0xf]
    %v89 = vld [vmem:[%s1 + $0xfc] sm:$0xf]
    %v90 = vld [vmem:[%s2] sm:$0xff]
    %v91 = vld [vmem:[%s2 + $0x8] sm:$0xff]
    %v92 = vld [vmem:[%s2 + $0x10] sm:$0xff]
    %v93 = vld [vmem:[%s2 + $0x18] sm:$0xff]
    %v94 = vld [vmem:[%s2 + $0x20] sm:$0xff]
    %v95 = vld [vmem:[%s2 + $0x28] sm:$0xff]
    %v96 = vld [vmem:[%s2 + $0x30] sm:$0xff]
    %v97 = vld [vmem:[%s2 + $0x38] sm:$0xff]
    %v98 = vld [vmem:[%s2 + $0x40] sm:$0xff]
    %v99 = vld [vmem:[%s2 + $0x48] sm:$0xff]
    %v100 = vld [vmem:[%s2 + $0x50] sm:$0xff]
    %v101 = vld [vmem:[%s2 + $0x58] sm:$0xff]
    %v102 = vld [vmem:[%s2 + $0x60] sm:$0xff]
    %v103 = vld [vmem:[%s2 + $0x68] sm:$0xff]
    %v104 = vld [vmem:[%s2 + $0x70] sm:$0xff]
    %v105 = vld [vmem:[%s2 + $0x78] sm:$0xff]
    %v106 = vld [vmem:[%s2 + $0x80] sm:$0xff]
    %v107 = vld [vmem:[%s2 + $0x88] sm:$0xff]
    %v108 = vld [vmem:[%s2 + $0x90] sm:$0xff]
    %v109 = vld [vmem:[%s2 + $0x98] sm:$0xff]
    %v110 = vld [vmem:[%s2 + $0xa0] sm:$0xff]
    %v111 = vld [vmem:[%s2 + $0xa8] sm:$0xff]
    %v112 = vld [vmem:[%s2 + $0xb0] sm:$0xff]
    %v113 = vld [vmem:[%s2 + $0xb8] sm:$0xff]
    %v114 = vld [vmem:[%s2 + $0xc0] sm:$0xff]
    %v115 = vld [vmem:[%s2 + $0xc8] sm:$0xff]
    %v116 = vld [vmem:[%s2 + $0xd0] sm:$0xff]
    %v117 = vld [vmem:[%s2 + $0xd8] sm:$0xff]
    %v118 = vld [vmem:[%s2 + $0xe0] sm:$0xff]
    %v119 = vld [vmem:[%s2 + $0xe8] sm:$0xff]
    %v120 = vld [vmem:[%s2 + $0xf0] sm:$0xff]
    %v121 = vld [vmem:[%s2 + $0xf8] sm:$0xff]
    %v122 = vld [vmem:[%s2 + $0x100] sm:$0xff]
    %v123 = vld [vmem:[%s2 + $0x108] sm:$0xff]
    %v124 = vld [vmem:[%s2 + $0x110] sm:$0xff]
    %v125 = vld [vmem:[%s2 + $0x118] sm:$0xff]
    %v126 = vld [vmem:[%s2 + $0x120] sm:$0xff]
    %v127 = vld [vmem:[%s2 + $0x128] sm:$0xff]
    %v128 = vld [vmem:[%s2 + $0x130] sm:$0xff]
    %v129 = vld [vmem:[%s2 + $0x138] sm:$0xff]
    %v130 = vld [vmem:[%s2 + $0x140] sm:$0xff]
    %v131 = vld [vmem:[%s2 + $0x148] sm:$0xff]
    %v132 = vld [vmem:[%s2 + $0x150] sm:$0xff]
    %v133 = vld [vmem:[%s2 + $0x158] sm:$0xff]
    %v134 = vld [vmem:[%s2 + $0x160] sm:$0xff]
    %v135 = vld [vmem:[%s2 + $0x168] sm:$0xff]
    %v136 = vld [vmem:[%s2 + $0x170] sm:$0xff]
    %v137 = vld [vmem:[%s2 + $0x178] sm:$0xff]
    %v138 = vld [vmem:[%s2 + $0x180] sm:$0xff]
    %v139 = vld [vmem:[%s2 + $0x188] sm:$0xff]
    %v140 = vld [vmem:[%s2 + $0x190] sm:$0xff]
    %v141 = vld [vmem:[%s2 + $0x198] sm:$0xff]
    %v142 = vld [vmem:[%s2 + $0x1a0] sm:$0xff]
    %v143 = vld [vmem:[%s2 + $0x1a8] sm:$0xff]
    %v144 = vld [vmem:[%s2 + $0x1b0] sm:$0xff]
    %v145 = vld [vmem:[%s2 + $0x1b8] sm:$0xff]
    %v146 = vld [vmem:[%s2 + $0x1c0] sm:$0xff]
    %v147 = vld [vmem:[%s2 + $0x1c8] sm:$0xff]
    %v148 = vld [vmem:[%s2 + $0x1d0] sm:$0xff]
    %v149 = vld [vmem:[%s2 + $0x1d8] sm:$0xff]
    %v150 = vld [vmem:[%s2 + $0x1e0] sm:$0xff]
    %v151 = vld [vmem:[%s2 + $0x1e8] sm:$0xff]
    %v152 = vld [vmem:[%s2 + $0x1f0] sm:$0xff]
    %v153 = vld [vmem:[%s2 + $0x1f8] sm:$0xff]
    %155 = vset.pattern.permute.xlu0 0
    %156 = vperm.xlu0 %155, %v90
    %v157 = vpop.permute.xlu0 %156
    %160 = vset.pattern.permute.xlu0 0
    %161 = vperm.xlu0 %160, %v91
    %v162 = vpop.permute.xlu0 %161
    %165 = vset.pattern.permute.xlu0 0
    %166 = vperm.xlu0 %165, %v92
    %v167 = vpop.permute.xlu0 %166
    %170 = vset.pattern.permute.xlu0 0
    %171 = vperm.xlu0 %170, %v93
    %v172 = vpop.permute.xlu0 %171
    %175 = vset.pattern.permute.xlu0 0
    %176 = vperm.xlu0 %175, %v94
    %v177 = vpop.permute.xlu0 %176
    %180 = vset.pattern.permute.xlu0 0
    %181 = vperm.xlu0 %180, %v95
    %v182 = vpop.permute.xlu0 %181
    %185 = vset.pattern.permute.xlu0 0
    %186 = vperm.xlu0 %185, %v96
    %v187 = vpop.permute.xlu0 %186
    %190 = vset.pattern.permute.xlu0 0
    %191 = vperm.xlu0 %190, %v97
    %v192 = vpop.permute.xlu0 %191
    %195 = vset.pattern.permute.xlu0 0
    %196 = vperm.xlu0 %195, %v98
    %v197 = vpop.permute.xlu0 %196
    %200 = vset.pattern.permute.xlu0 0
    %201 = vperm.xlu0 %200, %v99
    %v202 = vpop.permute.xlu0 %201
    %205 = vset.pattern.permute.xlu0 0
    %206 = vperm.xlu0 %205, %v100
    %v207 = vpop.permute.xlu0 %206
    %210 = vset.pattern.permute.xlu0 0
    %211 = vperm.xlu0 %210, %v101
    %v212 = vpop.permute.xlu0 %211
    %215 = vset.pattern.permute.xlu0 0
    %216 = vperm.xlu0 %215, %v102
    %v217 = vpop.permute.xlu0 %216
    %220 = vset.pattern.permute.xlu0 0
    %221 = vperm.xlu0 %220, %v103
    %v222 = vpop.permute.xlu0 %221
    %225 = vset.pattern.permute.xlu0 0
    %226 = vperm.xlu0 %225, %v104
    %v227 = vpop.permute.xlu0 %226
    %230 = vset.pattern.permute.xlu0 0
    %231 = vperm.xlu0 %230, %v105
    %v232 = vpop.permute.xlu0 %231
    %235 = vset.pattern.permute.xlu0 0
    %236 = vperm.xlu0 %235, %v106
    %v237 = vpop.permute.xlu0 %236
    %240 = vset.pattern.permute.xlu0 0
    %241 = vperm.xlu0 %240, %v107
    %v242 = vpop.permute.xlu0 %241
    %245 = vset.pattern.permute.xlu0 0
    %246 = vperm.xlu0 %245, %v108
    %v247 = vpop.permute.xlu0 %246
    %250 = vset.pattern.permute.xlu0 0
    %251 = vperm.xlu0 %250, %v109
    %v252 = vpop.permute.xlu0 %251
    %255 = vset.pattern.permute.xlu0 0
    %256 = vperm.xlu0 %255, %v110
    %v257 = vpop.permute.xlu0 %256
    %260 = vset.pattern.permute.xlu0 0
    %261 = vperm.xlu0 %260, %v111
    %v262 = vpop.permute.xlu0 %261
    %265 = vset.pattern.permute.xlu0 0
    %266 = vperm.xlu0 %265, %v112
    %v267 = vpop.permute.xlu0 %266
    %270 = vset.pattern.permute.xlu0 0
    %271 = vperm.xlu0 %270, %v113
    %v272 = vpop.permute.xlu0 %271
    %275 = vset.pattern.permute.xlu0 0
    %276 = vperm.xlu0 %275, %v114
    %v277 = vpop.permute.xlu0 %276
    %280 = vset.pattern.permute.xlu0 0
    %281 = vperm.xlu0 %280, %v115
    %v282 = vpop.permute.xlu0 %281
    %285 = vset.pattern.permute.xlu0 0
    %286 = vperm.xlu0 %285, %v116
    %v287 = vpop.permute.xlu0 %286
    %290 = vset.pattern.permute.xlu0 0
    %291 = vperm.xlu0 %290, %v117
    %v292 = vpop.permute.xlu0 %291
    %295 = vset.pattern.permute.xlu0 0
    %296 = vperm.xlu0 %295, %v118
    %v297 = vpop.permute.xlu0 %296
    %300 = vset.pattern.permute.xlu0 0
    %301 = vperm.xlu0 %300, %v119
    %v302 = vpop.permute.xlu0 %301
    %305 = vset.pattern.permute.xlu0 0
    %306 = vperm.xlu0 %305, %v120
    %v307 = vpop.permute.xlu0 %306
    %310 = vset.pattern.permute.xlu0 0
    %311 = vperm.xlu0 %310, %v121
    %v312 = vpop.permute.xlu0 %311
    %315 = vset.pattern.permute.xlu0 0
    %316 = vperm.xlu0 %315, %v122
    %v317 = vpop.permute.xlu0 %316
    %320 = vset.pattern.permute.xlu0 0
    %321 = vperm.xlu0 %320, %v123
    %v322 = vpop.permute.xlu0 %321
    %325 = vset.pattern.permute.xlu0 0
    %326 = vperm.xlu0 %325, %v124
    %v327 = vpop.permute.xlu0 %326
    %330 = vset.pattern.permute.xlu0 0
    %331 = vperm.xlu0 %330, %v125
    %v332 = vpop.permute.xlu0 %331
    %335 = vset.pattern.permute.xlu0 0
    %336 = vperm.xlu0 %335, %v126
    %v337 = vpop.permute.xlu0 %336
    %340 = vset.pattern.permute.xlu0 0
    %341 = vperm.xlu0 %340, %v127
    %v342 = vpop.permute.xlu0 %341
    %345 = vset.pattern.permute.xlu0 0
    %346 = vperm.xlu0 %345, %v128
    %v347 = vpop.permute.xlu0 %346
    %350 = vset.pattern.permute.xlu0 0
    %351 = vperm.xlu0 %350, %v129
    %v352 = vpop.permute.xlu0 %351
    %355 = vset.pattern.permute.xlu0 0
    %356 = vperm.xlu0 %355, %v130
    %v357 = vpop.permute.xlu0 %356
    %360 = vset.pattern.permute.xlu0 0
    %361 = vperm.xlu0 %360, %v131
    %v362 = vpop.permute.xlu0 %361
    %365 = vset.pattern.permute.xlu0 0
    %366 = vperm.xlu0 %365, %v132
    %v367 = vpop.permute.xlu0 %366
    %370 = vset.pattern.permute.xlu0 0
    %371 = vperm.xlu0 %370, %v133
    %v372 = vpop.permute.xlu0 %371
    %375 = vset.pattern.permute.xlu0 0
    %376 = vperm.xlu0 %375, %v134
    %v377 = vpop.permute.xlu0 %376
    %380 = vset.pattern.permute.xlu0 0
    %381 = vperm.xlu0 %380, %v135
    %v382 = vpop.permute.xlu0 %381
    %385 = vset.pattern.permute.xlu0 0
    %386 = vperm.xlu0 %385, %v136
    %v387 = vpop.permute.xlu0 %386
    %390 = vset.pattern.permute.xlu0 0
    %391 = vperm.xlu0 %390, %v137
    %v392 = vpop.permute.xlu0 %391
    %395 = vset.pattern.permute.xlu0 0
    %396 = vperm.xlu0 %395, %v138
    %v397 = vpop.permute.xlu0 %396
    %400 = vset.pattern.permute.xlu0 0
    %401 = vperm.xlu0 %400, %v139
    %v402 = vpop.permute.xlu0 %401
    %405 = vset.pattern.permute.xlu0 0
    %406 = vperm.xlu0 %405, %v140
    %v407 = vpop.permute.xlu0 %406
    %410 = vset.pattern.permute.xlu0 0
    %411 = vperm.xlu0 %410, %v141
    %v412 = vpop.permute.xlu0 %411
    %415 = vset.pattern.permute.xlu0 0
    %416 = vperm.xlu0 %415, %v142
    %v417 = vpop.permute.xlu0 %416
    %420 = vset.pattern.permute.xlu0 0
    %421 = vperm.xlu0 %420, %v143
    %v422 = vpop.permute.xlu0 %421
    %425 = vset.pattern.permute.xlu0 0
    %426 = vperm.xlu0 %425, %v144
    %v427 = vpop.permute.xlu0 %426
    %430 = vset.pattern.permute.xlu0 0
    %431 = vperm.xlu0 %430, %v145
    %v432 = vpop.permute.xlu0 %431
    %435 = vset.pattern.permute.xlu0 0
    %436 = vperm.xlu0 %435, %v146
    %v437 = vpop.permute.xlu0 %436
    %440 = vset.pattern.permute.xlu0 0
    %441 = vperm.xlu0 %440, %v147
    %v442 = vpop.permute.xlu0 %441
    %445 = vset.pattern.permute.xlu0 0
    %446 = vperm.xlu0 %445, %v148
    %v447 = vpop.permute.xlu0 %446
    %450 = vset.pattern.permute.xlu0 0
    %451 = vperm.xlu0 %450, %v149
    %v452 = vpop.permute.xlu0 %451
    %455 = vset.pattern.permute.xlu0 0
    %456 = vperm.xlu0 %455, %v150
    %v457 = vpop.permute.xlu0 %456
    %460 = vset.pattern.permute.xlu0 0
    %461 = vperm.xlu0 %460, %v151
    %v462 = vpop.permute.xlu0 %461
    %465 = vset.pattern.permute.xlu0 0
    %466 = vperm.xlu0 %465, %v152
    %v467 = vpop.permute.xlu0 %466
    %470 = vset.pattern.permute.xlu0 0
    %471 = vperm.xlu0 %470, %v153
    %v472 = vpop.permute.xlu0 %471
    %v538 = vunpack.c.l.b16 %v26
    %v539 = vunpack.c.l.b16 %v27
    %v540 = vunpack.c.l.b16 %v28
    %v541 = vunpack.c.l.b16 %v29
    %v542 = vunpack.c.l.b16 %v30
    %v543 = vunpack.c.l.b16 %v31
    %v544 = vunpack.c.l.b16 %v32
    %v545 = vunpack.c.l.b16 %v33
    %v546 = vunpack.c.l.b16 %v34
    %v547 = vunpack.c.l.b16 %v35
    %v548 = vunpack.c.l.b16 %v36
    %v549 = vunpack.c.l.b16 %v37
    %v550 = vunpack.c.l.b16 %v38
    %v551 = vunpack.c.l.b16 %v39
    %v552 = vunpack.c.l.b16 %v40
    %v553 = vunpack.c.l.b16 %v41
    %v554 = vunpack.c.l.b16 %v42
    %v555 = vunpack.c.l.b16 %v43
    %v556 = vunpack.c.l.b16 %v44
    %v557 = vunpack.c.l.b16 %v45
    %v558 = vunpack.c.l.b16 %v46
    %v559 = vunpack.c.l.b16 %v47
    %v560 = vunpack.c.l.b16 %v48
    %v561 = vunpack.c.l.b16 %v49
    %v562 = vunpack.c.l.b16 %v50
    %v563 = vunpack.c.l.b16 %v51
    %v564 = vunpack.c.l.b16 %v52
    %v565 = vunpack.c.l.b16 %v53
    %v566 = vunpack.c.l.b16 %v54
    %v567 = vunpack.c.l.b16 %v55
    %v568 = vunpack.c.l.b16 %v56
    %v569 = vunpack.c.l.b16 %v57
    %v570 = vunpack.c.l.b16 %v58
    %v571 = vunpack.c.l.b16 %v59
    %v572 = vunpack.c.l.b16 %v60
    %v573 = vunpack.c.l.b16 %v61
    %v574 = vunpack.c.l.b16 %v62
    %v575 = vunpack.c.l.b16 %v63
    %v576 = vunpack.c.l.b16 %v64
    %v577 = vunpack.c.l.b16 %v65
    %v578 = vunpack.c.l.b16 %v66
    %v579 = vunpack.c.l.b16 %v67
    %v580 = vunpack.c.l.b16 %v68
    %v581 = vunpack.c.l.b16 %v69
    %v582 = vunpack.c.l.b16 %v70
    %v583 = vunpack.c.l.b16 %v71
    %v584 = vunpack.c.l.b16 %v72
    %v585 = vunpack.c.l.b16 %v73
    %v586 = vunpack.c.l.b16 %v74
    %v587 = vunpack.c.l.b16 %v75
    %v588 = vunpack.c.l.b16 %v76
    %v589 = vunpack.c.l.b16 %v77
    %v590 = vunpack.c.l.b16 %v78
    %v591 = vunpack.c.l.b16 %v79
    %v592 = vunpack.c.l.b16 %v80
    %v593 = vunpack.c.l.b16 %v81
    %v594 = vunpack.c.l.b16 %v82
    %v595 = vunpack.c.l.b16 %v83
    %v596 = vunpack.c.l.b16 %v84
    %v597 = vunpack.c.l.b16 %v85
    %v598 = vunpack.c.l.b16 %v86
    %v599 = vunpack.c.l.b16 %v87
    %v600 = vunpack.c.l.b16 %v88
    %v601 = vunpack.c.l.b16 %v89
    %v602 = vpack.c.b16 %v539, %v538
    %v603 = vpack.c.b16 %v541, %v540
    %v604 = vpack.c.b16 %v543, %v542
    %v605 = vpack.c.b16 %v545, %v544
    %v606 = vpack.c.b16 %v547, %v546
    %v607 = vpack.c.b16 %v549, %v548
    %v608 = vpack.c.b16 %v551, %v550
    %v609 = vpack.c.b16 %v553, %v552
    %v610 = vpack.c.b16 %v555, %v554
    %v611 = vpack.c.b16 %v557, %v556
    %v612 = vpack.c.b16 %v559, %v558
    %v613 = vpack.c.b16 %v561, %v560
    %v614 = vpack.c.b16 %v563, %v562
    %v615 = vpack.c.b16 %v565, %v564
    %v616 = vpack.c.b16 %v567, %v566
    %v617 = vpack.c.b16 %v569, %v568
    %v618 = vpack.c.b16 %v571, %v570
    %v619 = vpack.c.b16 %v573, %v572
    %v620 = vpack.c.b16 %v575, %v574
    %v621 = vpack.c.b16 %v577, %v576
    %v622 = vpack.c.b16 %v579, %v578
    %v623 = vpack.c.b16 %v581, %v580
    %v624 = vpack.c.b16 %v583, %v582
    %v625 = vpack.c.b16 %v585, %v584
    %v626 = vpack.c.b16 %v587, %v586
    %v627 = vpack.c.b16 %v589, %v588
    %v628 = vpack.c.b16 %v591, %v590
    %v629 = vpack.c.b16 %v593, %v592
    %v630 = vpack.c.b16 %v595, %v594
    %v631 = vpack.c.b16 %v597, %v596
    %v632 = vpack.c.b16 %v599, %v598
    %v633 = vpack.c.b16 %v601, %v600
    %v638 = vunpack.c.l.b16 %v22
    %v639 = vunpack.c.l.b16 %v23
    %v640 = vunpack.c.l.b16 %v24
    %v641 = vunpack.c.l.b16 %v25
    %v642 = vpack.c.b16 %v639, %v638
    %v643 = vpack.c.b16 %v641, %v640
    %vm646 = vcmask 261120
    %v648 = vsel %vm646, %v602, 0
    %v651 = vsel %vm646, %v603, 0
    %v654 = vsel %vm646, %v604, 0
    %v657 = vsel %vm646, %v605, 0
    %v660 = vsel %vm646, %v606, 0
    %v663 = vsel %vm646, %v607, 0
    %v666 = vsel %vm646, %v608, 0
    %v669 = vsel %vm646, %v609, 0
    %v672 = vsel %vm646, %v610, 0
    %v675 = vsel %vm646, %v611, 0
    %v678 = vsel %vm646, %v612, 0
    %v681 = vsel %vm646, %v613, 0
    %v684 = vsel %vm646, %v614, 0
    %v687 = vsel %vm646, %v615, 0
    %v690 = vsel %vm646, %v616, 0
    %v693 = vsel %vm646, %v617, 0
    %v696 = vsel %vm646, %v618, 0
    %v699 = vsel %vm646, %v619, 0
    %v702 = vsel %vm646, %v620, 0
    %v705 = vsel %vm646, %v621, 0
    %v708 = vsel %vm646, %v622, 0
    %v711 = vsel %vm646, %v623, 0
    %v714 = vsel %vm646, %v624, 0
    %v717 = vsel %vm646, %v625, 0
    %v720 = vsel %vm646, %v626, 0
    %v723 = vsel %vm646, %v627, 0
    %v726 = vsel %vm646, %v628, 0
    %v729 = vsel %vm646, %v629, 0
    %v732 = vsel %vm646, %v630, 0
    %v735 = vsel %vm646, %v631, 0
    %v738 = vsel %vm646, %v632, 0
    %v741 = vsel %vm646, %v633, 0
    %743 = vmatprep.subr.bf16.mxu0 0
    %744 = vmatpush1.bf16.msra.mxu0 %v642
    %745 = vmatprep.subr.bf16.mxu0 0
    %746 = vmatpush1.bf16.msra.mxu0 %v643
    %747 = vmatprep.subr.bf16.mxu0 0
    %748 = vmatpush1.bf16.msra.mxu0 0
    %749 = vmatprep.subr.bf16.mxu0 0
    %750 = vmatpush1.bf16.msra.mxu0 0
    %751 = vmatprep.subr.bf16.mxu0 0
    %752 = vmatpush1.bf16.msra.mxu0 0
    %753 = vmatprep.subr.bf16.mxu0 0
    %754 = vmatpush1.bf16.msra.mxu0 0
    %755 = vmatprep.subr.bf16.mxu0 0
    %756 = vmatpush1.bf16.msra.mxu0 0
    %757 = vmatprep.subr.bf16.mxu0 0
    %758 = vmatpush1.bf16.msra.mxu0 0
    %759 = vmatprep.subr.bf16.mxu0 0
    %760 = vmatpush1.bf16.msra.mxu0 0
    %761 = vmatprep.subr.bf16.mxu0 0
    %762 = vmatpush1.bf16.msra.mxu0 0
    %763 = vmatprep.subr.bf16.mxu0 0
    %764 = vmatpush1.bf16.msra.mxu0 0
    %765 = vmatprep.subr.bf16.mxu0 0
    %766 = vmatpush1.bf16.msra.mxu0 0
    %767 = vmatprep.subr.bf16.mxu0 0
    %768 = vmatpush1.bf16.msra.mxu0 0
    %769 = vmatprep.subr.bf16.mxu0 0
    %770 = vmatpush1.bf16.msra.mxu0 0
    %771 = vmatprep.subr.bf16.mxu0 0
    %772 = vmatpush1.bf16.msra.mxu0 0
    %773 = vmatprep.subr.bf16.mxu0 0
    %774 = vmatpush1.bf16.msra.mxu0 0
    %775 = vmatprep.mubr.bf16.mxu0 0
    %776 = vmatmul.mubr.bf16.gmra.mrb[0].mxu0 %v648
    %v777 = vpop.f32.mrb[0].mxu0
    %v778 = vadd.f32 %v157, %v777
    %v779 = vpop.f32.mrb[0].mxu0
    %v780 = vpop.f32.mrb[0].mxu0
    %v781 = vadd.f32 %v162, %v780
    %v782 = vpop.f32.mrb[0].mxu0
    %783 = vmatprep.mubr.bf16.mxu0 0
    %784 = vmatmul.mubr.bf16.gmra.mrb[0].mxu0 %v651
    %v785 = vpop.f32.mrb[0].mxu0
    %v786 = vadd.f32 %v167, %v785
    %v787 = vpop.f32.mrb[0].mxu0
    %v788 = vpop.f32.mrb[0].mxu0
    %v789 = vadd.f32 %v172, %v788
    %v790 = vpop.f32.mrb[0].mxu0
    %791 = vmatprep.mubr.bf16.mxu0 0
    %792 = vmatmul.mubr.bf16.gmra.mrb[0].mxu0 %v654
    %v793 = vpop.f32.mrb[0].mxu0
    %v794 = vadd.f32 %v177, %v793
    %v795 = vpop.f32.mrb[0].mxu0
    %v796 = vpop.f32.mrb[0].mxu0
    %v797 = vadd.f32 %v182, %v796
    %v798 = vpop.f32.mrb[0].mxu0
    %799 = vmatprep.mubr.bf16.mxu0 0
    %800 = vmatmul.mubr.bf16.gmra.mrb[0].mxu0 %v657
    %v801 = vpop.f32.mrb[0].mxu0
    %v802 = vadd.f32 %v187, %v801
    %v803 = vpop.f32.mrb[0].mxu0
    %v804 = vpop.f32.mrb[0].mxu0
    %v805 = vadd.f32 %v192, %v804
    %v806 = vpop.f32.mrb[0].mxu0
    %807 = vmatprep.mubr.bf16.mxu0 0
    %808 = vmatmul.mubr.bf16.gmra.mrb[0].mxu0 %v660
    %v809 = vpop.f32.mrb[0].mxu0
    %v810 = vadd.f32 %v197, %v809
    %v811 = vpop.f32.mrb[0].mxu0
    %v812 = vpop.f32.mrb[0].mxu0
    %v813 = vadd.f32 %v202, %v812
    %v814 = vpop.f32.mrb[0].mxu0
    %815 = vmatprep.mubr.bf16.mxu0 0
    %816 = vmatmul.mubr.bf16.gmra.mrb[0].mxu0 %v663
    %v817 = vpop.f32.mrb[0].mxu0
    %v818 = vadd.f32 %v207, %v817
    %v819 = vpop.f32.mrb[0].mxu0
    %v820 = vpop.f32.mrb[0].mxu0
    %v821 = vadd.f32 %v212, %v820
    %v822 = vpop.f32.mrb[0].mxu0
    %823 = vmatprep.mubr.bf16.mxu0 0
    %824 = vmatmul.mubr.bf16.gmra.mrb[0].mxu0 %v666
    %v825 = vpop.f32.mrb[0].mxu0
    %v826 = vadd.f32 %v217, %v825
    %v827 = vpop.f32.mrb[0].mxu0
    %v828 = vpop.f32.mrb[0].mxu0
    %v829 = vadd.f32 %v222, %v828
    %v830 = vpop.f32.mrb[0].mxu0
    %831 = vmatprep.mubr.bf16.mxu0 0
    %832 = vmatmul.mubr.bf16.gmra.mrb[0].mxu0 %v669
    %v833 = vpop.f32.mrb[0].mxu0
    %v834 = vadd.f32 %v227, %v833
    %v835 = vpop.f32.mrb[0].mxu0
    %v836 = vpop.f32.mrb[0].mxu0
    %v837 = vadd.f32 %v232, %v836
    %v838 = vpop.f32.mrb[0].mxu0
    %839 = vmatprep.mubr.bf16.mxu0 0
    %840 = vmatmul.mubr.bf16.gmra.mrb[0].mxu0 %v672
    %v841 = vpop.f32.mrb[0].mxu0
    %v842 = vadd.f32 %v237, %v841
    %v843 = vpop.f32.mrb[0].mxu0
    %v844 = vpop.f32.mrb[0].mxu0
    %v845 = vadd.f32 %v242, %v844
    %v846 = vpop.f32.mrb[0].mxu0
    %847 = vmatprep.mubr.bf16.mxu0 0
    %848 = vmatmul.mubr.bf16.gmra.mrb[0].mxu0 %v675
    %v849 = vpop.f32.mrb[0].mxu0
    %v850 = vadd.f32 %v247, %v849
    %v851 = vpop.f32.mrb[0].mxu0
    %v852 = vpop.f32.mrb[0].mxu0
    %v853 = vadd.f32 %v252, %v852
    %v854 = vpop.f32.mrb[0].mxu0
    %855 = vmatprep.mubr.bf16.mxu0 0
    %856 = vmatmul.mubr.bf16.gmra.mrb[0].mxu0 %v678
    %v857 = vpop.f32.mrb[0].mxu0
    %v858 = vadd.f32 %v257, %v857
    %v859 = vpop.f32.mrb[0].mxu0
    %v860 = vpop.f32.mrb[0].mxu0
    %v861 = vadd.f32 %v262, %v860
    %v862 = vpop.f32.mrb[0].mxu0
    %863 = vmatprep.mubr.bf16.mxu0 0
    %864 = vmatmul.mubr.bf16.gmra.mrb[0].mxu0 %v681
    %v865 = vpop.f32.mrb[0].mxu0
    %v866 = vadd.f32 %v267, %v865
    %v867 = vpop.f32.mrb[0].mxu0
    %v868 = vpop.f32.mrb[0].mxu0
    %v869 = vadd.f32 %v272, %v868
    %v870 = vpop.f32.mrb[0].mxu0
    %871 = vmatprep.mubr.bf16.mxu0 0
    %872 = vmatmul.mubr.bf16.gmra.mrb[0].mxu0 %v684
    %v873 = vpop.f32.mrb[0].mxu0
    %v874 = vadd.f32 %v277, %v873
    %v875 = vpop.f32.mrb[0].mxu0
    %v876 = vpop.f32.mrb[0].mxu0
    %v877 = vadd.f32 %v282, %v876
    %v878 = vpop.f32.mrb[0].mxu0
    %879 = vmatprep.mubr.bf16.mxu0 0
    %880 = vmatmul.mubr.bf16.gmra.mrb[0].mxu0 %v687
    %v881 = vpop.f32.mrb[0].mxu0
    %v882 = vadd.f32 %v287, %v881
    %v883 = vpop.f32.mrb[0].mxu0
    %v884 = vpop.f32.mrb[0].mxu0
    %v885 = vadd.f32 %v292, %v884
    %v886 = vpop.f32.mrb[0].mxu0
    %887 = vmatprep.mubr.bf16.mxu0 0
    %888 = vmatmul.mubr.bf16.gmra.mrb[0].mxu0 %v690
    %v889 = vpop.f32.mrb[0].mxu0
    %v890 = vadd.f32 %v297, %v889
    %v891 = vpop.f32.mrb[0].mxu0
    %v892 = vpop.f32.mrb[0].mxu0
    %v893 = vadd.f32 %v302, %v892
    %v894 = vpop.f32.mrb[0].mxu0
    %895 = vmatprep.mubr.bf16.mxu0 0
    %896 = vmatmul.mubr.bf16.gmra.mrb[0].mxu0 %v693
    %v897 = vpop.f32.mrb[0].mxu0
    %v898 = vadd.f32 %v307, %v897
    %v899 = vpop.f32.mrb[0].mxu0
    %v900 = vpop.f32.mrb[0].mxu0
    %v901 = vadd.f32 %v312, %v900
    %v902 = vpop.f32.mrb[0].mxu0
    %903 = vmatprep.mubr.bf16.mxu0 0
    %904 = vmatmul.mubr.bf16.gmra.mrb[0].mxu0 %v696
    %v905 = vpop.f32.mrb[0].mxu0
    %v906 = vadd.f32 %v317, %v905
    %v907 = vpop.f32.mrb[0].mxu0
    %v908 = vpop.f32.mrb[0].mxu0
    %v909 = vadd.f32 %v322, %v908
    %v910 = vpop.f32.mrb[0].mxu0
    %911 = vmatprep.mubr.bf16.mxu0 0
    %912 = vmatmul.mubr.bf16.gmra.mrb[0].mxu0 %v699
    %v913 = vpop.f32.mrb[0].mxu0
    %v914 = vadd.f32 %v327, %v913
    %v915 = vpop.f32.mrb[0].mxu0
    %v916 = vpop.f32.mrb[0].mxu0
    %v917 = vadd.f32 %v332, %v916
    %v918 = vpop.f32.mrb[0].mxu0
    %919 = vmatprep.mubr.bf16.mxu0 0
    %920 = vmatmul.mubr.bf16.gmra.mrb[0].mxu0 %v702
    %v921 = vpop.f32.mrb[0].mxu0
    %v922 = vadd.f32 %v337, %v921
    %v923 = vpop.f32.mrb[0].mxu0
    %v924 = vpop.f32.mrb[0].mxu0
    %v925 = vadd.f32 %v342, %v924
    %v926 = vpop.f32.mrb[0].mxu0
    %927 = vmatprep.mubr.bf16.mxu0 0
    %928 = vmatmul.mubr.bf16.gmra.mrb[0].mxu0 %v705
    %v929 = vpop.f32.mrb[0].mxu0
    %v930 = vadd.f32 %v347, %v929
    %v931 = vpop.f32.mrb[0].mxu0
    %v932 = vpop.f32.mrb[0].mxu0
    %v933 = vadd.f32 %v352, %v932
    %v934 = vpop.f32.mrb[0].mxu0
    %935 = vmatprep.mubr.bf16.mxu0 0
    %936 = vmatmul.mubr.bf16.gmra.mrb[0].mxu0 %v708
    %v937 = vpop.f32.mrb[0].mxu0
    %v938 = vadd.f32 %v357, %v937
    %v939 = vpop.f32.mrb[0].mxu0
    %v940 = vpop.f32.mrb[0].mxu0
    %v941 = vadd.f32 %v362, %v940
    %v942 = vpop.f32.mrb[0].mxu0
    %943 = vmatprep.mubr.bf16.mxu0 0
    %944 = vmatmul.mubr.bf16.gmra.mrb[0].mxu0 %v711
    %v945 = vpop.f32.mrb[0].mxu0
    %v946 = vadd.f32 %v367, %v945
    %v947 = vpop.f32.mrb[0].mxu0
    %v948 = vpop.f32.mrb[0].mxu0
    %v949 = vadd.f32 %v372, %v948
    %v950 = vpop.f32.mrb[0].mxu0
    %951 = vmatprep.mubr.bf16.mxu0 0
    %952 = vmatmul.mubr.bf16.gmra.mrb[0].mxu0 %v714
    %v953 = vpop.f32.mrb[0].mxu0
    %v954 = vadd.f32 %v377, %v953
    %v955 = vpop.f32.mrb[0].mxu0
    %v956 = vpop.f32.mrb[0].mxu0
    %v957 = vadd.f32 %v382, %v956
    %v958 = vpop.f32.mrb[0].mxu0
    %959 = vmatprep.mubr.bf16.mxu0 0
    %960 = vmatmul.mubr.bf16.gmra.mrb[0].mxu0 %v717
    %v961 = vpop.f32.mrb[0].mxu0
    %v962 = vadd.f32 %v387, %v961
    %v963 = vpop.f32.mrb[0].mxu0
    %v964 = vpop.f32.mrb[0].mxu0
    %v965 = vadd.f32 %v392, %v964
    %v966 = vpop.f32.mrb[0].mxu0
    %967 = vmatprep.mubr.bf16.mxu0 0
    %968 = vmatmul.mubr.bf16.gmra.mrb[0].mxu0 %v720
    %v969 = vpop.f32.mrb[0].mxu0
    %v970 = vadd.f32 %v397, %v969
    %v971 = vpop.f32.mrb[0].mxu0
    %v972 = vpop.f32.mrb[0].mxu0
    %v973 = vadd.f32 %v402, %v972
    %v974 = vpop.f32.mrb[0].mxu0
    %975 = vmatprep.mubr.bf16.mxu0 0
    %976 = vmatmul.mubr.bf16.gmra.mrb[0].mxu0 %v723
    %v977 = vpop.f32.mrb[0].mxu0
    %v978 = vadd.f32 %v407, %v977
    %v979 = vpop.f32.mrb[0].mxu0
    %v980 = vpop.f32.mrb[0].mxu0
    %v981 = vadd.f32 %v412, %v980
    %v982 = vpop.f32.mrb[0].mxu0
    %983 = vmatprep.mubr.bf16.mxu0 0
    %984 = vmatmul.mubr.bf16.gmra.mrb[0].mxu0 %v726
    %v985 = vpop.f32.mrb[0].mxu0
    %v986 = vadd.f32 %v417, %v985
    %v987 = vpop.f32.mrb[0].mxu0
    %v988 = vpop.f32.mrb[0].mxu0
    %v989 = vadd.f32 %v422, %v988
    %v990 = vpop.f32.mrb[0].mxu0
    %991 = vmatprep.mubr.bf16.mxu0 0
    %992 = vmatmul.mubr.bf16.gmra.mrb[0].mxu0 %v729
    %v993 = vpop.f32.mrb[0].mxu0
    %v994 = vadd.f32 %v427, %v993
    %v995 = vpop.f32.mrb[0].mxu0
    %v996 = vpop.f32.mrb[0].mxu0
    %v997 = vadd.f32 %v432, %v996
    %v998 = vpop.f32.mrb[0].mxu0
    %999 = vmatprep.mubr.bf16.mxu0 0
    %1000 = vmatmul.mubr.bf16.gmra.mrb[0].mxu0 %v732
    %v1001 = vpop.f32.mrb[0].mxu0
    %v1002 = vadd.f32 %v437, %v1001
    %v1003 = vpop.f32.mrb[0].mxu0
    %v1004 = vpop.f32.mrb[0].mxu0
    %v1005 = vadd.f32 %v442, %v1004
    %v1006 = vpop.f32.mrb[0].mxu0
    %1007 = vmatprep.mubr.bf16.mxu0 0
    %1008 = vmatmul.mubr.bf16.gmra.mrb[0].mxu0 %v735
    %v1009 = vpop.f32.mrb[0].mxu0
    %v1010 = vadd.f32 %v447, %v1009
    %v1011 = vpop.f32.mrb[0].mxu0
    %v1012 = vpop.f32.mrb[0].mxu0
    %v1013 = vadd.f32 %v452, %v1012
    %v1014 = vpop.f32.mrb[0].mxu0
    %1015 = vmatprep.mubr.bf16.mxu0 0
    %1016 = vmatmul.mubr.bf16.gmra.mrb[0].mxu0 %v738
    %v1017 = vpop.f32.mrb[0].mxu0
    %v1018 = vadd.f32 %v457, %v1017
    %v1019 = vpop.f32.mrb[0].mxu0
    %v1020 = vpop.f32.mrb[0].mxu0
    %v1021 = vadd.f32 %v462, %v1020
    %v1022 = vpop.f32.mrb[0].mxu0
    %1023 = vmatprep.mubr.bf16.mxu0 0
    %1024 = vmatmul.mubr.bf16.gmra.mrb[0].mxu0 %v741
    %v1025 = vpop.f32.mrb[0].mxu0
    %v1026 = vadd.f32 %v467, %v1025
    %v1027 = vpop.f32.mrb[0].mxu0
    %v1028 = vpop.f32.mrb[0].mxu0
    %v1029 = vadd.f32 %v472, %v1028
    %v1030 = vpop.f32.mrb[0].mxu0
    %1031 = vdwg.mxu0
    %v1032 = vmax.f32 %v778, 0.0
    %v1033 = vmax.f32 %v781, 0.0
    %v1034 = vmax.f32 %v786, 0.0
    %v1035 = vmax.f32 %v789, 0.0
    %v1036 = vmax.f32 %v794, 0.0
    %v1037 = vmax.f32 %v797, 0.0
    %v1038 = vmax.f32 %v802, 0.0
    %v1039 = vmax.f32 %v805, 0.0
    %v1040 = vmax.f32 %v810, 0.0
    %v1041 = vmax.f32 %v813, 0.0
    %v1042 = vmax.f32 %v818, 0.0
    %v1043 = vmax.f32 %v821, 0.0
    %v1044 = vmax.f32 %v826, 0.0
    %v1045 = vmax.f32 %v829, 0.0
    %v1046 = vmax.f32 %v834, 0.0
    %v1047 = vmax.f32 %v837, 0.0
    %v1048 = vmax.f32 %v842, 0.0
    %v1049 = vmax.f32 %v845, 0.0
    %v1050 = vmax.f32 %v850, 0.0
    %v1051 = vmax.f32 %v853, 0.0
    %v1052 = vmax.f32 %v858, 0.0
    %v1053 = vmax.f32 %v861, 0.0
    %v1054 = vmax.f32 %v866, 0.0
    %v1055 = vmax.f32 %v869, 0.0
    %v1056 = vmax.f32 %v874, 0.0
    %v1057 = vmax.f32 %v877, 0.0
    %v1058 = vmax.f32 %v882, 0.0
    %v1059 = vmax.f32 %v885, 0.0
    %v1060 = vmax.f32 %v890, 0.0
    %v1061 = vmax.f32 %v893, 0.0
    %v1062 = vmax.f32 %v898, 0.0
    %v1063 = vmax.f32 %v901, 0.0
    %v1064 = vmax.f32 %v906, 0.0
    %v1065 = vmax.f32 %v909, 0.0
    %v1066 = vmax.f32 %v914, 0.0
    %v1067 = vmax.f32 %v917, 0.0
    %v1068 = vmax.f32 %v922, 0.0
    %v1069 = vmax.f32 %v925, 0.0
    %v1070 = vmax.f32 %v930, 0.0
    %v1071 = vmax.f32 %v933, 0.0
    %v1072 = vmax.f32 %v938, 0.0
    %v1073 = vmax.f32 %v941, 0.0
    %v1074 = vmax.f32 %v946, 0.0
    %v1075 = vmax.f32 %v949, 0.0
    %v1076 = vmax.f32 %v954, 0.0
    %v1077 = vmax.f32 %v957, 0.0
    %v1078 = vmax.f32 %v962, 0.0
    %v1079 = vmax.f32 %v965, 0.0
    %v1080 = vmax.f32 %v970, 0.0
    %v1081 = vmax.f32 %v973, 0.0
    %v1082 = vmax.f32 %v978, 0.0
    %v1083 = vmax.f32 %v981, 0.0
    %v1084 = vmax.f32 %v986, 0.0
    %v1085 = vmax.f32 %v989, 0.0
    %v1086 = vmax.f32 %v994, 0.0
    %v1087 = vmax.f32 %v997, 0.0
    %v1088 = vmax.f32 %v1002, 0.0
    %v1089 = vmax.f32 %v1005, 0.0
    %v1090 = vmax.f32 %v1010, 0.0
    %v1091 = vmax.f32 %v1013, 0.0
    %v1092 = vmax.f32 %v1018, 0.0
    %v1093 = vmax.f32 %v1021, 0.0
    %v1094 = vmax.f32 %v1026, 0.0
    %v1095 = vmax.f32 %v1029, 0.0
    %v1096 = vld [vmem:[%s3] sm:$0xff]
    %v1097 = vld [vmem:[%s3 + $0x8] sm:$0xff]
    %v1098 = vld [vmem:[%s3 + $0x40] sm:$0xff]
    %v1099 = vld [vmem:[%s3 + $0x48] sm:$0xff]
    %v1100 = vld [vmem:[%s3 + $0x80] sm:$0xff]
    %v1101 = vld [vmem:[%s3 + $0x88] sm:$0xff]
    %v1102 = vld [vmem:[%s3 + $0xc0] sm:$0xff]
    %v1103 = vld [vmem:[%s3 + $0xc8] sm:$0xff]
    %v1104 = vpack.c.bf16 %v1033, %v1032
    %v1105 = vpack.c.bf16 %v1035, %v1034
    %v1106 = vpack.c.bf16 %v1037, %v1036
    %v1107 = vpack.c.bf16 %v1039, %v1038
    %v1108 = vpack.c.bf16 %v1041, %v1040
    %v1109 = vpack.c.bf16 %v1043, %v1042
    %v1110 = vpack.c.bf16 %v1045, %v1044
    %v1111 = vpack.c.bf16 %v1047, %v1046
    %v1112 = vpack.c.bf16 %v1049, %v1048
    %v1113 = vpack.c.bf16 %v1051, %v1050
    %v1114 = vpack.c.bf16 %v1053, %v1052
    %v1115 = vpack.c.bf16 %v1055, %v1054
    %v1116 = vpack.c.bf16 %v1057, %v1056
    %v1117 = vpack.c.bf16 %v1059, %v1058
    %v1118 = vpack.c.bf16 %v1061, %v1060
    %v1119 = vpack.c.bf16 %v1063, %v1062
    %v1120 = vpack.c.bf16 %v1065, %v1064
    %v1121 = vpack.c.bf16 %v1067, %v1066
    %v1122 = vpack.c.bf16 %v1069, %v1068
    %v1123 = vpack.c.bf16 %v1071, %v1070
    %v1124 = vpack.c.bf16 %v1073, %v1072
    %v1125 = vpack.c.bf16 %v1075, %v1074
    %v1126 = vpack.c.bf16 %v1077, %v1076
    %v1127 = vpack.c.bf16 %v1079, %v1078
    %v1128 = vpack.c.bf16 %v1081, %v1080
    %v1129 = vpack.c.bf16 %v1083, %v1082
    %v1130 = vpack.c.bf16 %v1085, %v1084
    %v1131 = vpack.c.bf16 %v1087, %v1086
    %v1132 = vpack.c.bf16 %v1089, %v1088
    %v1133 = vpack.c.bf16 %v1091, %v1090
    %v1134 = vpack.c.bf16 %v1093, %v1092
    %v1135 = vpack.c.bf16 %v1095, %v1094
    %v1136 = vld [vmem:[%s1 + $0x100] sm:$0xf]
    %v1137 = vld [vmem:[%s1 + $0x104] sm:$0xf]
    %v1138 = vld [vmem:[%s1 + $0x108] sm:$0xf]
    %v1139 = vld [vmem:[%s1 + $0x10c] sm:$0xf]
    %v1140 = vld [vmem:[%s1 + $0x110] sm:$0xf]
    %v1141 = vld [vmem:[%s1 + $0x114] sm:$0xf]
    %v1142 = vld [vmem:[%s1 + $0x118] sm:$0xf]
    %v1143 = vld [vmem:[%s1 + $0x11c] sm:$0xf]
    %v1144 = vld [vmem:[%s1 + $0x120] sm:$0xf]
    %v1145 = vld [vmem:[%s1 + $0x124] sm:$0xf]
    %v1146 = vld [vmem:[%s1 + $0x128] sm:$0xf]
    %v1147 = vld [vmem:[%s1 + $0x12c] sm:$0xf]
    %v1148 = vld [vmem:[%s1 + $0x130] sm:$0xf]
    %v1149 = vld [vmem:[%s1 + $0x134] sm:$0xf]
    %v1150 = vld [vmem:[%s1 + $0x138] sm:$0xf]
    %v1151 = vld [vmem:[%s1 + $0x13c] sm:$0xf]
    %v1152 = vld [vmem:[%s1 + $0x140] sm:$0xf]
    %v1153 = vld [vmem:[%s1 + $0x144] sm:$0xf]
    %v1154 = vld [vmem:[%s1 + $0x148] sm:$0xf]
    %v1155 = vld [vmem:[%s1 + $0x14c] sm:$0xf]
    %v1156 = vld [vmem:[%s1 + $0x150] sm:$0xf]
    %v1157 = vld [vmem:[%s1 + $0x154] sm:$0xf]
    %v1158 = vld [vmem:[%s1 + $0x158] sm:$0xf]
    %v1159 = vld [vmem:[%s1 + $0x15c] sm:$0xf]
    %v1160 = vld [vmem:[%s1 + $0x160] sm:$0xf]
    %v1161 = vld [vmem:[%s1 + $0x164] sm:$0xf]
    %v1162 = vld [vmem:[%s1 + $0x168] sm:$0xf]
    %v1163 = vld [vmem:[%s1 + $0x16c] sm:$0xf]
    %v1164 = vld [vmem:[%s1 + $0x170] sm:$0xf]
    %v1165 = vld [vmem:[%s1 + $0x174] sm:$0xf]
    %v1166 = vld [vmem:[%s1 + $0x178] sm:$0xf]
    %v1167 = vld [vmem:[%s1 + $0x17c] sm:$0xf]
    %v1168 = vld [vmem:[%s1 + $0x180] sm:$0xf]
    %v1169 = vld [vmem:[%s1 + $0x184] sm:$0xf]
    %v1170 = vld [vmem:[%s1 + $0x188] sm:$0xf]
    %v1171 = vld [vmem:[%s1 + $0x18c] sm:$0xf]
    %v1172 = vld [vmem:[%s1 + $0x190] sm:$0xf]
    %v1173 = vld [vmem:[%s1 + $0x194] sm:$0xf]
    %v1174 = vld [vmem:[%s1 + $0x198] sm:$0xf]
    %v1175 = vld [vmem:[%s1 + $0x19c] sm:$0xf]
    %v1176 = vld [vmem:[%s1 + $0x1a0] sm:$0xf]
    %v1177 = vld [vmem:[%s1 + $0x1a4] sm:$0xf]
    %v1178 = vld [vmem:[%s1 + $0x1a8] sm:$0xf]
    %v1179 = vld [vmem:[%s1 + $0x1ac] sm:$0xf]
    %v1180 = vld [vmem:[%s1 + $0x1b0] sm:$0xf]
    %v1181 = vld [vmem:[%s1 + $0x1b4] sm:$0xf]
    %v1182 = vld [vmem:[%s1 + $0x1b8] sm:$0xf]
    %v1183 = vld [vmem:[%s1 + $0x1bc] sm:$0xf]
    %v1184 = vld [vmem:[%s1 + $0x1c0] sm:$0xf]
    %v1185 = vld [vmem:[%s1 + $0x1c4] sm:$0xf]
    %v1186 = vld [vmem:[%s1 + $0x1c8] sm:$0xf]
    %v1187 = vld [vmem:[%s1 + $0x1cc] sm:$0xf]
    %v1188 = vld [vmem:[%s1 + $0x1d0] sm:$0xf]
    %v1189 = vld [vmem:[%s1 + $0x1d4] sm:$0xf]
    %v1190 = vld [vmem:[%s1 + $0x1d8] sm:$0xf]
    %v1191 = vld [vmem:[%s1 + $0x1dc] sm:$0xf]
    %v1192 = vld [vmem:[%s1 + $0x1e0] sm:$0xf]
    %v1193 = vld [vmem:[%s1 + $0x1e4] sm:$0xf]
    %v1194 = vld [vmem:[%s1 + $0x1e8] sm:$0xf]
    %v1195 = vld [vmem:[%s1 + $0x1ec] sm:$0xf]
    %v1196 = vld [vmem:[%s1 + $0x1f0] sm:$0xf]
    %v1197 = vld [vmem:[%s1 + $0x1f4] sm:$0xf]
    %v1198 = vld [vmem:[%s1 + $0x1f8] sm:$0xf]
    %v1199 = vld [vmem:[%s1 + $0x1fc] sm:$0xf]
    %v1200 = vld [vmem:[%s2 + $0x200] sm:$0xff]
    %v1201 = vld [vmem:[%s2 + $0x208] sm:$0xff]
    %v1202 = vld [vmem:[%s2 + $0x210] sm:$0xff]
    %v1203 = vld [vmem:[%s2 + $0x218] sm:$0xff]
    %v1204 = vld [vmem:[%s2 + $0x220] sm:$0xff]
    %v1205 = vld [vmem:[%s2 + $0x228] sm:$0xff]
    %v1206 = vld [vmem:[%s2 + $0x230] sm:$0xff]
    %v1207 = vld [vmem:[%s2 + $0x238] sm:$0xff]
    %v1208 = vld [vmem:[%s2 + $0x240] sm:$0xff]
    %v1209 = vld [vmem:[%s2 + $0x248] sm:$0xff]
    %v1210 = vld [vmem:[%s2 + $0x250] sm:$0xff]
    %v1211 = vld [vmem:[%s2 + $0x258] sm:$0xff]
    %v1212 = vld [vmem:[%s2 + $0x260] sm:$0xff]
    %v1213 = vld [vmem:[%s2 + $0x268] sm:$0xff]
    %v1214 = vld [vmem:[%s2 + $0x270] sm:$0xff]
    %v1215 = vld [vmem:[%s2 + $0x278] sm:$0xff]
    %v1216 = vld [vmem:[%s2 + $0x280] sm:$0xff]
    %v1217 = vld [vmem:[%s2 + $0x288] sm:$0xff]
    %v1218 = vld [vmem:[%s2 + $0x290] sm:$0xff]
    %v1219 = vld [vmem:[%s2 + $0x298] sm:$0xff]
    %v1220 = vld [vmem:[%s2 + $0x2a0] sm:$0xff]
    %v1221 = vld [vmem:[%s2 + $0x2a8] sm:$0xff]
    %v1222 = vld [vmem:[%s2 + $0x2b0] sm:$0xff]
    %v1223 = vld [vmem:[%s2 + $0x2b8] sm:$0xff]
    %v1224 = vld [vmem:[%s2 + $0x2c0] sm:$0xff]
    %v1225 = vld [vmem:[%s2 + $0x2c8] sm:$0xff]
    %v1226 = vld [vmem:[%s2 + $0x2d0] sm:$0xff]
    %v1227 = vld [vmem:[%s2 + $0x2d8] sm:$0xff]
    %v1228 = vld [vmem:[%s2 + $0x2e0] sm:$0xff]
    %v1229 = vld [vmem:[%s2 + $0x2e8] sm:$0xff]
    %v1230 = vld [vmem:[%s2 + $0x2f0] sm:$0xff]
    %v1231 = vld [vmem:[%s2 + $0x2f8] sm:$0xff]
    %v1232 = vld [vmem:[%s2 + $0x300] sm:$0xff]
    %v1233 = vld [vmem:[%s2 + $0x308] sm:$0xff]
    %v1234 = vld [vmem:[%s2 + $0x310] sm:$0xff]
    %v1235 = vld [vmem:[%s2 + $0x318] sm:$0xff]
    %v1236 = vld [vmem:[%s2 + $0x320] sm:$0xff]
    %v1237 = vld [vmem:[%s2 + $0x328] sm:$0xff]
    %v1238 = vld [vmem:[%s2 + $0x330] sm:$0xff]
    %v1239 = vld [vmem:[%s2 + $0x338] sm:$0xff]
    %v1240 = vld [vmem:[%s2 + $0x340] sm:$0xff]
    %v1241 = vld [vmem:[%s2 + $0x348] sm:$0xff]
    %v1242 = vld [vmem:[%s2 + $0x350] sm:$0xff]
    %v1243 = vld [vmem:[%s2 + $0x358] sm:$0xff]
    %v1244 = vld [vmem:[%s2 + $0x360] sm:$0xff]
    %v1245 = vld [vmem:[%s2 + $0x368] sm:$0xff]
    %v1246 = vld [vmem:[%s2 + $0x370] sm:$0xff]
    %v1247 = vld [vmem:[%s2 + $0x378] sm:$0xff]
    %v1248 = vld [vmem:[%s2 + $0x380] sm:$0xff]
    %v1249 = vld [vmem:[%s2 + $0x388] sm:$0xff]
    %v1250 = vld [vmem:[%s2 + $0x390] sm:$0xff]
    %v1251 = vld [vmem:[%s2 + $0x398] sm:$0xff]
    %v1252 = vld [vmem:[%s2 + $0x3a0] sm:$0xff]
    %v1253 = vld [vmem:[%s2 + $0x3a8] sm:$0xff]
    %v1254 = vld [vmem:[%s2 + $0x3b0] sm:$0xff]
    %v1255 = vld [vmem:[%s2 + $0x3b8] sm:$0xff]
    %v1256 = vld [vmem:[%s2 + $0x3c0] sm:$0xff]
    %v1257 = vld [vmem:[%s2 + $0x3c8] sm:$0xff]
    %v1258 = vld [vmem:[%s2 + $0x3d0] sm:$0xff]
    %v1259 = vld [vmem:[%s2 + $0x3d8] sm:$0xff]
    %v1260 = vld [vmem:[%s2 + $0x3e0] sm:$0xff]
    %v1261 = vld [vmem:[%s2 + $0x3e8] sm:$0xff]
    %v1262 = vld [vmem:[%s2 + $0x3f0] sm:$0xff]
    %v1263 = vld [vmem:[%s2 + $0x3f8] sm:$0xff]
    %1265 = vset.pattern.permute.xlu0 0
    %1266 = vperm.xlu0 %1265, %v1200
    %v1267 = vpop.permute.xlu0 %1266
    %1270 = vset.pattern.permute.xlu0 0
    %1271 = vperm.xlu0 %1270, %v1201
    %v1272 = vpop.permute.xlu0 %1271
    %1275 = vset.pattern.permute.xlu0 0
    %1276 = vperm.xlu0 %1275, %v1202
    %v1277 = vpop.permute.xlu0 %1276
    %1280 = vset.pattern.permute.xlu0 0
    %1281 = vperm.xlu0 %1280, %v1203
    %v1282 = vpop.permute.xlu0 %1281
    %1285 = vset.pattern.permute.xlu0 0
    %1286 = vperm.xlu0 %1285, %v1204
    %v1287 = vpop.permute.xlu0 %1286
    %1290 = vset.pattern.permute.xlu0 0
    %1291 = vperm.xlu0 %1290, %v1205
    %v1292 = vpop.permute.xlu0 %1291
    %1295 = vset.pattern.permute.xlu0 0
    %1296 = vperm.xlu0 %1295, %v1206
    %v1297 = vpop.permute.xlu0 %1296
    %1300 = vset.pattern.permute.xlu0 0
    %1301 = vperm.xlu0 %1300, %v1207
    %v1302 = vpop.permute.xlu0 %1301
    %1305 = vset.pattern.permute.xlu0 0
    %1306 = vperm.xlu0 %1305, %v1208
    %v1307 = vpop.permute.xlu0 %1306
    %1310 = vset.pattern.permute.xlu0 0
    %1311 = vperm.xlu0 %1310, %v1209
    %v1312 = vpop.permute.xlu0 %1311
    %1315 = vset.pattern.permute.xlu0 0
    %1316 = vperm.xlu0 %1315, %v1210
    %v1317 = vpop.permute.xlu0 %1316
    %1320 = vset.pattern.permute.xlu0 0
    %1321 = vperm.xlu0 %1320, %v1211
    %v1322 = vpop.permute.xlu0 %1321
    %1325 = vset.pattern.permute.xlu0 0
    %1326 = vperm.xlu0 %1325, %v1212
    %v1327 = vpop.permute.xlu0 %1326
    %1330 = vset.pattern.permute.xlu0 0
    %1331 = vperm.xlu0 %1330, %v1213
    %v1332 = vpop.permute.xlu0 %1331
    %1335 = vset.pattern.permute.xlu0 0
    %1336 = vperm.xlu0 %1335, %v1214
    %v1337 = vpop.permute.xlu0 %1336
    %1340 = vset.pattern.permute.xlu0 0
    %1341 = vperm.xlu0 %1340, %v1215
    %v1342 = vpop.permute.xlu0 %1341
    %1345 = vset.pattern.permute.xlu0 0
    %1346 = vperm.xlu0 %1345, %v1216
    %v1347 = vpop.permute.xlu0 %1346
    %1350 = vset.pattern.permute.xlu0 0
    %1351 = vperm.xlu0 %1350, %v1217
    %v1352 = vpop.permute.xlu0 %1351
    %1355 = vset.pattern.permute.xlu0 0
    %1356 = vperm.xlu0 %1355, %v1218
    %v1357 = vpop.permute.xlu0 %1356
    %1360 = vset.pattern.permute.xlu0 0
    %1361 = vperm.xlu0 %1360, %v1219
    %v1362 = vpop.permute.xlu0 %1361
    %1365 = vset.pattern.permute.xlu0 0
    %1366 = vperm.xlu0 %1365, %v1220
    %v1367 = vpop.permute.xlu0 %1366
    %1370 = vset.pattern.permute.xlu0 0
    %1371 = vperm.xlu0 %1370, %v1221
    %v1372 = vpop.permute.xlu0 %1371
    %1375 = vset.pattern.permute.xlu0 0
    %1376 = vperm.xlu0 %1375, %v1222
    %v1377 = vpop.permute.xlu0 %1376
    %1380 = vset.pattern.permute.xlu0 0
    %1381 = vperm.xlu0 %1380, %v1223
    %v1382 = vpop.permute.xlu0 %1381
    %1385 = vset.pattern.permute.xlu0 0
    %1386 = vperm.xlu0 %1385, %v1224
    %v1387 = vpop.permute.xlu0 %1386
    %1390 = vset.pattern.permute.xlu0 0
    %1391 = vperm.xlu0 %1390, %v1225
    %v1392 = vpop.permute.xlu0 %1391
    %1395 = vset.pattern.permute.xlu0 0
    %1396 = vperm.xlu0 %1395, %v1226
    %v1397 = vpop.permute.xlu0 %1396
    %1400 = vset.pattern.permute.xlu0 0
    %1401 = vperm.xlu0 %1400, %v1227
    %v1402 = vpop.permute.xlu0 %1401
    %1405 = vset.pattern.permute.xlu0 0
    %1406 = vperm.xlu0 %1405, %v1228
    %v1407 = vpop.permute.xlu0 %1406
    %1410 = vset.pattern.permute.xlu0 0
    %1411 = vperm.xlu0 %1410, %v1229
    %v1412 = vpop.permute.xlu0 %1411
    %1415 = vset.pattern.permute.xlu0 0
    %1416 = vperm.xlu0 %1415, %v1230
    %v1417 = vpop.permute.xlu0 %1416
    %1420 = vset.pattern.permute.xlu0 0
    %1421 = vperm.xlu0 %1420, %v1231
    %v1422 = vpop.permute.xlu0 %1421
    %1425 = vset.pattern.permute.xlu0 0
    %1426 = vperm.xlu0 %1425, %v1232
    %v1427 = vpop.permute.xlu0 %1426
    %1430 = vset.pattern.permute.xlu0 0
    %1431 = vperm.xlu0 %1430, %v1233
    %v1432 = vpop.permute.xlu0 %1431
    %1435 = vset.pattern.permute.xlu0 0
    %1436 = vperm.xlu0 %1435, %v1234
    %v1437 = vpop.permute.xlu0 %1436
    %1440 = vset.pattern.permute.xlu0 0
    %1441 = vperm.xlu0 %1440, %v1235
    %v1442 = vpop.permute.xlu0 %1441
    %1445 = vset.pattern.permute.xlu0 0
    %1446 = vperm.xlu0 %1445, %v1236
    %v1447 = vpop.permute.xlu0 %1446
    %1450 = vset.pattern.permute.xlu0 0
    %1451 = vperm.xlu0 %1450, %v1237
    %v1452 = vpop.permute.xlu0 %1451
    %1455 = vset.pattern.permute.xlu0 0
    %1456 = vperm.xlu0 %1455, %v1238
    %v1457 = vpop.permute.xlu0 %1456
    %1460 = vset.pattern.permute.xlu0 0
    %1461 = vperm.xlu0 %1460, %v1239
    %v1462 = vpop.permute.xlu0 %1461
    %1465 = vset.pattern.permute.xlu0 0
    %1466 = vperm.xlu0 %1465, %v1240
    %v1467 = vpop.permute.xlu0 %1466
    %1470 = vset.pattern.permute.xlu0 0
    %1471 = vperm.xlu0 %1470, %v1241
    %v1472 = vpop.permute.xlu0 %1471
    %1475 = vset.pattern.permute.xlu0 0
    %1476 = vperm.xlu0 %1475, %v1242
    %v1477 = vpop.permute.xlu0 %1476
    %1480 = vset.pattern.permute.xlu0 0
    %1481 = vperm.xlu0 %1480, %v1243
    %v1482 = vpop.permute.xlu0 %1481
    %1485 = vset.pattern.permute.xlu0 0
    %1486 = vperm.xlu0 %1485, %v1244
    %v1487 = vpop.permute.xlu0 %1486
    %1490 = vset.pattern.permute.xlu0 0
    %1491 = vperm.xlu0 %1490, %v1245
    %v1492 = vpop.permute.xlu0 %1491
    %1495 = vset.pattern.permute.xlu0 0
    %1496 = vperm.xlu0 %1495, %v1246
    %v1497 = vpop.permute.xlu0 %1496
    %1500 = vset.pattern.permute.xlu0 0
    %1501 = vperm.xlu0 %1500, %v1247
    %v1502 = vpop.permute.xlu0 %1501
    %1505 = vset.pattern.permute.xlu0 0
    %1506 = vperm.xlu0 %1505, %v1248
    %v1507 = vpop.permute.xlu0 %1506
    %1510 = vset.pattern.permute.xlu0 0
    %1511 = vperm.xlu0 %1510, %v1249
    %v1512 = vpop.permute.xlu0 %1511
    %1515 = vset.pattern.permute.xlu0 0
    %1516 = vperm.xlu0 %1515, %v1250
    %v1517 = vpop.permute.xlu0 %1516
    %1520 = vset.pattern.permute.xlu0 0
    %1521 = vperm.xlu0 %1520, %v1251
    %v1522 = vpop.permute.xlu0 %1521
    %1525 = vset.pattern.permute.xlu0 0
    %1526 = vperm.xlu0 %1525, %v1252
    %v1527 = vpop.permute.xlu0 %1526
    %1530 = vset.pattern.permute.xlu0 0
    %1531 = vperm.xlu0 %1530, %v1253
    %v1532 = vpop.permute.xlu0 %1531
    %1535 = vset.pattern.permute.xlu0 0
    %1536 = vperm.xlu0 %1535, %v1254
    %v1537 = vpop.permute.xlu0 %1536
    %1540 = vset.pattern.permute.xlu0 0
    %1541 = vperm.xlu0 %1540, %v1255
    %v1542 = vpop.permute.xlu0 %1541
    %1545 = vset.pattern.permute.xlu0 0
    %1546 = vperm.xlu0 %1545, %v1256
    %v1547 = vpop.permute.xlu0 %1546
    %1550 = vset.pattern.permute.xlu0 0
    %1551 = vperm.xlu0 %1550, %v1257
    %v1552 = vpop.permute.xlu0 %1551
    %1555 = vset.pattern.permute.xlu0 0
    %1556 = vperm.xlu0 %1555, %v1258
    %v1557 = vpop.permute.xlu0 %1556
    %1560 = vset.pattern.permute.xlu0 0
    %1561 = vperm.xlu0 %1560, %v1259
    %v1562 = vpop.permute.xlu0 %1561
    %1565 = vset.pattern.permute.xlu0 0
    %1566 = vperm.xlu0 %1565, %v1260
    %v1567 = vpop.permute.xlu0 %1566
    %1570 = vset.pattern.permute.xlu0 0
    %1571 = vperm.xlu0 %1570, %v1261
    %v1572 = vpop.permute.xlu0 %1571
    %1575 = vset.pattern.permute.xlu0 0
    %1576 = vperm.xlu0 %1575, %v1262
    %v1577 = vpop.permute.xlu0 %1576
    %1580 = vset.pattern.permute.xlu0 0
    %1581 = vperm.xlu0 %1580, %v1263
    %v1582 = vpop.permute.xlu0 %1581
    %v1648 = vunpack.c.l.b16 %v1136
    %v1649 = vunpack.c.l.b16 %v1137
    %v1650 = vunpack.c.l.b16 %v1138
    %v1651 = vunpack.c.l.b16 %v1139
    %v1652 = vunpack.c.l.b16 %v1140
    %v1653 = vunpack.c.l.b16 %v1141
    %v1654 = vunpack.c.l.b16 %v1142
    %v1655 = vunpack.c.l.b16 %v1143
    %v1656 = vunpack.c.l.b16 %v1144
    %v1657 = vunpack.c.l.b16 %v1145
    %v1658 = vunpack.c.l.b16 %v1146
    %v1659 = vunpack.c.l.b16 %v1147
    %v1660 = vunpack.c.l.b16 %v1148
    %v1661 = vunpack.c.l.b16 %v1149
    %v1662 = vunpack.c.l.b16 %v1150
    %v1663 = vunpack.c.l.b16 %v1151
    %v1664 = vunpack.c.l.b16 %v1152
    %v1665 = vunpack.c.l.b16 %v1153
    %v1666 = vunpack.c.l.b16 %v1154
    %v1667 = vunpack.c.l.b16 %v1155
    %v1668 = vunpack.c.l.b16 %v1156
    %v1669 = vunpack.c.l.b16 %v1157
    %v1670 = vunpack.c.l.b16 %v1158
    %v1671 = vunpack.c.l.b16 %v1159
    %v1672 = vunpack.c.l.b16 %v1160
    %v1673 = vunpack.c.l.b16 %v1161
    %v1674 = vunpack.c.l.b16 %v1162
    %v1675 = vunpack.c.l.b16 %v1163
    %v1676 = vunpack.c.l.b16 %v1164
    %v1677 = vunpack.c.l.b16 %v1165
    %v1678 = vunpack.c.l.b16 %v1166
    %v1679 = vunpack.c.l.b16 %v1167
    %v1680 = vunpack.c.l.b16 %v1168
    %v1681 = vunpack.c.l.b16 %v1169
    %v1682 = vunpack.c.l.b16 %v1170
    %v1683 = vunpack.c.l.b16 %v1171
    %v1684 = vunpack.c.l.b16 %v1172
    %v1685 = vunpack.c.l.b16 %v1173
    %v1686 = vunpack.c.l.b16 %v1174
    %v1687 = vunpack.c.l.b16 %v1175
    %v1688 = vunpack.c.l.b16 %v1176
    %v1689 = vunpack.c.l.b16 %v1177
    %v1690 = vunpack.c.l.b16 %v1178
    %v1691 = vunpack.c.l.b16 %v1179
    %v1692 = vunpack.c.l.b16 %v1180
    %v1693 = vunpack.c.l.b16 %v1181
    %v1694 = vunpack.c.l.b16 %v1182
    %v1695 = vunpack.c.l.b16 %v1183
    %v1696 = vunpack.c.l.b16 %v1184
    %v1697 = vunpack.c.l.b16 %v1185
    %v1698 = vunpack.c.l.b16 %v1186
    %v1699 = vunpack.c.l.b16 %v1187
    %v1700 = vunpack.c.l.b16 %v1188
    %v1701 = vunpack.c.l.b16 %v1189
    %v1702 = vunpack.c.l.b16 %v1190
    %v1703 = vunpack.c.l.b16 %v1191
    %v1704 = vunpack.c.l.b16 %v1192
    %v1705 = vunpack.c.l.b16 %v1193
    %v1706 = vunpack.c.l.b16 %v1194
    %v1707 = vunpack.c.l.b16 %v1195
    %v1708 = vunpack.c.l.b16 %v1196
    %v1709 = vunpack.c.l.b16 %v1197
    %v1710 = vunpack.c.l.b16 %v1198
    %v1711 = vunpack.c.l.b16 %v1199
    %v1712 = vpack.c.b16 %v1649, %v1648
    %v1713 = vpack.c.b16 %v1651, %v1650
    %v1714 = vpack.c.b16 %v1653, %v1652
    %v1715 = vpack.c.b16 %v1655, %v1654
    %v1716 = vpack.c.b16 %v1657, %v1656
    %v1717 = vpack.c.b16 %v1659, %v1658
    %v1718 = vpack.c.b16 %v1661, %v1660
    %v1719 = vpack.c.b16 %v1663, %v1662
    %v1720 = vpack.c.b16 %v1665, %v1664
    %v1721 = vpack.c.b16 %v1667, %v1666
    %v1722 = vpack.c.b16 %v1669, %v1668
    %v1723 = vpack.c.b16 %v1671, %v1670
    %v1724 = vpack.c.b16 %v1673, %v1672
    %v1725 = vpack.c.b16 %v1675, %v1674
    %v1726 = vpack.c.b16 %v1677, %v1676
    %v1727 = vpack.c.b16 %v1679, %v1678
    %v1728 = vpack.c.b16 %v1681, %v1680
    %v1729 = vpack.c.b16 %v1683, %v1682
    %v1730 = vpack.c.b16 %v1685, %v1684
    %v1731 = vpack.c.b16 %v1687, %v1686
    %v1732 = vpack.c.b16 %v1689, %v1688
    %v1733 = vpack.c.b16 %v1691, %v1690
    %v1734 = vpack.c.b16 %v1693, %v1692
    %v1735 = vpack.c.b16 %v1695, %v1694
    %v1736 = vpack.c.b16 %v1697, %v1696
    %v1737 = vpack.c.b16 %v1699, %v1698
    %v1738 = vpack.c.b16 %v1701, %v1700
    %v1739 = vpack.c.b16 %v1703, %v1702
    %v1740 = vpack.c.b16 %v1705, %v1704
    %v1741 = vpack.c.b16 %v1707, %v1706
    %v1742 = vpack.c.b16 %v1709, %v1708
    %v1743 = vpack.c.b16 %v1711, %v1710
    %v1745 = vsel %vm646, %v1712, 0
    %v1748 = vsel %vm646, %v1713, 0
    %v1751 = vsel %vm646, %v1714, 0
    %v1754 = vsel %vm646, %v1715, 0
    %v1757 = vsel %vm646, %v1716, 0
    %v1760 = vsel %vm646, %v1717, 0
    %v1763 = vsel %vm646, %v1718, 0
    %v1766 = vsel %vm646, %v1719, 0
    %v1769 = vsel %vm646, %v1720, 0
    %v1772 = vsel %vm646, %v1721, 0
    %v1775 = vsel %vm646, %v1722, 0
    %v1778 = vsel %vm646, %v1723, 0
    %v1781 = vsel %vm646, %v1724, 0
    %v1784 = vsel %vm646, %v1725, 0
    %v1787 = vsel %vm646, %v1726, 0
    %v1790 = vsel %vm646, %v1727, 0
    %v1793 = vsel %vm646, %v1728, 0
    %v1796 = vsel %vm646, %v1729, 0
    %v1799 = vsel %vm646, %v1730, 0
    %v1802 = vsel %vm646, %v1731, 0
    %v1805 = vsel %vm646, %v1732, 0
    %v1808 = vsel %vm646, %v1733, 0
    %v1811 = vsel %vm646, %v1734, 0
    %v1814 = vsel %vm646, %v1735, 0
    %v1817 = vsel %vm646, %v1736, 0
    %v1820 = vsel %vm646, %v1737, 0
    %v1823 = vsel %vm646, %v1738, 0
    %v1826 = vsel %vm646, %v1739, 0
    %v1829 = vsel %vm646, %v1740, 0
    %v1832 = vsel %vm646, %v1741, 0
    %v1835 = vsel %vm646, %v1742, 0
    %v1838 = vsel %vm646, %v1743, 0
    %1840 = vmatprep.subr.bf16.mxu0 0
    %1841 = vmatpush1.bf16.msra.mxu0 %v642
    %1842 = vmatprep.subr.bf16.mxu0 0
    %1843 = vmatpush1.bf16.msra.mxu0 %v643
    %1844 = vmatprep.subr.bf16.mxu0 0
    %1845 = vmatpush1.bf16.msra.mxu0 0
    %1846 = vmatprep.subr.bf16.mxu0 0
    %1847 = vmatpush1.bf16.msra.mxu0 0
    %1848 = vmatprep.subr.bf16.mxu0 0
    %1849 = vmatpush1.bf16.msra.mxu0 0
    %1850 = vmatprep.subr.bf16.mxu0 0
    %1851 = vmatpush1.bf16.msra.mxu0 0
    %1852 = vmatprep.subr.bf16.mxu0 0
    %1853 = vmatpush1.bf16.msra.mxu0 0
    %1854 = vmatprep.subr.bf16.mxu0 0
    %1855 = vmatpush1.bf16.msra.mxu0 0
    %1856 = vmatprep.subr.bf16.mxu0 0
    %1857 = vmatpush1.bf16.msra.mxu0 0
    %1858 = vmatprep.subr.bf16.mxu0 0
    %1859 = vmatpush1.bf16.msra.mxu0 0
    %1860 = vmatprep.subr.bf16.mxu0 0
    %1861 = vmatpush1.bf16.msra.mxu0 0
    %1862 = vmatprep.subr.bf16.mxu0 0
    %1863 = vmatpush1.bf16.msra.mxu0 0
    %1864 = vmatprep.subr.bf16.mxu0 0
    %1865 = vmatpush1.bf16.msra.mxu0 0
    %1866 = vmatprep.subr.bf16.mxu0 0
    %1867 = vmatpush1.bf16.msra.mxu0 0
    %1868 = vmatprep.subr.bf16.mxu0 0
    %1869 = vmatpush1.bf16.msra.mxu0 0
    %1870 = vmatprep.subr.bf16.mxu0 0
    %1871 = vmatpush1.bf16.msra.mxu0 0
    %1872 = vmatprep.mubr.bf16.mxu0 0
    %1873 = vmatmul.mubr.bf16.gmra.mrb[0].mxu0 %v1745
    %v1874 = vpop.f32.mrb[0].mxu0
    %v1875 = vadd.f32 %v1267, %v1874
    %v1876 = vpop.f32.mrb[0].mxu0
    %v1877 = vpop.f32.mrb[0].mxu0
    %v1878 = vadd.f32 %v1272, %v1877
    %v1879 = vpop.f32.mrb[0].mxu0
    %1880 = vmatprep.mubr.bf16.mxu0 0
    %1881 = vmatmul.mubr.bf16.gmra.mrb[0].mxu0 %v1748
    %v1882 = vpop.f32.mrb[0].mxu0
    %v1883 = vadd.f32 %v1277, %v1882
    %v1884 = vpop.f32.mrb[0].mxu0
    %v1885 = vpop.f32.mrb[0].mxu0
    %v1886 = vadd.f32 %v1282, %v1885
    %v1887 = vpop.f32.mrb[0].mxu0
    %1888 = vmatprep.mubr.bf16.mxu0 0
    %1889 = vmatmul.mubr.bf16.gmra.mrb[0].mxu0 %v1751
    %v1890 = vpop.f32.mrb[0].mxu0
    %v1891 = vadd.f32 %v1287, %v1890
    %v1892 = vpop.f32.mrb[0].mxu0
    %v1893 = vpop.f32.mrb[0].mxu0
    %v1894 = vadd.f32 %v1292, %v1893
    %v1895 = vpop.f32.mrb[0].mxu0
    %1896 = vmatprep.mubr.bf16.mxu0 0
    %1897 = vmatmul.mubr.bf16.gmra.mrb[0].mxu0 %v1754
    %v1898 = vpop.f32.mrb[0].mxu0
    %v1899 = vadd.f32 %v1297, %v1898
    %v1900 = vpop.f32.mrb[0].mxu0
    %v1901 = vpop.f32.mrb[0].mxu0
    %v1902 = vadd.f32 %v1302, %v1901
    %v1903 = vpop.f32.mrb[0].mxu0
    %1904 = vmatprep.mubr.bf16.mxu0 0
    %1905 = vmatmul.mubr.bf16.gmra.mrb[0].mxu0 %v1757
    %v1906 = vpop.f32.mrb[0].mxu0
    %v1907 = vadd.f32 %v1307, %v1906
    %v1908 = vpop.f32.mrb[0].mxu0
    %v1909 = vpop.f32.mrb[0].mxu0
    %v1910 = vadd.f32 %v1312, %v1909
    %v1911 = vpop.f32.mrb[0].mxu0
    %1912 = vmatprep.mubr.bf16.mxu0 0
    %1913 = vmatmul.mubr.bf16.gmra.mrb[0].mxu0 %v1760
    %v1914 = vpop.f32.mrb[0].mxu0
    %v1915 = vadd.f32 %v1317, %v1914
    %v1916 = vpop.f32.mrb[0].mxu0
    %v1917 = vpop.f32.mrb[0].mxu0
    %v1918 = vadd.f32 %v1322, %v1917
    %v1919 = vpop.f32.mrb[0].mxu0
    %1920 = vmatprep.mubr.bf16.mxu0 0
    %1921 = vmatmul.mubr.bf16.gmra.mrb[0].mxu0 %v1763
    %v1922 = vpop.f32.mrb[0].mxu0
    %v1923 = vadd.f32 %v1327, %v1922
    %v1924 = vpop.f32.mrb[0].mxu0
    %v1925 = vpop.f32.mrb[0].mxu0
    %v1926 = vadd.f32 %v1332, %v1925
    %v1927 = vpop.f32.mrb[0].mxu0
    %1928 = vmatprep.mubr.bf16.mxu0 0
    %1929 = vmatmul.mubr.bf16.gmra.mrb[0].mxu0 %v1766
    %v1930 = vpop.f32.mrb[0].mxu0
    %v1931 = vadd.f32 %v1337, %v1930
    %v1932 = vpop.f32.mrb[0].mxu0
    %v1933 = vpop.f32.mrb[0].mxu0
    %v1934 = vadd.f32 %v1342, %v1933
    %v1935 = vpop.f32.mrb[0].mxu0
    %1936 = vmatprep.mubr.bf16.mxu0 0
    %1937 = vmatmul.mubr.bf16.gmra.mrb[0].mxu0 %v1769
    %v1938 = vpop.f32.mrb[0].mxu0
    %v1939 = vadd.f32 %v1347, %v1938
    %v1940 = vpop.f32.mrb[0].mxu0
    %v1941 = vpop.f32.mrb[0].mxu0
    %v1942 = vadd.f32 %v1352, %v1941
    %v1943 = vpop.f32.mrb[0].mxu0
    %1944 = vmatprep.mubr.bf16.mxu0 0
    %1945 = vmatmul.mubr.bf16.gmra.mrb[0].mxu0 %v1772
    %v1946 = vpop.f32.mrb[0].mxu0
    %v1947 = vadd.f32 %v1357, %v1946
    %v1948 = vpop.f32.mrb[0].mxu0
    %v1949 = vpop.f32.mrb[0].mxu0
    %v1950 = vadd.f32 %v1362, %v1949
    %v1951 = vpop.f32.mrb[0].mxu0
    %1952 = vmatprep.mubr.bf16.mxu0 0
    %1953 = vmatmul.mubr.bf16.gmra.mrb[0].mxu0 %v1775
    %v1954 = vpop.f32.mrb[0].mxu0
    %v1955 = vadd.f32 %v1367, %v1954
    %v1956 = vpop.f32.mrb[0].mxu0
    %v1957 = vpop.f32.mrb[0].mxu0
    %v1958 = vadd.f32 %v1372, %v1957
    %v1959 = vpop.f32.mrb[0].mxu0
    %1960 = vmatprep.mubr.bf16.mxu0 0
    %1961 = vmatmul.mubr.bf16.gmra.mrb[0].mxu0 %v1778
    %v1962 = vpop.f32.mrb[0].mxu0
    %v1963 = vadd.f32 %v1377, %v1962
    %v1964 = vpop.f32.mrb[0].mxu0
    %v1965 = vpop.f32.mrb[0].mxu0
    %v1966 = vadd.f32 %v1382, %v1965
    %v1967 = vpop.f32.mrb[0].mxu0
    %1968 = vmatprep.mubr.bf16.mxu0 0
    %1969 = vmatmul.mubr.bf16.gmra.mrb[0].mxu0 %v1781
    %v1970 = vpop.f32.mrb[0].mxu0
    %v1971 = vadd.f32 %v1387, %v1970
    %v1972 = vpop.f32.mrb[0].mxu0
    %v1973 = vpop.f32.mrb[0].mxu0
    %v1974 = vadd.f32 %v1392, %v1973
    %v1975 = vpop.f32.mrb[0].mxu0
    %1976 = vmatprep.mubr.bf16.mxu0 0
    %1977 = vmatmul.mubr.bf16.gmra.mrb[0].mxu0 %v1784
    %v1978 = vpop.f32.mrb[0].mxu0
    %v1979 = vadd.f32 %v1397, %v1978
    %v1980 = vpop.f32.mrb[0].mxu0
    %v1981 = vpop.f32.mrb[0].mxu0
    %v1982 = vadd.f32 %v1402, %v1981
    %v1983 = vpop.f32.mrb[0].mxu0
    %1984 = vmatprep.mubr.bf16.mxu0 0
    %1985 = vmatmul.mubr.bf16.gmra.mrb[0].mxu0 %v1787
    %v1986 = vpop.f32.mrb[0].mxu0
    %v1987 = vadd.f32 %v1407, %v1986
    %v1988 = vpop.f32.mrb[0].mxu0
    %v1989 = vpop.f32.mrb[0].mxu0
    %v1990 = vadd.f32 %v1412, %v1989
    %v1991 = vpop.f32.mrb[0].mxu0
    %1992 = vmatprep.mubr.bf16.mxu0 0
    %1993 = vmatmul.mubr.bf16.gmra.mrb[0].mxu0 %v1790
    %v1994 = vpop.f32.mrb[0].mxu0
    %v1995 = vadd.f32 %v1417, %v1994
    %v1996 = vpop.f32.mrb[0].mxu0
    %v1997 = vpop.f32.mrb[0].mxu0
    %v1998 = vadd.f32 %v1422, %v1997
    %v1999 = vpop.f32.mrb[0].mxu0
    %2000 = vmatprep.mubr.bf16.mxu0 0
    %2001 = vmatmul.mubr.bf16.gmra.mrb[0].mxu0 %v1793
    %v2002 = vpop.f32.mrb[0].mxu0
    %v2003 = vadd.f32 %v1427, %v2002
    %v2004 = vpop.f32.mrb[0].mxu0
    %v2005 = vpop.f32.mrb[0].mxu0
    %v2006 = vadd.f32 %v1432, %v2005
    %v2007 = vpop.f32.mrb[0].mxu0
    %2008 = vmatprep.mubr.bf16.mxu0 0
    %2009 = vmatmul.mubr.bf16.gmra.mrb[0].mxu0 %v1796
    %v2010 = vpop.f32.mrb[0].mxu0
    %v2011 = vadd.f32 %v1437, %v2010
    %v2012 = vpop.f32.mrb[0].mxu0
    %v2013 = vpop.f32.mrb[0].mxu0
    %v2014 = vadd.f32 %v1442, %v2013
    %v2015 = vpop.f32.mrb[0].mxu0
    %2016 = vmatprep.mubr.bf16.mxu0 0
    %2017 = vmatmul.mubr.bf16.gmra.mrb[0].mxu0 %v1799
    %v2018 = vpop.f32.mrb[0].mxu0
    %v2019 = vadd.f32 %v1447, %v2018
    %v2020 = vpop.f32.mrb[0].mxu0
    %v2021 = vpop.f32.mrb[0].mxu0
    %v2022 = vadd.f32 %v1452, %v2021
    %v2023 = vpop.f32.mrb[0].mxu0
    %2024 = vmatprep.mubr.bf16.mxu0 0
    %2025 = vmatmul.mubr.bf16.gmra.mrb[0].mxu0 %v1802
    %v2026 = vpop.f32.mrb[0].mxu0
    %v2027 = vadd.f32 %v1457, %v2026
    %v2028 = vpop.f32.mrb[0].mxu0
    %v2029 = vpop.f32.mrb[0].mxu0
    %v2030 = vadd.f32 %v1462, %v2029
    %v2031 = vpop.f32.mrb[0].mxu0
    %2032 = vmatprep.mubr.bf16.mxu0 0
    %2033 = vmatmul.mubr.bf16.gmra.mrb[0].mxu0 %v1805
    %v2034 = vpop.f32.mrb[0].mxu0
    %v2035 = vadd.f32 %v1467, %v2034
    %v2036 = vpop.f32.mrb[0].mxu0
    %v2037 = vpop.f32.mrb[0].mxu0
    %v2038 = vadd.f32 %v1472, %v2037
    %v2039 = vpop.f32.mrb[0].mxu0
    %2040 = vmatprep.mubr.bf16.mxu0 0
    %2041 = vmatmul.mubr.bf16.gmra.mrb[0].mxu0 %v1808
    %v2042 = vpop.f32.mrb[0].mxu0
    %v2043 = vadd.f32 %v1477, %v2042
    %v2044 = vpop.f32.mrb[0].mxu0
    %v2045 = vpop.f32.mrb[0].mxu0
    %v2046 = vadd.f32 %v1482, %v2045
    %v2047 = vpop.f32.mrb[0].mxu0
    %2048 = vmatprep.mubr.bf16.mxu0 0
    %2049 = vmatmul.mubr.bf16.gmra.mrb[0].mxu0 %v1811
    %v2050 = vpop.f32.mrb[0].mxu0
    %v2051 = vadd.f32 %v1487, %v2050
    %v2052 = vpop.f32.mrb[0].mxu0
    %v2053 = vpop.f32.mrb[0].mxu0
    %v2054 = vadd.f32 %v1492, %v2053
    %v2055 = vpop.f32.mrb[0].mxu0
    %2056 = vmatprep.mubr.bf16.mxu0 0
    %2057 = vmatmul.mubr.bf16.gmra.mrb[0].mxu0 %v1814
    %v2058 = vpop.f32.mrb[0].mxu0
    %v2059 = vadd.f32 %v1497, %v2058
    %v2060 = vpop.f32.mrb[0].mxu0
    %v2061 = vpop.f32.mrb[0].mxu0
    %v2062 = vadd.f32 %v1502, %v2061
    %v2063 = vpop.f32.mrb[0].mxu0
    %2064 = vmatprep.mubr.bf16.mxu0 0
    %2065 = vmatmul.mubr.bf16.gmra.mrb[0].mxu0 %v1817
    %v2066 = vpop.f32.mrb[0].mxu0
    %v2067 = vadd.f32 %v1507, %v2066
    %v2068 = vpop.f32.mrb[0].mxu0
    %v2069 = vpop.f32.mrb[0].mxu0
    %v2070 = vadd.f32 %v1512, %v2069
    %v2071 = vpop.f32.mrb[0].mxu0
    %2072 = vmatprep.mubr.bf16.mxu0 0
    %2073 = vmatmul.mubr.bf16.gmra.mrb[0].mxu0 %v1820
    %v2074 = vpop.f32.mrb[0].mxu0
    %v2075 = vadd.f32 %v1517, %v2074
    %v2076 = vpop.f32.mrb[0].mxu0
    %v2077 = vpop.f32.mrb[0].mxu0
    %v2078 = vadd.f32 %v1522, %v2077
    %v2079 = vpop.f32.mrb[0].mxu0
    %2080 = vmatprep.mubr.bf16.mxu0 0
    %2081 = vmatmul.mubr.bf16.gmra.mrb[0].mxu0 %v1823
    %v2082 = vpop.f32.mrb[0].mxu0
    %v2083 = vadd.f32 %v1527, %v2082
    %v2084 = vpop.f32.mrb[0].mxu0
    %v2085 = vpop.f32.mrb[0].mxu0
    %v2086 = vadd.f32 %v1532, %v2085
    %v2087 = vpop.f32.mrb[0].mxu0
    %2088 = vmatprep.mubr.bf16.mxu0 0
    %2089 = vmatmul.mubr.bf16.gmra.mrb[0].mxu0 %v1826
    %v2090 = vpop.f32.mrb[0].mxu0
    %v2091 = vadd.f32 %v1537, %v2090
    %v2092 = vpop.f32.mrb[0].mxu0
    %v2093 = vpop.f32.mrb[0].mxu0
    %v2094 = vadd.f32 %v1542, %v2093
    %v2095 = vpop.f32.mrb[0].mxu0
    %2096 = vmatprep.mubr.bf16.mxu0 0
    %2097 = vmatmul.mubr.bf16.gmra.mrb[0].mxu0 %v1829
    %v2098 = vpop.f32.mrb[0].mxu0
    %v2099 = vadd.f32 %v1547, %v2098
    %v2100 = vpop.f32.mrb[0].mxu0
    %v2101 = vpop.f32.mrb[0].mxu0
    %v2102 = vadd.f32 %v1552, %v2101
    %v2103 = vpop.f32.mrb[0].mxu0
    %2104 = vmatprep.mubr.bf16.mxu0 0
    %2105 = vmatmul.mubr.bf16.gmra.mrb[0].mxu0 %v1832
    %v2106 = vpop.f32.mrb[0].mxu0
    %v2107 = vadd.f32 %v1557, %v2106
    %v2108 = vpop.f32.mrb[0].mxu0
    %v2109 = vpop.f32.mrb[0].mxu0
    %v2110 = vadd.f32 %v1562, %v2109
    %v2111 = vpop.f32.mrb[0].mxu0
    %2112 = vmatprep.mubr.bf16.mxu0 0
    %2113 = vmatmul.mubr.bf16.gmra.mrb[0].mxu0 %v1835
    %v2114 = vpop.f32.mrb[0].mxu0
    %v2115 = vadd.f32 %v1567, %v2114
    %v2116 = vpop.f32.mrb[0].mxu0
    %v2117 = vpop.f32.mrb[0].mxu0
    %v2118 = vadd.f32 %v1572, %v2117
    %v2119 = vpop.f32.mrb[0].mxu0
    %2120 = vmatprep.mubr.bf16.mxu0 0
    %2121 = vmatmul.mubr.bf16.gmra.mrb[0].mxu0 %v1838
    %v2122 = vpop.f32.mrb[0].mxu0
    %v2123 = vadd.f32 %v1577, %v2122
    %v2124 = vpop.f32.mrb[0].mxu0
    %v2125 = vpop.f32.mrb[0].mxu0
    %v2126 = vadd.f32 %v1582, %v2125
    %v2127 = vpop.f32.mrb[0].mxu0
    %2128 = vdwg.mxu0
    %v2129 = vmax.f32 %v1875, 0.0
    %v2130 = vmax.f32 %v1878, 0.0
    %v2131 = vmax.f32 %v1883, 0.0
    %v2132 = vmax.f32 %v1886, 0.0
    %v2133 = vmax.f32 %v1891, 0.0
    %v2134 = vmax.f32 %v1894, 0.0
    %v2135 = vmax.f32 %v1899, 0.0
    %v2136 = vmax.f32 %v1902, 0.0
    %v2137 = vmax.f32 %v1907, 0.0
    %v2138 = vmax.f32 %v1910, 0.0
    %v2139 = vmax.f32 %v1915, 0.0
    %v2140 = vmax.f32 %v1918, 0.0
    %v2141 = vmax.f32 %v1923, 0.0
    %v2142 = vmax.f32 %v1926, 0.0
    %v2143 = vmax.f32 %v1931, 0.0
    %v2144 = vmax.f32 %v1934, 0.0
    %v2145 = vmax.f32 %v1939, 0.0
    %v2146 = vmax.f32 %v1942, 0.0
    %v2147 = vmax.f32 %v1947, 0.0
    %v2148 = vmax.f32 %v1950, 0.0
    %v2149 = vmax.f32 %v1955, 0.0
    %v2150 = vmax.f32 %v1958, 0.0
    %v2151 = vmax.f32 %v1963, 0.0
    %v2152 = vmax.f32 %v1966, 0.0
    %v2153 = vmax.f32 %v1971, 0.0
    %v2154 = vmax.f32 %v1974, 0.0
    %v2155 = vmax.f32 %v1979, 0.0
    %v2156 = vmax.f32 %v1982, 0.0
    %v2157 = vmax.f32 %v1987, 0.0
    %v2158 = vmax.f32 %v1990, 0.0
    %v2159 = vmax.f32 %v1995, 0.0
    %v2160 = vmax.f32 %v1998, 0.0
    %v2161 = vmax.f32 %v2003, 0.0
    %v2162 = vmax.f32 %v2006, 0.0
    %v2163 = vmax.f32 %v2011, 0.0
    %v2164 = vmax.f32 %v2014, 0.0
    %v2165 = vmax.f32 %v2019, 0.0
    %v2166 = vmax.f32 %v2022, 0.0
    %v2167 = vmax.f32 %v2027, 0.0
    %v2168 = vmax.f32 %v2030, 0.0
    %v2169 = vmax.f32 %v2035, 0.0
    %v2170 = vmax.f32 %v2038, 0.0
    %v2171 = vmax.f32 %v2043, 0.0
    %v2172 = vmax.f32 %v2046, 0.0
    %v2173 = vmax.f32 %v2051, 0.0
    %v2174 = vmax.f32 %v2054, 0.0
    %v2175 = vmax.f32 %v2059, 0.0
    %v2176 = vmax.f32 %v2062, 0.0
    %v2177 = vmax.f32 %v2067, 0.0
    %v2178 = vmax.f32 %v2070, 0.0
    %v2179 = vmax.f32 %v2075, 0.0
    %v2180 = vmax.f32 %v2078, 0.0
    %v2181 = vmax.f32 %v2083, 0.0
    %v2182 = vmax.f32 %v2086, 0.0
    %v2183 = vmax.f32 %v2091, 0.0
    %v2184 = vmax.f32 %v2094, 0.0
    %v2185 = vmax.f32 %v2099, 0.0
    %v2186 = vmax.f32 %v2102, 0.0
    %v2187 = vmax.f32 %v2107, 0.0
    %v2188 = vmax.f32 %v2110, 0.0
    %v2189 = vmax.f32 %v2115, 0.0
    %v2190 = vmax.f32 %v2118, 0.0
    %v2191 = vmax.f32 %v2123, 0.0
    %v2192 = vmax.f32 %v2126, 0.0
    %v2193 = vld [vmem:[%s3 + $0x10] sm:$0xff]
    %v2194 = vld [vmem:[%s3 + $0x18] sm:$0xff]
    %v2195 = vld [vmem:[%s3 + $0x50] sm:$0xff]
    %v2196 = vld [vmem:[%s3 + $0x58] sm:$0xff]
    %v2197 = vld [vmem:[%s3 + $0x90] sm:$0xff]
    %v2198 = vld [vmem:[%s3 + $0x98] sm:$0xff]
    %v2199 = vld [vmem:[%s3 + $0xd0] sm:$0xff]
    %v2200 = vld [vmem:[%s3 + $0xd8] sm:$0xff]
    %v2201 = vpack.c.bf16 %v2130, %v2129
    %v2202 = vpack.c.bf16 %v2132, %v2131
    %v2203 = vpack.c.bf16 %v2134, %v2133
    %v2204 = vpack.c.bf16 %v2136, %v2135
    %v2205 = vpack.c.bf16 %v2138, %v2137
    %v2206 = vpack.c.bf16 %v2140, %v2139
    %v2207 = vpack.c.bf16 %v2142, %v2141
    %v2208 = vpack.c.bf16 %v2144, %v2143
    %v2209 = vpack.c.bf16 %v2146, %v2145
    %v2210 = vpack.c.bf16 %v2148, %v2147
    %v2211 = vpack.c.bf16 %v2150, %v2149
    %v2212 = vpack.c.bf16 %v2152, %v2151
    %v2213 = vpack.c.bf16 %v2154, %v2153
    %v2214 = vpack.c.bf16 %v2156, %v2155
    %v2215 = vpack.c.bf16 %v2158, %v2157
    %v2216 = vpack.c.bf16 %v2160, %v2159
    %v2217 = vpack.c.bf16 %v2162, %v2161
    %v2218 = vpack.c.bf16 %v2164, %v2163
    %v2219 = vpack.c.bf16 %v2166, %v2165
    %v2220 = vpack.c.bf16 %v2168, %v2167
    %v2221 = vpack.c.bf16 %v2170, %v2169
    %v2222 = vpack.c.bf16 %v2172, %v2171
    %v2223 = vpack.c.bf16 %v2174, %v2173
    %v2224 = vpack.c.bf16 %v2176, %v2175
    %v2225 = vpack.c.bf16 %v2178, %v2177
    %v2226 = vpack.c.bf16 %v2180, %v2179
    %v2227 = vpack.c.bf16 %v2182, %v2181
    %v2228 = vpack.c.bf16 %v2184, %v2183
    %v2229 = vpack.c.bf16 %v2186, %v2185
    %v2230 = vpack.c.bf16 %v2188, %v2187
    %v2231 = vpack.c.bf16 %v2190, %v2189
    %v2232 = vpack.c.bf16 %v2192, %v2191
    %v2241 = vunpack.c.l.b16 %v2193
    %v2242 = vunpack.c.h.b16 %v2193
    %v2243 = vunpack.c.l.b16 %v2194
    %v2244 = vunpack.c.h.b16 %v2194
    %v2245 = vunpack.c.l.b16 %v2195
    %v2246 = vunpack.c.h.b16 %v2195
    %v2247 = vunpack.c.l.b16 %v2196
    %v2248 = vunpack.c.h.b16 %v2196
    %v2249 = vunpack.c.l.b16 %v2197
    %v2250 = vunpack.c.h.b16 %v2197
    %v2251 = vunpack.c.l.b16 %v2198
    %v2252 = vunpack.c.h.b16 %v2198
    %v2253 = vunpack.c.l.b16 %v2199
    %v2254 = vunpack.c.h.b16 %v2199
    %v2255 = vunpack.c.l.b16 %v2200
    %v2256 = vunpack.c.h.b16 %v2200
    %v2257 = vpack.c.b16 %v2245, %v2241
    %v2258 = vpack.c.b16 %v2246, %v2242
    %v2259 = vpack.c.b16 %v2247, %v2243
    %v2260 = vpack.c.b16 %v2248, %v2244
    %v2261 = vpack.c.b16 %v2253, %v2249
    %v2262 = vpack.c.b16 %v2254, %v2250
    %v2263 = vpack.c.b16 %v2255, %v2251
    %v2264 = vpack.c.b16 %v2256, %v2252
    %2273 = vmatprep.subr.bf16.mxu0 0
    %2274 = vmatpush1.bf16.msra.mxu0 %v2201
    %2275 = vmatprep.subr.bf16.mxu0 0
    %2276 = vmatpush1.bf16.msra.mxu0 %v2202
    %2277 = vmatprep.subr.bf16.mxu0 0
    %2278 = vmatpush1.bf16.msra.mxu0 %v2203
    %2279 = vmatprep.subr.bf16.mxu0 0
    %2280 = vmatpush1.bf16.msra.mxu0 %v2204
    %2281 = vmatprep.subr.bf16.mxu0 0
    %2282 = vmatpush1.bf16.msra.mxu0 %v2205
    %2283 = vmatprep.subr.bf16.mxu0 0
    %2284 = vmatpush1.bf16.msra.mxu0 %v2206
    %2285 = vmatprep.subr.bf16.mxu0 0
    %2286 = vmatpush1.bf16.msra.mxu0 %v2207
    %2287 = vmatprep.subr.bf16.mxu0 0
    %2288 = vmatpush1.bf16.msra.mxu0 %v2208
    %2289 = vmatprep.subr.bf16.mxu0 0
    %2290 = vmatpush1.bf16.msra.mxu0 %v2209
    %2291 = vmatprep.subr.bf16.mxu0 0
    %2292 = vmatpush1.bf16.msra.mxu0 %v2210
    %2293 = vmatprep.subr.bf16.mxu0 0
    %2294 = vmatpush1.bf16.msra.mxu0 %v2211
    %2295 = vmatprep.subr.bf16.mxu0 0
    %2296 = vmatpush1.bf16.msra.mxu0 %v2212
    %2297 = vmatprep.subr.bf16.mxu0 0
    %2298 = vmatpush1.bf16.msra.mxu0 %v2213
    %2299 = vmatprep.subr.bf16.mxu0 0
    %2300 = vmatpush1.bf16.msra.mxu0 %v2214
    %2301 = vmatprep.subr.bf16.mxu0 0
    %2302 = vmatpush1.bf16.msra.mxu0 %v2215
    %2303 = vmatprep.subr.bf16.mxu0 0
    %2304 = vmatpush1.bf16.msra.mxu0 %v2216
    %2305 = vmatprep.mubr.bf16.mxu0 %v2258
    %2306 = vmatmul.mubr.bf16.gmra.mrb[0].mxu0 %v2257
    %v2307 = vpop.f32.mrb[0].mxu0
    %v2308 = vadd.f32 0.0, %v2307
    %v2309 = vpop.f32.mrb[0].mxu0
    %v2310 = vpop.f32.mrb[0].mxu0
    %v2311 = vadd.f32 0.0, %v2310
    %v2312 = vpop.f32.mrb[0].mxu0
    %2313 = vmatprep.mubr.bf16.mxu0 %v2262
    %2314 = vmatmul.mubr.bf16.gmra.mrb[0].mxu0 %v2261
    %v2315 = vpop.f32.mrb[0].mxu0
    %v2316 = vadd.f32 0.0, %v2315
    %v2317 = vpop.f32.mrb[0].mxu0
    %v2318 = vpop.f32.mrb[0].mxu0
    %v2319 = vadd.f32 0.0, %v2318
    %v2320 = vpop.f32.mrb[0].mxu0
    %2321 = vdwg.mxu0
    %2322 = vmatprep.subr.bf16.mxu0 0
    %2323 = vmatpush1.bf16.msra.mxu0 %v2217
    %2324 = vmatprep.subr.bf16.mxu0 0
    %2325 = vmatpush1.bf16.msra.mxu0 %v2218
    %2326 = vmatprep.subr.bf16.mxu0 0
    %2327 = vmatpush1.bf16.msra.mxu0 %v2219
    %2328 = vmatprep.subr.bf16.mxu0 0
    %2329 = vmatpush1.bf16.msra.mxu0 %v2220
    %2330 = vmatprep.subr.bf16.mxu0 0
    %2331 = vmatpush1.bf16.msra.mxu0 %v2221
    %2332 = vmatprep.subr.bf16.mxu0 0
    %2333 = vmatpush1.bf16.msra.mxu0 %v2222
    %2334 = vmatprep.subr.bf16.mxu0 0
    %2335 = vmatpush1.bf16.msra.mxu0 %v2223
    %2336 = vmatprep.subr.bf16.mxu0 0
    %2337 = vmatpush1.bf16.msra.mxu0 %v2224
    %2338 = vmatprep.subr.bf16.mxu0 0
    %2339 = vmatpush1.bf16.msra.mxu0 %v2225
    %2340 = vmatprep.subr.bf16.mxu0 0
    %2341 = vmatpush1.bf16.msra.mxu0 %v2226
    %2342 = vmatprep.subr.bf16.mxu0 0
    %2343 = vmatpush1.bf16.msra.mxu0 %v2227
    %2344 = vmatprep.subr.bf16.mxu0 0
    %2345 = vmatpush1.bf16.msra.mxu0 %v2228
    %2346 = vmatprep.subr.bf16.mxu0 0
    %2347 = vmatpush1.bf16.msra.mxu0 %v2229
    %2348 = vmatprep.subr.bf16.mxu0 0
    %2349 = vmatpush1.bf16.msra.mxu0 %v2230
    %2350 = vmatprep.subr.bf16.mxu0 0
    %2351 = vmatpush1.bf16.msra.mxu0 %v2231
    %2352 = vmatprep.subr.bf16.mxu0 0
    %2353 = vmatpush1.bf16.msra.mxu0 %v2232
    %2354 = vmatprep.mubr.bf16.mxu0 %v2260
    %2355 = vmatmul.mubr.bf16.gmra.mrb[0].mxu0 %v2259
    %v2356 = vpop.f32.mrb[0].mxu0
    %v2357 = vadd.f32 %v2308, %v2356
    %v2358 = vpop.f32.mrb[0].mxu0
    %v2359 = vpop.f32.mrb[0].mxu0
    %v2360 = vadd.f32 %v2311, %v2359
    %v2361 = vpop.f32.mrb[0].mxu0
    %2362 = vmatprep.mubr.bf16.mxu0 %v2264
    %2363 = vmatmul.mubr.bf16.gmra.mrb[0].mxu0 %v2263
    %v2364 = vpop.f32.mrb[0].mxu0
    %v2365 = vadd.f32 %v2316, %v2364
    %v2366 = vpop.f32.mrb[0].mxu0
    %v2367 = vpop.f32.mrb[0].mxu0
    %v2368 = vadd.f32 %v2319, %v2367
    %v2369 = vpop.f32.mrb[0].mxu0
    %2370 = vdwg.mxu0
    %v2379 = vunpack.c.l.b16 %v1096
    %v2380 = vunpack.c.h.b16 %v1096
    %v2381 = vunpack.c.l.b16 %v1097
    %v2382 = vunpack.c.h.b16 %v1097
    %v2383 = vunpack.c.l.b16 %v1098
    %v2384 = vunpack.c.h.b16 %v1098
    %v2385 = vunpack.c.l.b16 %v1099
    %v2386 = vunpack.c.h.b16 %v1099
    %v2387 = vunpack.c.l.b16 %v1100
    %v2388 = vunpack.c.h.b16 %v1100
    %v2389 = vunpack.c.l.b16 %v1101
    %v2390 = vunpack.c.h.b16 %v1101
    %v2391 = vunpack.c.l.b16 %v1102
    %v2392 = vunpack.c.h.b16 %v1102
    %v2393 = vunpack.c.l.b16 %v1103
    %v2394 = vunpack.c.h.b16 %v1103
    %v2395 = vpack.c.b16 %v2383, %v2379
    %v2396 = vpack.c.b16 %v2384, %v2380
    %v2397 = vpack.c.b16 %v2385, %v2381
    %v2398 = vpack.c.b16 %v2386, %v2382
    %v2399 = vpack.c.b16 %v2391, %v2387
    %v2400 = vpack.c.b16 %v2392, %v2388
    %v2401 = vpack.c.b16 %v2393, %v2389
    %v2402 = vpack.c.b16 %v2394, %v2390
    %2411 = vmatprep.subr.bf16.mxu0 0
    %2412 = vmatpush1.bf16.msra.mxu0 %v1104
    %2413 = vmatprep.subr.bf16.mxu0 0
    %2414 = vmatpush1.bf16.msra.mxu0 %v1105
    %2415 = vmatprep.subr.bf16.mxu0 0
    %2416 = vmatpush1.bf16.msra.mxu0 %v1106
    %2417 = vmatprep.subr.bf16.mxu0 0
    %2418 = vmatpush1.bf16.msra.mxu0 %v1107
    %2419 = vmatprep.subr.bf16.mxu0 0
    %2420 = vmatpush1.bf16.msra.mxu0 %v1108
    %2421 = vmatprep.subr.bf16.mxu0 0
    %2422 = vmatpush1.bf16.msra.mxu0 %v1109
    %2423 = vmatprep.subr.bf16.mxu0 0
    %2424 = vmatpush1.bf16.msra.mxu0 %v1110
    %2425 = vmatprep.subr.bf16.mxu0 0
    %2426 = vmatpush1.bf16.msra.mxu0 %v1111
    %2427 = vmatprep.subr.bf16.mxu0 0
    %2428 = vmatpush1.bf16.msra.mxu0 %v1112
    %2429 = vmatprep.subr.bf16.mxu0 0
    %2430 = vmatpush1.bf16.msra.mxu0 %v1113
    %2431 = vmatprep.subr.bf16.mxu0 0
    %2432 = vmatpush1.bf16.msra.mxu0 %v1114
    %2433 = vmatprep.subr.bf16.mxu0 0
    %2434 = vmatpush1.bf16.msra.mxu0 %v1115
    %2435 = vmatprep.subr.bf16.mxu0 0
    %2436 = vmatpush1.bf16.msra.mxu0 %v1116
    %2437 = vmatprep.subr.bf16.mxu0 0
    %2438 = vmatpush1.bf16.msra.mxu0 %v1117
    %2439 = vmatprep.subr.bf16.mxu0 0
    %2440 = vmatpush1.bf16.msra.mxu0 %v1118
    %2441 = vmatprep.subr.bf16.mxu0 0
    %2442 = vmatpush1.bf16.msra.mxu0 %v1119
    %2443 = vmatprep.mubr.bf16.mxu0 %v2396
    %2444 = vmatmul.mubr.bf16.gmra.mrb[0].mxu0 %v2395
    %v2445 = vpop.f32.mrb[0].mxu0
    %v2446 = vadd.f32 %v2357, %v2445
    %v2447 = vpop.f32.mrb[0].mxu0
    %v2448 = vpop.f32.mrb[0].mxu0
    %v2449 = vadd.f32 %v2360, %v2448
    %v2450 = vpop.f32.mrb[0].mxu0
    %2451 = vmatprep.mubr.bf16.mxu0 %v2400
    %2452 = vmatmul.mubr.bf16.gmra.mrb[0].mxu0 %v2399
    %v2453 = vpop.f32.mrb[0].mxu0
    %v2454 = vadd.f32 %v2365, %v2453
    %v2455 = vpop.f32.mrb[0].mxu0
    %v2456 = vpop.f32.mrb[0].mxu0
    %v2457 = vadd.f32 %v2368, %v2456
    %v2458 = vpop.f32.mrb[0].mxu0
    %2459 = vdwg.mxu0
    %2460 = vmatprep.subr.bf16.mxu0 0
    %2461 = vmatpush1.bf16.msra.mxu0 %v1120
    %2462 = vmatprep.subr.bf16.mxu0 0
    %2463 = vmatpush1.bf16.msra.mxu0 %v1121
    %2464 = vmatprep.subr.bf16.mxu0 0
    %2465 = vmatpush1.bf16.msra.mxu0 %v1122
    %2466 = vmatprep.subr.bf16.mxu0 0
    %2467 = vmatpush1.bf16.msra.mxu0 %v1123
    %2468 = vmatprep.subr.bf16.mxu0 0
    %2469 = vmatpush1.bf16.msra.mxu0 %v1124
    %2470 = vmatprep.subr.bf16.mxu0 0
    %2471 = vmatpush1.bf16.msra.mxu0 %v1125
    %2472 = vmatprep.subr.bf16.mxu0 0
    %2473 = vmatpush1.bf16.msra.mxu0 %v1126
    %2474 = vmatprep.subr.bf16.mxu0 0
    %2475 = vmatpush1.bf16.msra.mxu0 %v1127
    %2476 = vmatprep.subr.bf16.mxu0 0
    %2477 = vmatpush1.bf16.msra.mxu0 %v1128
    %2478 = vmatprep.subr.bf16.mxu0 0
    %2479 = vmatpush1.bf16.msra.mxu0 %v1129
    %2480 = vmatprep.subr.bf16.mxu0 0
    %2481 = vmatpush1.bf16.msra.mxu0 %v1130
    %2482 = vmatprep.subr.bf16.mxu0 0
    %2483 = vmatpush1.bf16.msra.mxu0 %v1131
    %2484 = vmatprep.subr.bf16.mxu0 0
    %2485 = vmatpush1.bf16.msra.mxu0 %v1132
    %2486 = vmatprep.subr.bf16.mxu0 0
    %2487 = vmatpush1.bf16.msra.mxu0 %v1133
    %2488 = vmatprep.subr.bf16.mxu0 0
    %2489 = vmatpush1.bf16.msra.mxu0 %v1134
    %2490 = vmatprep.subr.bf16.mxu0 0
    %2491 = vmatpush1.bf16.msra.mxu0 %v1135
    %2492 = vmatprep.mubr.bf16.mxu0 %v2398
    %2493 = vmatmul.mubr.bf16.gmra.mrb[0].mxu0 %v2397
    %v2494 = vpop.f32.mrb[0].mxu0
    %v2495 = vadd.f32 %v2446, %v2494
    %v2496 = vpop.f32.mrb[0].mxu0
    %v2497 = vpop.f32.mrb[0].mxu0
    %v2498 = vadd.f32 %v2449, %v2497
    %v2499 = vpop.f32.mrb[0].mxu0
    %2500 = vmatprep.mubr.bf16.mxu0 %v2402
    %2501 = vmatmul.mubr.bf16.gmra.mrb[0].mxu0 %v2401
    %v2502 = vpop.f32.mrb[0].mxu0
    %v2503 = vadd.f32 %v2454, %v2502
    %v2504 = vpop.f32.mrb[0].mxu0
    %v2505 = vpop.f32.mrb[0].mxu0
    %v2506 = vadd.f32 %v2457, %v2505
    %v2507 = vpop.f32.mrb[0].mxu0
    %2508 = vdwg.mxu0
    %v2509 = vld [vmem:[%s1 + $0x200] sm:$0xf]
    %v2510 = vld [vmem:[%s1 + $0x204] sm:$0xf]
    %v2511 = vld [vmem:[%s1 + $0x208] sm:$0xf]
    %v2512 = vld [vmem:[%s1 + $0x20c] sm:$0xf]
    %v2513 = vld [vmem:[%s1 + $0x210] sm:$0xf]
    %v2514 = vld [vmem:[%s1 + $0x214] sm:$0xf]
    %v2515 = vld [vmem:[%s1 + $0x218] sm:$0xf]
    %v2516 = vld [vmem:[%s1 + $0x21c] sm:$0xf]
    %v2517 = vld [vmem:[%s1 + $0x220] sm:$0xf]
    %v2518 = vld [vmem:[%s1 + $0x224] sm:$0xf]
    %v2519 = vld [vmem:[%s1 + $0x228] sm:$0xf]
    %v2520 = vld [vmem:[%s1 + $0x22c] sm:$0xf]
    %v2521 = vld [vmem:[%s1 + $0x230] sm:$0xf]
    %v2522 = vld [vmem:[%s1 + $0x234] sm:$0xf]
    %v2523 = vld [vmem:[%s1 + $0x238] sm:$0xf]
    %v2524 = vld [vmem:[%s1 + $0x23c] sm:$0xf]
    %v2525 = vld [vmem:[%s1 + $0x240] sm:$0xf]
    %v2526 = vld [vmem:[%s1 + $0x244] sm:$0xf]
    %v2527 = vld [vmem:[%s1 + $0x248] sm:$0xf]
    %v2528 = vld [vmem:[%s1 + $0x24c] sm:$0xf]
    %v2529 = vld [vmem:[%s1 + $0x250] sm:$0xf]
    %v2530 = vld [vmem:[%s1 + $0x254] sm:$0xf]
    %v2531 = vld [vmem:[%s1 + $0x258] sm:$0xf]
    %v2532 = vld [vmem:[%s1 + $0x25c] sm:$0xf]
    %v2533 = vld [vmem:[%s1 + $0x260] sm:$0xf]
    %v2534 = vld [vmem:[%s1 + $0x264] sm:$0xf]
    %v2535 = vld [vmem:[%s1 + $0x268] sm:$0xf]
    %v2536 = vld [vmem:[%s1 + $0x26c] sm:$0xf]
    %v2537 = vld [vmem:[%s1 + $0x270] sm:$0xf]
    %v2538 = vld [vmem:[%s1 + $0x274] sm:$0xf]
    %v2539 = vld [vmem:[%s1 + $0x278] sm:$0xf]
    %v2540 = vld [vmem:[%s1 + $0x27c] sm:$0xf]
    %v2541 = vld [vmem:[%s1 + $0x280] sm:$0xf]
    %v2542 = vld [vmem:[%s1 + $0x284] sm:$0xf]
    %v2543 = vld [vmem:[%s1 + $0x288] sm:$0xf]
    %v2544 = vld [vmem:[%s1 + $0x28c] sm:$0xf]
    %v2545 = vld [vmem:[%s1 + $0x290] sm:$0xf]
    %v2546 = vld [vmem:[%s1 + $0x294] sm:$0xf]
    %v2547 = vld [vmem:[%s1 + $0x298] sm:$0xf]
    %v2548 = vld [vmem:[%s1 + $0x29c] sm:$0xf]
    %v2549 = vld [vmem:[%s1 + $0x2a0] sm:$0xf]
    %v2550 = vld [vmem:[%s1 + $0x2a4] sm:$0xf]
    %v2551 = vld [vmem:[%s1 + $0x2a8] sm:$0xf]
    %v2552 = vld [vmem:[%s1 + $0x2ac] sm:$0xf]
    %v2553 = vld [vmem:[%s1 + $0x2b0] sm:$0xf]
    %v2554 = vld [vmem:[%s1 + $0x2b4] sm:$0xf]
    %v2555 = vld [vmem:[%s1 + $0x2b8] sm:$0xf]
    %v2556 = vld [vmem:[%s1 + $0x2bc] sm:$0xf]
    %v2557 = vld [vmem:[%s1 + $0x2c0] sm:$0xf]
    %v2558 = vld [vmem:[%s1 + $0x2c4] sm:$0xf]
    %v2559 = vld [vmem:[%s1 + $0x2c8] sm:$0xf]
    %v2560 = vld [vmem:[%s1 + $0x2cc] sm:$0xf]
    %v2561 = vld [vmem:[%s1 + $0x2d0] sm:$0xf]
    %v2562 = vld [vmem:[%s1 + $0x2d4] sm:$0xf]
    %v2563 = vld [vmem:[%s1 + $0x2d8] sm:$0xf]
    %v2564 = vld [vmem:[%s1 + $0x2dc] sm:$0xf]
    %v2565 = vld [vmem:[%s1 + $0x2e0] sm:$0xf]
    %v2566 = vld [vmem:[%s1 + $0x2e4] sm:$0xf]
    %v2567 = vld [vmem:[%s1 + $0x2e8] sm:$0xf]
    %v2568 = vld [vmem:[%s1 + $0x2ec] sm:$0xf]
    %v2569 = vld [vmem:[%s1 + $0x2f0] sm:$0xf]
    %v2570 = vld [vmem:[%s1 + $0x2f4] sm:$0xf]
    %v2571 = vld [vmem:[%s1 + $0x2f8] sm:$0xf]
    %v2572 = vld [vmem:[%s1 + $0x2fc] sm:$0xf]
    %v2573 = vld [vmem:[%s2 + $0x400] sm:$0xff]
    %v2574 = vld [vmem:[%s2 + $0x408] sm:$0xff]
    %v2575 = vld [vmem:[%s2 + $0x410] sm:$0xff]
    %v2576 = vld [vmem:[%s2 + $0x418] sm:$0xff]
    %v2577 = vld [vmem:[%s2 + $0x420] sm:$0xff]
    %v2578 = vld [vmem:[%s2 + $0x428] sm:$0xff]
    %v2579 = vld [vmem:[%s2 + $0x430] sm:$0xff]
    %v2580 = vld [vmem:[%s2 + $0x438] sm:$0xff]
    %v2581 = vld [vmem:[%s2 + $0x440] sm:$0xff]
    %v2582 = vld [vmem:[%s2 + $0x448] sm:$0xff]
    %v2583 = vld [vmem:[%s2 + $0x450] sm:$0xff]
    %v2584 = vld [vmem:[%s2 + $0x458] sm:$0xff]
    %v2585 = vld [vmem:[%s2 + $0x460] sm:$0xff]
    %v2586 = vld [vmem:[%s2 + $0x468] sm:$0xff]
    %v2587 = vld [vmem:[%s2 + $0x470] sm:$0xff]
    %v2588 = vld [vmem:[%s2 + $0x478] sm:$0xff]
    %v2589 = vld [vmem:[%s2 + $0x480] sm:$0xff]
    %v2590 = vld [vmem:[%s2 + $0x488] sm:$0xff]
    %v2591 = vld [vmem:[%s2 + $0x490] sm:$0xff]
    %v2592 = vld [vmem:[%s2 + $0x498] sm:$0xff]
    %v2593 = vld [vmem:[%s2 + $0x4a0] sm:$0xff]
    %v2594 = vld [vmem:[%s2 + $0x4a8] sm:$0xff]
    %v2595 = vld [vmem:[%s2 + $0x4b0] sm:$0xff]
    %v2596 = vld [vmem:[%s2 + $0x4b8] sm:$0xff]
    %v2597 = vld [vmem:[%s2 + $0x4c0] sm:$0xff]
    %v2598 = vld [vmem:[%s2 + $0x4c8] sm:$0xff]
    %v2599 = vld [vmem:[%s2 + $0x4d0] sm:$0xff]
    %v2600 = vld [vmem:[%s2 + $0x4d8] sm:$0xff]
    %v2601 = vld [vmem:[%s2 + $0x4e0] sm:$0xff]
    %v2602 = vld [vmem:[%s2 + $0x4e8] sm:$0xff]
    %v2603 = vld [vmem:[%s2 + $0x4f0] sm:$0xff]
    %v2604 = vld [vmem:[%s2 + $0x4f8] sm:$0xff]
    %v2605 = vld [vmem:[%s2 + $0x500] sm:$0xff]
    %v2606 = vld [vmem:[%s2 + $0x508] sm:$0xff]
    %v2607 = vld [vmem:[%s2 + $0x510] sm:$0xff]
    %v2608 = vld [vmem:[%s2 + $0x518] sm:$0xff]
    %v2609 = vld [vmem:[%s2 + $0x520] sm:$0xff]
    %v2610 = vld [vmem:[%s2 + $0x528] sm:$0xff]
    %v2611 = vld [vmem:[%s2 + $0x530] sm:$0xff]
    %v2612 = vld [vmem:[%s2 + $0x538] sm:$0xff]
    %v2613 = vld [vmem:[%s2 + $0x540] sm:$0xff]
    %v2614 = vld [vmem:[%s2 + $0x548] sm:$0xff]
    %v2615 = vld [vmem:[%s2 + $0x550] sm:$0xff]
    %v2616 = vld [vmem:[%s2 + $0x558] sm:$0xff]
    %v2617 = vld [vmem:[%s2 + $0x560] sm:$0xff]
    %v2618 = vld [vmem:[%s2 + $0x568] sm:$0xff]
    %v2619 = vld [vmem:[%s2 + $0x570] sm:$0xff]
    %v2620 = vld [vmem:[%s2 + $0x578] sm:$0xff]
    %v2621 = vld [vmem:[%s2 + $0x580] sm:$0xff]
    %v2622 = vld [vmem:[%s2 + $0x588] sm:$0xff]
    %v2623 = vld [vmem:[%s2 + $0x590] sm:$0xff]
    %v2624 = vld [vmem:[%s2 + $0x598] sm:$0xff]
    %v2625 = vld [vmem:[%s2 + $0x5a0] sm:$0xff]
    %v2626 = vld [vmem:[%s2 + $0x5a8] sm:$0xff]
    %v2627 = vld [vmem:[%s2 + $0x5b0] sm:$0xff]
    %v2628 = vld [vmem:[%s2 + $0x5b8] sm:$0xff]
    %v2629 = vld [vmem:[%s2 + $0x5c0] sm:$0xff]
    %v2630 = vld [vmem:[%s2 + $0x5c8] sm:$0xff]
    %v2631 = vld [vmem:[%s2 + $0x5d0] sm:$0xff]
    %v2632 = vld [vmem:[%s2 + $0x5d8] sm:$0xff]
    %v2633 = vld [vmem:[%s2 + $0x5e0] sm:$0xff]
    %v2634 = vld [vmem:[%s2 + $0x5e8] sm:$0xff]
    %v2635 = vld [vmem:[%s2 + $0x5f0] sm:$0xff]
    %v2636 = vld [vmem:[%s2 + $0x5f8] sm:$0xff]
    %2638 = vset.pattern.permute.xlu0 0
    %2639 = vperm.xlu0 %2638, %v2573
    %v2640 = vpop.permute.xlu0 %2639
    %2643 = vset.pattern.permute.xlu0 0
    %2644 = vperm.xlu0 %2643, %v2574
    %v2645 = vpop.permute.xlu0 %2644
    %2648 = vset.pattern.permute.xlu0 0
    %2649 = vperm.xlu0 %2648, %v2575
    %v2650 = vpop.permute.xlu0 %2649
    %2653 = vset.pattern.permute.xlu0 0
    %2654 = vperm.xlu0 %2653, %v2576
    %v2655 = vpop.permute.xlu0 %2654
    %2658 = vset.pattern.permute.xlu0 0
    %2659 = vperm.xlu0 %2658, %v2577
    %v2660 = vpop.permute.xlu0 %2659
    %2663 = vset.pattern.permute.xlu0 0
    %2664 = vperm.xlu0 %2663, %v2578
    %v2665 = vpop.permute.xlu0 %2664
    %2668 = vset.pattern.permute.xlu0 0
    %2669 = vperm.xlu0 %2668, %v2579
    %v2670 = vpop.permute.xlu0 %2669
    %2673 = vset.pattern.permute.xlu0 0
    %2674 = vperm.xlu0 %2673, %v2580
    %v2675 = vpop.permute.xlu0 %2674
    %2678 = vset.pattern.permute.xlu0 0
    %2679 = vperm.xlu0 %2678, %v2581
    %v2680 = vpop.permute.xlu0 %2679
    %2683 = vset.pattern.permute.xlu0 0
    %2684 = vperm.xlu0 %2683, %v2582
    %v2685 = vpop.permute.xlu0 %2684
    %2688 = vset.pattern.permute.xlu0 0
    %2689 = vperm.xlu0 %2688, %v2583
    %v2690 = vpop.permute.xlu0 %2689
    %2693 = vset.pattern.permute.xlu0 0
    %2694 = vperm.xlu0 %2693, %v2584
    %v2695 = vpop.permute.xlu0 %2694
    %2698 = vset.pattern.permute.xlu0 0
    %2699 = vperm.xlu0 %2698, %v2585
    %v2700 = vpop.permute.xlu0 %2699
    %2703 = vset.pattern.permute.xlu0 0
    %2704 = vperm.xlu0 %2703, %v2586
    %v2705 = vpop.permute.xlu0 %2704
    %2708 = vset.pattern.permute.xlu0 0
    %2709 = vperm.xlu0 %2708, %v2587
    %v2710 = vpop.permute.xlu0 %2709
    %2713 = vset.pattern.permute.xlu0 0
    %2714 = vperm.xlu0 %2713, %v2588
    %v2715 = vpop.permute.xlu0 %2714
    %2718 = vset.pattern.permute.xlu0 0
    %2719 = vperm.xlu0 %2718, %v2589
    %v2720 = vpop.permute.xlu0 %2719
    %2723 = vset.pattern.permute.xlu0 0
    %2724 = vperm.xlu0 %2723, %v2590
    %v2725 = vpop.permute.xlu0 %2724
    %2728 = vset.pattern.permute.xlu0 0
    %2729 = vperm.xlu0 %2728, %v2591
    %v2730 = vpop.permute.xlu0 %2729
    %2733 = vset.pattern.permute.xlu0 0
    %2734 = vperm.xlu0 %2733, %v2592
    %v2735 = vpop.permute.xlu0 %2734
    %2738 = vset.pattern.permute.xlu0 0
    %2739 = vperm.xlu0 %2738, %v2593
    %v2740 = vpop.permute.xlu0 %2739
    %2743 = vset.pattern.permute.xlu0 0
    %2744 = vperm.xlu0 %2743, %v2594
    %v2745 = vpop.permute.xlu0 %2744
    %2748 = vset.pattern.permute.xlu0 0
    %2749 = vperm.xlu0 %2748, %v2595
    %v2750 = vpop.permute.xlu0 %2749
    %2753 = vset.pattern.permute.xlu0 0
    %2754 = vperm.xlu0 %2753, %v2596
    %v2755 = vpop.permute.xlu0 %2754
    %2758 = vset.pattern.permute.xlu0 0
    %2759 = vperm.xlu0 %2758, %v2597
    %v2760 = vpop.permute.xlu0 %2759
    %2763 = vset.pattern.permute.xlu0 0
    %2764 = vperm.xlu0 %2763, %v2598
    %v2765 = vpop.permute.xlu0 %2764
    %2768 = vset.pattern.permute.xlu0 0
    %2769 = vperm.xlu0 %2768, %v2599
    %v2770 = vpop.permute.xlu0 %2769
    %2773 = vset.pattern.permute.xlu0 0
    %2774 = vperm.xlu0 %2773, %v2600
    %v2775 = vpop.permute.xlu0 %2774
    %2778 = vset.pattern.permute.xlu0 0
    %2779 = vperm.xlu0 %2778, %v2601
    %v2780 = vpop.permute.xlu0 %2779
    %2783 = vset.pattern.permute.xlu0 0
    %2784 = vperm.xlu0 %2783, %v2602
    %v2785 = vpop.permute.xlu0 %2784
    %2788 = vset.pattern.permute.xlu0 0
    %2789 = vperm.xlu0 %2788, %v2603
    %v2790 = vpop.permute.xlu0 %2789
    %2793 = vset.pattern.permute.xlu0 0
    %2794 = vperm.xlu0 %2793, %v2604
    %v2795 = vpop.permute.xlu0 %2794
    %2798 = vset.pattern.permute.xlu0 0
    %2799 = vperm.xlu0 %2798, %v2605
    %v2800 = vpop.permute.xlu0 %2799
    %2803 = vset.pattern.permute.xlu0 0
    %2804 = vperm.xlu0 %2803, %v2606
    %v2805 = vpop.permute.xlu0 %2804
    %2808 = vset.pattern.permute.xlu0 0
    %2809 = vperm.xlu0 %2808, %v2607
    %v2810 = vpop.permute.xlu0 %2809
    %2813 = vset.pattern.permute.xlu0 0
    %2814 = vperm.xlu0 %2813, %v2608
    %v2815 = vpop.permute.xlu0 %2814
    %2818 = vset.pattern.permute.xlu0 0
    %2819 = vperm.xlu0 %2818, %v2609
    %v2820 = vpop.permute.xlu0 %2819
    %2823 = vset.pattern.permute.xlu0 0
    %2824 = vperm.xlu0 %2823, %v2610
    %v2825 = vpop.permute.xlu0 %2824
    %2828 = vset.pattern.permute.xlu0 0
    %2829 = vperm.xlu0 %2828, %v2611
    %v2830 = vpop.permute.xlu0 %2829
    %2833 = vset.pattern.permute.xlu0 0
    %2834 = vperm.xlu0 %2833, %v2612
    %v2835 = vpop.permute.xlu0 %2834
    %2838 = vset.pattern.permute.xlu0 0
    %2839 = vperm.xlu0 %2838, %v2613
    %v2840 = vpop.permute.xlu0 %2839
    %2843 = vset.pattern.permute.xlu0 0
    %2844 = vperm.xlu0 %2843, %v2614
    %v2845 = vpop.permute.xlu0 %2844
    %2848 = vset.pattern.permute.xlu0 0
    %2849 = vperm.xlu0 %2848, %v2615
    %v2850 = vpop.permute.xlu0 %2849
    %2853 = vset.pattern.permute.xlu0 0
    %2854 = vperm.xlu0 %2853, %v2616
    %v2855 = vpop.permute.xlu0 %2854
    %2858 = vset.pattern.permute.xlu0 0
    %2859 = vperm.xlu0 %2858, %v2617
    %v2860 = vpop.permute.xlu0 %2859
    %2863 = vset.pattern.permute.xlu0 0
    %2864 = vperm.xlu0 %2863, %v2618
    %v2865 = vpop.permute.xlu0 %2864
    %2868 = vset.pattern.permute.xlu0 0
    %2869 = vperm.xlu0 %2868, %v2619
    %v2870 = vpop.permute.xlu0 %2869
    %2873 = vset.pattern.permute.xlu0 0
    %2874 = vperm.xlu0 %2873, %v2620
    %v2875 = vpop.permute.xlu0 %2874
    %2878 = vset.pattern.permute.xlu0 0
    %2879 = vperm.xlu0 %2878, %v2621
    %v2880 = vpop.permute.xlu0 %2879
    %2883 = vset.pattern.permute.xlu0 0
    %2884 = vperm.xlu0 %2883, %v2622
    %v2885 = vpop.permute.xlu0 %2884
    %2888 = vset.pattern.permute.xlu0 0
    %2889 = vperm.xlu0 %2888, %v2623
    %v2890 = vpop.permute.xlu0 %2889
    %2893 = vset.pattern.permute.xlu0 0
    %2894 = vperm.xlu0 %2893, %v2624
    %v2895 = vpop.permute.xlu0 %2894
    %2898 = vset.pattern.permute.xlu0 0
    %2899 = vperm.xlu0 %2898, %v2625
    %v2900 = vpop.permute.xlu0 %2899
    %2903 = vset.pattern.permute.xlu0 0
    %2904 = vperm.xlu0 %2903, %v2626
    %v2905 = vpop.permute.xlu0 %2904
    %2908 = vset.pattern.permute.xlu0 0
    %2909 = vperm.xlu0 %2908, %v2627
    %v2910 = vpop.permute.xlu0 %2909
    %2913 = vset.pattern.permute.xlu0 0
    %2914 = vperm.xlu0 %2913, %v2628
    %v2915 = vpop.permute.xlu0 %2914
    %2918 = vset.pattern.permute.xlu0 0
    %2919 = vperm.xlu0 %2918, %v2629
    %v2920 = vpop.permute.xlu0 %2919
    %2923 = vset.pattern.permute.xlu0 0
    %2924 = vperm.xlu0 %2923, %v2630
    %v2925 = vpop.permute.xlu0 %2924
    %2928 = vset.pattern.permute.xlu0 0
    %2929 = vperm.xlu0 %2928, %v2631
    %v2930 = vpop.permute.xlu0 %2929
    %2933 = vset.pattern.permute.xlu0 0
    %2934 = vperm.xlu0 %2933, %v2632
    %v2935 = vpop.permute.xlu0 %2934
    %2938 = vset.pattern.permute.xlu0 0
    %2939 = vperm.xlu0 %2938, %v2633
    %v2940 = vpop.permute.xlu0 %2939
    %2943 = vset.pattern.permute.xlu0 0
    %2944 = vperm.xlu0 %2943, %v2634
    %v2945 = vpop.permute.xlu0 %2944
    %2948 = vset.pattern.permute.xlu0 0
    %2949 = vperm.xlu0 %2948, %v2635
    %v2950 = vpop.permute.xlu0 %2949
    %2953 = vset.pattern.permute.xlu0 0
    %2954 = vperm.xlu0 %2953, %v2636
    %v2955 = vpop.permute.xlu0 %2954
    %v3021 = vunpack.c.l.b16 %v2509
    %v3022 = vunpack.c.l.b16 %v2510
    %v3023 = vunpack.c.l.b16 %v2511
    %v3024 = vunpack.c.l.b16 %v2512
    %v3025 = vunpack.c.l.b16 %v2513
    %v3026 = vunpack.c.l.b16 %v2514
    %v3027 = vunpack.c.l.b16 %v2515
    %v3028 = vunpack.c.l.b16 %v2516
    %v3029 = vunpack.c.l.b16 %v2517
    %v3030 = vunpack.c.l.b16 %v2518
    %v3031 = vunpack.c.l.b16 %v2519
    %v3032 = vunpack.c.l.b16 %v2520
    %v3033 = vunpack.c.l.b16 %v2521
    %v3034 = vunpack.c.l.b16 %v2522
    %v3035 = vunpack.c.l.b16 %v2523
    %v3036 = vunpack.c.l.b16 %v2524
    %v3037 = vunpack.c.l.b16 %v2525
    %v3038 = vunpack.c.l.b16 %v2526
    %v3039 = vunpack.c.l.b16 %v2527
    %v3040 = vunpack.c.l.b16 %v2528
    %v3041 = vunpack.c.l.b16 %v2529
    %v3042 = vunpack.c.l.b16 %v2530
    %v3043 = vunpack.c.l.b16 %v2531
    %v3044 = vunpack.c.l.b16 %v2532
    %v3045 = vunpack.c.l.b16 %v2533
    %v3046 = vunpack.c.l.b16 %v2534
    %v3047 = vunpack.c.l.b16 %v2535
    %v3048 = vunpack.c.l.b16 %v2536
    %v3049 = vunpack.c.l.b16 %v2537
    %v3050 = vunpack.c.l.b16 %v2538
    %v3051 = vunpack.c.l.b16 %v2539
    %v3052 = vunpack.c.l.b16 %v2540
    %v3053 = vunpack.c.l.b16 %v2541
    %v3054 = vunpack.c.l.b16 %v2542
    %v3055 = vunpack.c.l.b16 %v2543
    %v3056 = vunpack.c.l.b16 %v2544
    %v3057 = vunpack.c.l.b16 %v2545
    %v3058 = vunpack.c.l.b16 %v2546
    %v3059 = vunpack.c.l.b16 %v2547
    %v3060 = vunpack.c.l.b16 %v2548
    %v3061 = vunpack.c.l.b16 %v2549
    %v3062 = vunpack.c.l.b16 %v2550
    %v3063 = vunpack.c.l.b16 %v2551
    %v3064 = vunpack.c.l.b16 %v2552
    %v3065 = vunpack.c.l.b16 %v2553
    %v3066 = vunpack.c.l.b16 %v2554
    %v3067 = vunpack.c.l.b16 %v2555
    %v3068 = vunpack.c.l.b16 %v2556
    %v3069 = vunpack.c.l.b16 %v2557
    %v3070 = vunpack.c.l.b16 %v2558
    %v3071 = vunpack.c.l.b16 %v2559
    %v3072 = vunpack.c.l.b16 %v2560
    %v3073 = vunpack.c.l.b16 %v2561
    %v3074 = vunpack.c.l.b16 %v2562
    %v3075 = vunpack.c.l.b16 %v2563
    %v3076 = vunpack.c.l.b16 %v2564
    %v3077 = vunpack.c.l.b16 %v2565
    %v3078 = vunpack.c.l.b16 %v2566
    %v3079 = vunpack.c.l.b16 %v2567
    %v3080 = vunpack.c.l.b16 %v2568
    %v3081 = vunpack.c.l.b16 %v2569
    %v3082 = vunpack.c.l.b16 %v2570
    %v3083 = vunpack.c.l.b16 %v2571
    %v3084 = vunpack.c.l.b16 %v2572
    %v3085 = vpack.c.b16 %v3022, %v3021
    %v3086 = vpack.c.b16 %v3024, %v3023
    %v3087 = vpack.c.b16 %v3026, %v3025
    %v3088 = vpack.c.b16 %v3028, %v3027
    %v3089 = vpack.c.b16 %v3030, %v3029
    %v3090 = vpack.c.b16 %v3032, %v3031
    %v3091 = vpack.c.b16 %v3034, %v3033
    %v3092 = vpack.c.b16 %v3036, %v3035
    %v3093 = vpack.c.b16 %v3038, %v3037
    %v3094 = vpack.c.b16 %v3040, %v3039
    %v3095 = vpack.c.b16 %v3042, %v3041
    %v3096 = vpack.c.b16 %v3044, %v3043
    %v3097 = vpack.c.b16 %v3046, %v3045
    %v3098 = vpack.c.b16 %v3048, %v3047
    %v3099 = vpack.c.b16 %v3050, %v3049
    %v3100 = vpack.c.b16 %v3052, %v3051
    %v3101 = vpack.c.b16 %v3054, %v3053
    %v3102 = vpack.c.b16 %v3056, %v3055
    %v3103 = vpack.c.b16 %v3058, %v3057
    %v3104 = vpack.c.b16 %v3060, %v3059
    %v3105 = vpack.c.b16 %v3062, %v3061
    %v3106 = vpack.c.b16 %v3064, %v3063
    %v3107 = vpack.c.b16 %v3066, %v3065
    %v3108 = vpack.c.b16 %v3068, %v3067
    %v3109 = vpack.c.b16 %v3070, %v3069
    %v3110 = vpack.c.b16 %v3072, %v3071
    %v3111 = vpack.c.b16 %v3074, %v3073
    %v3112 = vpack.c.b16 %v3076, %v3075
    %v3113 = vpack.c.b16 %v3078, %v3077
    %v3114 = vpack.c.b16 %v3080, %v3079
    %v3115 = vpack.c.b16 %v3082, %v3081
    %v3116 = vpack.c.b16 %v3084, %v3083
    %v3118 = vsel %vm646, %v3085, 0
    %v3121 = vsel %vm646, %v3086, 0
    %v3124 = vsel %vm646, %v3087, 0
    %v3127 = vsel %vm646, %v3088, 0
    %v3130 = vsel %vm646, %v3089, 0
    %v3133 = vsel %vm646, %v3090, 0
    %v3136 = vsel %vm646, %v3091, 0
    %v3139 = vsel %vm646, %v3092, 0
    %v3142 = vsel %vm646, %v3093, 0
    %v3145 = vsel %vm646, %v3094, 0
    %v3148 = vsel %vm646, %v3095, 0
    %v3151 = vsel %vm646, %v3096, 0
    %v3154 = vsel %vm646, %v3097, 0
    %v3157 = vsel %vm646, %v3098, 0
    %v3160 = vsel %vm646, %v3099, 0
    %v3163 = vsel %vm646, %v3100, 0
    %v3166 = vsel %vm646, %v3101, 0
    %v3169 = vsel %vm646, %v3102, 0
    %v3172 = vsel %vm646, %v3103, 0
    %v3175 = vsel %vm646, %v3104, 0
    %v3178 = vsel %vm646, %v3105, 0
    %v3181 = vsel %vm646, %v3106, 0
    %v3184 = vsel %vm646, %v3107, 0
    %v3187 = vsel %vm646, %v3108, 0
    %v3190 = vsel %vm646, %v3109, 0
    %v3193 = vsel %vm646, %v3110, 0
    %v3196 = vsel %vm646, %v3111, 0
    %v3199 = vsel %vm646, %v3112, 0
    %v3202 = vsel %vm646, %v3113, 0
    %v3205 = vsel %vm646, %v3114, 0
    %v3208 = vsel %vm646, %v3115, 0
    %v3211 = vsel %vm646, %v3116, 0
    %3213 = vmatprep.subr.bf16.mxu0 0
    %3214 = vmatpush1.bf16.msra.mxu0 %v642
    %3215 = vmatprep.subr.bf16.mxu0 0
    %3216 = vmatpush1.bf16.msra.mxu0 %v643
    %3217 = vmatprep.subr.bf16.mxu0 0
    %3218 = vmatpush1.bf16.msra.mxu0 0
    %3219 = vmatprep.subr.bf16.mxu0 0
    %3220 = vmatpush1.bf16.msra.mxu0 0
    %3221 = vmatprep.subr.bf16.mxu0 0
    %3222 = vmatpush1.bf16.msra.mxu0 0
    %3223 = vmatprep.subr.bf16.mxu0 0
    %3224 = vmatpush1.bf16.msra.mxu0 0
    %3225 = vmatprep.subr.bf16.mxu0 0
    %3226 = vmatpush1.bf16.msra.mxu0 0
    %3227 = vmatprep.subr.bf16.mxu0 0
    %3228 = vmatpush1.bf16.msra.mxu0 0
    %3229 = vmatprep.subr.bf16.mxu0 0
    %3230 = vmatpush1.bf16.msra.mxu0 0
    %3231 = vmatprep.subr.bf16.mxu0 0
    %3232 = vmatpush1.bf16.msra.mxu0 0
    %3233 = vmatprep.subr.bf16.mxu0 0
    %3234 = vmatpush1.bf16.msra.mxu0 0
    %3235 = vmatprep.subr.bf16.mxu0 0
    %3236 = vmatpush1.bf16.msra.mxu0 0
    %3237 = vmatprep.subr.bf16.mxu0 0
    %3238 = vmatpush1.bf16.msra.mxu0 0
    %3239 = vmatprep.subr.bf16.mxu0 0
    %3240 = vmatpush1.bf16.msra.mxu0 0
    %3241 = vmatprep.subr.bf16.mxu0 0
    %3242 = vmatpush1.bf16.msra.mxu0 0
    %3243 = vmatprep.subr.bf16.mxu0 0
    %3244 = vmatpush1.bf16.msra.mxu0 0
    %3245 = vmatprep.mubr.bf16.mxu0 0
    %3246 = vmatmul.mubr.bf16.gmra.mrb[0].mxu0 %v3118
    %v3247 = vpop.f32.mrb[0].mxu0
    %v3248 = vadd.f32 %v2640, %v3247
    %v3249 = vpop.f32.mrb[0].mxu0
    %v3250 = vpop.f32.mrb[0].mxu0
    %v3251 = vadd.f32 %v2645, %v3250
    %v3252 = vpop.f32.mrb[0].mxu0
    %3253 = vmatprep.mubr.bf16.mxu0 0
    %3254 = vmatmul.mubr.bf16.gmra.mrb[0].mxu0 %v3121
    %v3255 = vpop.f32.mrb[0].mxu0
    %v3256 = vadd.f32 %v2650, %v3255
    %v3257 = vpop.f32.mrb[0].mxu0
    %v3258 = vpop.f32.mrb[0].mxu0
    %v3259 = vadd.f32 %v2655, %v3258
    %v3260 = vpop.f32.mrb[0].mxu0
    %3261 = vmatprep.mubr.bf16.mxu0 0
    %3262 = vmatmul.mubr.bf16.gmra.mrb[0].mxu0 %v3124
    %v3263 = vpop.f32.mrb[0].mxu0
    %v3264 = vadd.f32 %v2660, %v3263
    %v3265 = vpop.f32.mrb[0].mxu0
    %v3266 = vpop.f32.mrb[0].mxu0
    %v3267 = vadd.f32 %v2665, %v3266
    %v3268 = vpop.f32.mrb[0].mxu0
    %3269 = vmatprep.mubr.bf16.mxu0 0
    %3270 = vmatmul.mubr.bf16.gmra.mrb[0].mxu0 %v3127
    %v3271 = vpop.f32.mrb[0].mxu0
    %v3272 = vadd.f32 %v2670, %v3271
    %v3273 = vpop.f32.mrb[0].mxu0
    %v3274 = vpop.f32.mrb[0].mxu0
    %v3275 = vadd.f32 %v2675, %v3274
    %v3276 = vpop.f32.mrb[0].mxu0
    %3277 = vmatprep.mubr.bf16.mxu0 0
    %3278 = vmatmul.mubr.bf16.gmra.mrb[0].mxu0 %v3130
    %v3279 = vpop.f32.mrb[0].mxu0
    %v3280 = vadd.f32 %v2680, %v3279
    %v3281 = vpop.f32.mrb[0].mxu0
    %v3282 = vpop.f32.mrb[0].mxu0
    %v3283 = vadd.f32 %v2685, %v3282
    %v3284 = vpop.f32.mrb[0].mxu0
    %3285 = vmatprep.mubr.bf16.mxu0 0
    %3286 = vmatmul.mubr.bf16.gmra.mrb[0].mxu0 %v3133
    %v3287 = vpop.f32.mrb[0].mxu0
    %v3288 = vadd.f32 %v2690, %v3287
    %v3289 = vpop.f32.mrb[0].mxu0
    %v3290 = vpop.f32.mrb[0].mxu0
    %v3291 = vadd.f32 %v2695, %v3290
    %v3292 = vpop.f32.mrb[0].mxu0
    %3293 = vmatprep.mubr.bf16.mxu0 0
    %3294 = vmatmul.mubr.bf16.gmra.mrb[0].mxu0 %v3136
    %v3295 = vpop.f32.mrb[0].mxu0
    %v3296 = vadd.f32 %v2700, %v3295
    %v3297 = vpop.f32.mrb[0].mxu0
    %v3298 = vpop.f32.mrb[0].mxu0
    %v3299 = vadd.f32 %v2705, %v3298
    %v3300 = vpop.f32.mrb[0].mxu0
    %3301 = vmatprep.mubr.bf16.mxu0 0
    %3302 = vmatmul.mubr.bf16.gmra.mrb[0].mxu0 %v3139
    %v3303 = vpop.f32.mrb[0].mxu0
    %v3304 = vadd.f32 %v2710, %v3303
    %v3305 = vpop.f32.mrb[0].mxu0
    %v3306 = vpop.f32.mrb[0].mxu0
    %v3307 = vadd.f32 %v2715, %v3306
    %v3308 = vpop.f32.mrb[0].mxu0
    %3309 = vmatprep.mubr.bf16.mxu0 0
    %3310 = vmatmul.mubr.bf16.gmra.mrb[0].mxu0 %v3142
    %v3311 = vpop.f32.mrb[0].mxu0
    %v3312 = vadd.f32 %v2720, %v3311
    %v3313 = vpop.f32.mrb[0].mxu0
    %v3314 = vpop.f32.mrb[0].mxu0
    %v3315 = vadd.f32 %v2725, %v3314
    %v3316 = vpop.f32.mrb[0].mxu0
    %3317 = vmatprep.mubr.bf16.mxu0 0
    %3318 = vmatmul.mubr.bf16.gmra.mrb[0].mxu0 %v3145
    %v3319 = vpop.f32.mrb[0].mxu0
    %v3320 = vadd.f32 %v2730, %v3319
    %v3321 = vpop.f32.mrb[0].mxu0
    %v3322 = vpop.f32.mrb[0].mxu0
    %v3323 = vadd.f32 %v2735, %v3322
    %v3324 = vpop.f32.mrb[0].mxu0
    %3325 = vmatprep.mubr.bf16.mxu0 0
    %3326 = vmatmul.mubr.bf16.gmra.mrb[0].mxu0 %v3148
    %v3327 = vpop.f32.mrb[0].mxu0
    %v3328 = vadd.f32 %v2740, %v3327
    %v3329 = vpop.f32.mrb[0].mxu0
    %v3330 = vpop.f32.mrb[0].mxu0
    %v3331 = vadd.f32 %v2745, %v3330
    %v3332 = vpop.f32.mrb[0].mxu0
    %3333 = vmatprep.mubr.bf16.mxu0 0
    %3334 = vmatmul.mubr.bf16.gmra.mrb[0].mxu0 %v3151
    %v3335 = vpop.f32.mrb[0].mxu0
    %v3336 = vadd.f32 %v2750, %v3335
    %v3337 = vpop.f32.mrb[0].mxu0
    %v3338 = vpop.f32.mrb[0].mxu0
    %v3339 = vadd.f32 %v2755, %v3338
    %v3340 = vpop.f32.mrb[0].mxu0
    %3341 = vmatprep.mubr.bf16.mxu0 0
    %3342 = vmatmul.mubr.bf16.gmra.mrb[0].mxu0 %v3154
    %v3343 = vpop.f32.mrb[0].mxu0
    %v3344 = vadd.f32 %v2760, %v3343
    %v3345 = vpop.f32.mrb[0].mxu0
    %v3346 = vpop.f32.mrb[0].mxu0
    %v3347 = vadd.f32 %v2765, %v3346
    %v3348 = vpop.f32.mrb[0].mxu0
    %3349 = vmatprep.mubr.bf16.mxu0 0
    %3350 = vmatmul.mubr.bf16.gmra.mrb[0].mxu0 %v3157
    %v3351 = vpop.f32.mrb[0].mxu0
    %v3352 = vadd.f32 %v2770, %v3351
    %v3353 = vpop.f32.mrb[0].mxu0
    %v3354 = vpop.f32.mrb[0].mxu0
    %v3355 = vadd.f32 %v2775, %v3354
    %v3356 = vpop.f32.mrb[0].mxu0
    %3357 = vmatprep.mubr.bf16.mxu0 0
    %3358 = vmatmul.mubr.bf16.gmra.mrb[0].mxu0 %v3160
    %v3359 = vpop.f32.mrb[0].mxu0
    %v3360 = vadd.f32 %v2780, %v3359
    %v3361 = vpop.f32.mrb[0].mxu0
    %v3362 = vpop.f32.mrb[0].mxu0
    %v3363 = vadd.f32 %v2785, %v3362
    %v3364 = vpop.f32.mrb[0].mxu0
    %3365 = vmatprep.mubr.bf16.mxu0 0
    %3366 = vmatmul.mubr.bf16.gmra.mrb[0].mxu0 %v3163
    %v3367 = vpop.f32.mrb[0].mxu0
    %v3368 = vadd.f32 %v2790, %v3367
    %v3369 = vpop.f32.mrb[0].mxu0
    %v3370 = vpop.f32.mrb[0].mxu0
    %v3371 = vadd.f32 %v2795, %v3370
    %v3372 = vpop.f32.mrb[0].mxu0
    %3373 = vmatprep.mubr.bf16.mxu0 0
    %3374 = vmatmul.mubr.bf16.gmra.mrb[0].mxu0 %v3166
    %v3375 = vpop.f32.mrb[0].mxu0
    %v3376 = vadd.f32 %v2800, %v3375
    %v3377 = vpop.f32.mrb[0].mxu0
    %v3378 = vpop.f32.mrb[0].mxu0
    %v3379 = vadd.f32 %v2805, %v3378
    %v3380 = vpop.f32.mrb[0].mxu0
    %3381 = vmatprep.mubr.bf16.mxu0 0
    %3382 = vmatmul.mubr.bf16.gmra.mrb[0].mxu0 %v3169
    %v3383 = vpop.f32.mrb[0].mxu0
    %v3384 = vadd.f32 %v2810, %v3383
    %v3385 = vpop.f32.mrb[0].mxu0
    %v3386 = vpop.f32.mrb[0].mxu0
    %v3387 = vadd.f32 %v2815, %v3386
    %v3388 = vpop.f32.mrb[0].mxu0
    %3389 = vmatprep.mubr.bf16.mxu0 0
    %3390 = vmatmul.mubr.bf16.gmra.mrb[0].mxu0 %v3172
    %v3391 = vpop.f32.mrb[0].mxu0
    %v3392 = vadd.f32 %v2820, %v3391
    %v3393 = vpop.f32.mrb[0].mxu0
    %v3394 = vpop.f32.mrb[0].mxu0
    %v3395 = vadd.f32 %v2825, %v3394
    %v3396 = vpop.f32.mrb[0].mxu0
    %3397 = vmatprep.mubr.bf16.mxu0 0
    %3398 = vmatmul.mubr.bf16.gmra.mrb[0].mxu0 %v3175
    %v3399 = vpop.f32.mrb[0].mxu0
    %v3400 = vadd.f32 %v2830, %v3399
    %v3401 = vpop.f32.mrb[0].mxu0
    %v3402 = vpop.f32.mrb[0].mxu0
    %v3403 = vadd.f32 %v2835, %v3402
    %v3404 = vpop.f32.mrb[0].mxu0
    %3405 = vmatprep.mubr.bf16.mxu0 0
    %3406 = vmatmul.mubr.bf16.gmra.mrb[0].mxu0 %v3178
    %v3407 = vpop.f32.mrb[0].mxu0
    %v3408 = vadd.f32 %v2840, %v3407
    %v3409 = vpop.f32.mrb[0].mxu0
    %v3410 = vpop.f32.mrb[0].mxu0
    %v3411 = vadd.f32 %v2845, %v3410
    %v3412 = vpop.f32.mrb[0].mxu0
    %3413 = vmatprep.mubr.bf16.mxu0 0
    %3414 = vmatmul.mubr.bf16.gmra.mrb[0].mxu0 %v3181
    %v3415 = vpop.f32.mrb[0].mxu0
    %v3416 = vadd.f32 %v2850, %v3415
    %v3417 = vpop.f32.mrb[0].mxu0
    %v3418 = vpop.f32.mrb[0].mxu0
    %v3419 = vadd.f32 %v2855, %v3418
    %v3420 = vpop.f32.mrb[0].mxu0
    %3421 = vmatprep.mubr.bf16.mxu0 0
    %3422 = vmatmul.mubr.bf16.gmra.mrb[0].mxu0 %v3184
    %v3423 = vpop.f32.mrb[0].mxu0
    %v3424 = vadd.f32 %v2860, %v3423
    %v3425 = vpop.f32.mrb[0].mxu0
    %v3426 = vpop.f32.mrb[0].mxu0
    %v3427 = vadd.f32 %v2865, %v3426
    %v3428 = vpop.f32.mrb[0].mxu0
    %3429 = vmatprep.mubr.bf16.mxu0 0
    %3430 = vmatmul.mubr.bf16.gmra.mrb[0].mxu0 %v3187
    %v3431 = vpop.f32.mrb[0].mxu0
    %v3432 = vadd.f32 %v2870, %v3431
    %v3433 = vpop.f32.mrb[0].mxu0
    %v3434 = vpop.f32.mrb[0].mxu0
    %v3435 = vadd.f32 %v2875, %v3434
    %v3436 = vpop.f32.mrb[0].mxu0
    %3437 = vmatprep.mubr.bf16.mxu0 0
    %3438 = vmatmul.mubr.bf16.gmra.mrb[0].mxu0 %v3190
    %v3439 = vpop.f32.mrb[0].mxu0
    %v3440 = vadd.f32 %v2880, %v3439
    %v3441 = vpop.f32.mrb[0].mxu0
    %v3442 = vpop.f32.mrb[0].mxu0
    %v3443 = vadd.f32 %v2885, %v3442
    %v3444 = vpop.f32.mrb[0].mxu0
    %3445 = vmatprep.mubr.bf16.mxu0 0
    %3446 = vmatmul.mubr.bf16.gmra.mrb[0].mxu0 %v3193
    %v3447 = vpop.f32.mrb[0].mxu0
    %v3448 = vadd.f32 %v2890, %v3447
    %v3449 = vpop.f32.mrb[0].mxu0
    %v3450 = vpop.f32.mrb[0].mxu0
    %v3451 = vadd.f32 %v2895, %v3450
    %v3452 = vpop.f32.mrb[0].mxu0
    %3453 = vmatprep.mubr.bf16.mxu0 0
    %3454 = vmatmul.mubr.bf16.gmra.mrb[0].mxu0 %v3196
    %v3455 = vpop.f32.mrb[0].mxu0
    %v3456 = vadd.f32 %v2900, %v3455
    %v3457 = vpop.f32.mrb[0].mxu0
    %v3458 = vpop.f32.mrb[0].mxu0
    %v3459 = vadd.f32 %v2905, %v3458
    %v3460 = vpop.f32.mrb[0].mxu0
    %3461 = vmatprep.mubr.bf16.mxu0 0
    %3462 = vmatmul.mubr.bf16.gmra.mrb[0].mxu0 %v3199
    %v3463 = vpop.f32.mrb[0].mxu0
    %v3464 = vadd.f32 %v2910, %v3463
    %v3465 = vpop.f32.mrb[0].mxu0
    %v3466 = vpop.f32.mrb[0].mxu0
    %v3467 = vadd.f32 %v2915, %v3466
    %v3468 = vpop.f32.mrb[0].mxu0
    %3469 = vmatprep.mubr.bf16.mxu0 0
    %3470 = vmatmul.mubr.bf16.gmra.mrb[0].mxu0 %v3202
    %v3471 = vpop.f32.mrb[0].mxu0
    %v3472 = vadd.f32 %v2920, %v3471
    %v3473 = vpop.f32.mrb[0].mxu0
    %v3474 = vpop.f32.mrb[0].mxu0
    %v3475 = vadd.f32 %v2925, %v3474
    %v3476 = vpop.f32.mrb[0].mxu0
    %3477 = vmatprep.mubr.bf16.mxu0 0
    %3478 = vmatmul.mubr.bf16.gmra.mrb[0].mxu0 %v3205
    %v3479 = vpop.f32.mrb[0].mxu0
    %v3480 = vadd.f32 %v2930, %v3479
    %v3481 = vpop.f32.mrb[0].mxu0
    %v3482 = vpop.f32.mrb[0].mxu0
    %v3483 = vadd.f32 %v2935, %v3482
    %v3484 = vpop.f32.mrb[0].mxu0
    %3485 = vmatprep.mubr.bf16.mxu0 0
    %3486 = vmatmul.mubr.bf16.gmra.mrb[0].mxu0 %v3208
    %v3487 = vpop.f32.mrb[0].mxu0
    %v3488 = vadd.f32 %v2940, %v3487
    %v3489 = vpop.f32.mrb[0].mxu0
    %v3490 = vpop.f32.mrb[0].mxu0
    %v3491 = vadd.f32 %v2945, %v3490
    %v3492 = vpop.f32.mrb[0].mxu0
    %3493 = vmatprep.mubr.bf16.mxu0 0
    %3494 = vmatmul.mubr.bf16.gmra.mrb[0].mxu0 %v3211
    %v3495 = vpop.f32.mrb[0].mxu0
    %v3496 = vadd.f32 %v2950, %v3495
    %v3497 = vpop.f32.mrb[0].mxu0
    %v3498 = vpop.f32.mrb[0].mxu0
    %v3499 = vadd.f32 %v2955, %v3498
    %v3500 = vpop.f32.mrb[0].mxu0
    %3501 = vdwg.mxu0
    %v3502 = vmax.f32 %v3248, 0.0
    %v3503 = vmax.f32 %v3251, 0.0
    %v3504 = vmax.f32 %v3256, 0.0
    %v3505 = vmax.f32 %v3259, 0.0
    %v3506 = vmax.f32 %v3264, 0.0
    %v3507 = vmax.f32 %v3267, 0.0
    %v3508 = vmax.f32 %v3272, 0.0
    %v3509 = vmax.f32 %v3275, 0.0
    %v3510 = vmax.f32 %v3280, 0.0
    %v3511 = vmax.f32 %v3283, 0.0
    %v3512 = vmax.f32 %v3288, 0.0
    %v3513 = vmax.f32 %v3291, 0.0
    %v3514 = vmax.f32 %v3296, 0.0
    %v3515 = vmax.f32 %v3299, 0.0
    %v3516 = vmax.f32 %v3304, 0.0
    %v3517 = vmax.f32 %v3307, 0.0
    %v3518 = vmax.f32 %v3312, 0.0
    %v3519 = vmax.f32 %v3315, 0.0
    %v3520 = vmax.f32 %v3320, 0.0
    %v3521 = vmax.f32 %v3323, 0.0
    %v3522 = vmax.f32 %v3328, 0.0
    %v3523 = vmax.f32 %v3331, 0.0
    %v3524 = vmax.f32 %v3336, 0.0
    %v3525 = vmax.f32 %v3339, 0.0
    %v3526 = vmax.f32 %v3344, 0.0
    %v3527 = vmax.f32 %v3347, 0.0
    %v3528 = vmax.f32 %v3352, 0.0
    %v3529 = vmax.f32 %v3355, 0.0
    %v3530 = vmax.f32 %v3360, 0.0
    %v3531 = vmax.f32 %v3363, 0.0
    %v3532 = vmax.f32 %v3368, 0.0
    %v3533 = vmax.f32 %v3371, 0.0
    %v3534 = vmax.f32 %v3376, 0.0
    %v3535 = vmax.f32 %v3379, 0.0
    %v3536 = vmax.f32 %v3384, 0.0
    %v3537 = vmax.f32 %v3387, 0.0
    %v3538 = vmax.f32 %v3392, 0.0
    %v3539 = vmax.f32 %v3395, 0.0
    %v3540 = vmax.f32 %v3400, 0.0
    %v3541 = vmax.f32 %v3403, 0.0
    %v3542 = vmax.f32 %v3408, 0.0
    %v3543 = vmax.f32 %v3411, 0.0
    %v3544 = vmax.f32 %v3416, 0.0
    %v3545 = vmax.f32 %v3419, 0.0
    %v3546 = vmax.f32 %v3424, 0.0
    %v3547 = vmax.f32 %v3427, 0.0
    %v3548 = vmax.f32 %v3432, 0.0
    %v3549 = vmax.f32 %v3435, 0.0
    %v3550 = vmax.f32 %v3440, 0.0
    %v3551 = vmax.f32 %v3443, 0.0
    %v3552 = vmax.f32 %v3448, 0.0
    %v3553 = vmax.f32 %v3451, 0.0
    %v3554 = vmax.f32 %v3456, 0.0
    %v3555 = vmax.f32 %v3459, 0.0
    %v3556 = vmax.f32 %v3464, 0.0
    %v3557 = vmax.f32 %v3467, 0.0
    %v3558 = vmax.f32 %v3472, 0.0
    %v3559 = vmax.f32 %v3475, 0.0
    %v3560 = vmax.f32 %v3480, 0.0
    %v3561 = vmax.f32 %v3483, 0.0
    %v3562 = vmax.f32 %v3488, 0.0
    %v3563 = vmax.f32 %v3491, 0.0
    %v3564 = vmax.f32 %v3496, 0.0
    %v3565 = vmax.f32 %v3499, 0.0
    %v3566 = vld [vmem:[%s3 + $0x20] sm:$0xff]
    %v3567 = vld [vmem:[%s3 + $0x28] sm:$0xff]
    %v3568 = vld [vmem:[%s3 + $0x60] sm:$0xff]
    %v3569 = vld [vmem:[%s3 + $0x68] sm:$0xff]
    %v3570 = vld [vmem:[%s3 + $0xa0] sm:$0xff]
    %v3571 = vld [vmem:[%s3 + $0xa8] sm:$0xff]
    %v3572 = vld [vmem:[%s3 + $0xe0] sm:$0xff]
    %v3573 = vld [vmem:[%s3 + $0xe8] sm:$0xff]
    %v3574 = vpack.c.bf16 %v3503, %v3502
    %v3575 = vpack.c.bf16 %v3505, %v3504
    %v3576 = vpack.c.bf16 %v3507, %v3506
    %v3577 = vpack.c.bf16 %v3509, %v3508
    %v3578 = vpack.c.bf16 %v3511, %v3510
    %v3579 = vpack.c.bf16 %v3513, %v3512
    %v3580 = vpack.c.bf16 %v3515, %v3514
    %v3581 = vpack.c.bf16 %v3517, %v3516
    %v3582 = vpack.c.bf16 %v3519, %v3518
    %v3583 = vpack.c.bf16 %v3521, %v3520
    %v3584 = vpack.c.bf16 %v3523, %v3522
    %v3585 = vpack.c.bf16 %v3525, %v3524
    %v3586 = vpack.c.bf16 %v3527, %v3526
    %v3587 = vpack.c.bf16 %v3529, %v3528
    %v3588 = vpack.c.bf16 %v3531, %v3530
    %v3589 = vpack.c.bf16 %v3533, %v3532
    %v3590 = vpack.c.bf16 %v3535, %v3534
    %v3591 = vpack.c.bf16 %v3537, %v3536
    %v3592 = vpack.c.bf16 %v3539, %v3538
    %v3593 = vpack.c.bf16 %v3541, %v3540
    %v3594 = vpack.c.bf16 %v3543, %v3542
    %v3595 = vpack.c.bf16 %v3545, %v3544
    %v3596 = vpack.c.bf16 %v3547, %v3546
    %v3597 = vpack.c.bf16 %v3549, %v3548
    %v3598 = vpack.c.bf16 %v3551, %v3550
    %v3599 = vpack.c.bf16 %v3553, %v3552
    %v3600 = vpack.c.bf16 %v3555, %v3554
    %v3601 = vpack.c.bf16 %v3557, %v3556
    %v3602 = vpack.c.bf16 %v3559, %v3558
    %v3603 = vpack.c.bf16 %v3561, %v3560
    %v3604 = vpack.c.bf16 %v3563, %v3562
    %v3605 = vpack.c.bf16 %v3565, %v3564
    %v3614 = vunpack.c.l.b16 %v3566
    %v3615 = vunpack.c.h.b16 %v3566
    %v3616 = vunpack.c.l.b16 %v3567
    %v3617 = vunpack.c.h.b16 %v3567
    %v3618 = vunpack.c.l.b16 %v3568
    %v3619 = vunpack.c.h.b16 %v3568
    %v3620 = vunpack.c.l.b16 %v3569
    %v3621 = vunpack.c.h.b16 %v3569
    %v3622 = vunpack.c.l.b16 %v3570
    %v3623 = vunpack.c.h.b16 %v3570
    %v3624 = vunpack.c.l.b16 %v3571
    %v3625 = vunpack.c.h.b16 %v3571
    %v3626 = vunpack.c.l.b16 %v3572
    %v3627 = vunpack.c.h.b16 %v3572
    %v3628 = vunpack.c.l.b16 %v3573
    %v3629 = vunpack.c.h.b16 %v3573
    %v3630 = vpack.c.b16 %v3618, %v3614
    %v3631 = vpack.c.b16 %v3619, %v3615
    %v3632 = vpack.c.b16 %v3620, %v3616
    %v3633 = vpack.c.b16 %v3621, %v3617
    %v3634 = vpack.c.b16 %v3626, %v3622
    %v3635 = vpack.c.b16 %v3627, %v3623
    %v3636 = vpack.c.b16 %v3628, %v3624
    %v3637 = vpack.c.b16 %v3629, %v3625
    %3646 = vmatprep.subr.bf16.mxu0 0
    %3647 = vmatpush1.bf16.msra.mxu0 %v3574
    %3648 = vmatprep.subr.bf16.mxu0 0
    %3649 = vmatpush1.bf16.msra.mxu0 %v3575
    %3650 = vmatprep.subr.bf16.mxu0 0
    %3651 = vmatpush1.bf16.msra.mxu0 %v3576
    %3652 = vmatprep.subr.bf16.mxu0 0
    %3653 = vmatpush1.bf16.msra.mxu0 %v3577
    %3654 = vmatprep.subr.bf16.mxu0 0
    %3655 = vmatpush1.bf16.msra.mxu0 %v3578
    %3656 = vmatprep.subr.bf16.mxu0 0
    %3657 = vmatpush1.bf16.msra.mxu0 %v3579
    %3658 = vmatprep.subr.bf16.mxu0 0
    %3659 = vmatpush1.bf16.msra.mxu0 %v3580
    %3660 = vmatprep.subr.bf16.mxu0 0
    %3661 = vmatpush1.bf16.msra.mxu0 %v3581
    %3662 = vmatprep.subr.bf16.mxu0 0
    %3663 = vmatpush1.bf16.msra.mxu0 %v3582
    %3664 = vmatprep.subr.bf16.mxu0 0
    %3665 = vmatpush1.bf16.msra.mxu0 %v3583
    %3666 = vmatprep.subr.bf16.mxu0 0
    %3667 = vmatpush1.bf16.msra.mxu0 %v3584
    %3668 = vmatprep.subr.bf16.mxu0 0
    %3669 = vmatpush1.bf16.msra.mxu0 %v3585
    %3670 = vmatprep.subr.bf16.mxu0 0
    %3671 = vmatpush1.bf16.msra.mxu0 %v3586
    %3672 = vmatprep.subr.bf16.mxu0 0
    %3673 = vmatpush1.bf16.msra.mxu0 %v3587
    %3674 = vmatprep.subr.bf16.mxu0 0
    %3675 = vmatpush1.bf16.msra.mxu0 %v3588
    %3676 = vmatprep.subr.bf16.mxu0 0
    %3677 = vmatpush1.bf16.msra.mxu0 %v3589
    %3678 = vmatprep.mubr.bf16.mxu0 %v3631
    %3679 = vmatmul.mubr.bf16.gmra.mrb[0].mxu0 %v3630
    %v3680 = vpop.f32.mrb[0].mxu0
    %v3681 = vadd.f32 0.0, %v3680
    %v3682 = vpop.f32.mrb[0].mxu0
    %v3683 = vpop.f32.mrb[0].mxu0
    %v3684 = vadd.f32 0.0, %v3683
    %v3685 = vpop.f32.mrb[0].mxu0
    %3686 = vmatprep.mubr.bf16.mxu0 %v3635
    %3687 = vmatmul.mubr.bf16.gmra.mrb[0].mxu0 %v3634
    %v3688 = vpop.f32.mrb[0].mxu0
    %v3689 = vadd.f32 0.0, %v3688
    %v3690 = vpop.f32.mrb[0].mxu0
    %v3691 = vpop.f32.mrb[0].mxu0
    %v3692 = vadd.f32 0.0, %v3691
    %v3693 = vpop.f32.mrb[0].mxu0
    %3694 = vdwg.mxu0
    %3695 = vmatprep.subr.bf16.mxu0 0
    %3696 = vmatpush1.bf16.msra.mxu0 %v3590
    %3697 = vmatprep.subr.bf16.mxu0 0
    %3698 = vmatpush1.bf16.msra.mxu0 %v3591
    %3699 = vmatprep.subr.bf16.mxu0 0
    %3700 = vmatpush1.bf16.msra.mxu0 %v3592
    %3701 = vmatprep.subr.bf16.mxu0 0
    %3702 = vmatpush1.bf16.msra.mxu0 %v3593
    %3703 = vmatprep.subr.bf16.mxu0 0
    %3704 = vmatpush1.bf16.msra.mxu0 %v3594
    %3705 = vmatprep.subr.bf16.mxu0 0
    %3706 = vmatpush1.bf16.msra.mxu0 %v3595
    %3707 = vmatprep.subr.bf16.mxu0 0
    %3708 = vmatpush1.bf16.msra.mxu0 %v3596
    %3709 = vmatprep.subr.bf16.mxu0 0
    %3710 = vmatpush1.bf16.msra.mxu0 %v3597
    %3711 = vmatprep.subr.bf16.mxu0 0
    %3712 = vmatpush1.bf16.msra.mxu0 %v3598
    %3713 = vmatprep.subr.bf16.mxu0 0
    %3714 = vmatpush1.bf16.msra.mxu0 %v3599
    %3715 = vmatprep.subr.bf16.mxu0 0
    %3716 = vmatpush1.bf16.msra.mxu0 %v3600
    %3717 = vmatprep.subr.bf16.mxu0 0
    %3718 = vmatpush1.bf16.msra.mxu0 %v3601
    %3719 = vmatprep.subr.bf16.mxu0 0
    %3720 = vmatpush1.bf16.msra.mxu0 %v3602
    %3721 = vmatprep.subr.bf16.mxu0 0
    %3722 = vmatpush1.bf16.msra.mxu0 %v3603
    %3723 = vmatprep.subr.bf16.mxu0 0
    %3724 = vmatpush1.bf16.msra.mxu0 %v3604
    %3725 = vmatprep.subr.bf16.mxu0 0
    %3726 = vmatpush1.bf16.msra.mxu0 %v3605
    %3727 = vmatprep.mubr.bf16.mxu0 %v3633
    %3728 = vmatmul.mubr.bf16.gmra.mrb[0].mxu0 %v3632
    %v3729 = vpop.f32.mrb[0].mxu0
    %v3730 = vadd.f32 %v3681, %v3729
    %v3731 = vpop.f32.mrb[0].mxu0
    %v3732 = vpop.f32.mrb[0].mxu0
    %v3733 = vadd.f32 %v3684, %v3732
    %v3734 = vpop.f32.mrb[0].mxu0
    %3735 = vmatprep.mubr.bf16.mxu0 %v3637
    %3736 = vmatmul.mubr.bf16.gmra.mrb[0].mxu0 %v3636
    %v3737 = vpop.f32.mrb[0].mxu0
    %v3738 = vadd.f32 %v3689, %v3737
    %v3739 = vpop.f32.mrb[0].mxu0
    %v3740 = vpop.f32.mrb[0].mxu0
    %v3741 = vadd.f32 %v3692, %v3740
    %v3742 = vpop.f32.mrb[0].mxu0
    %3743 = vdwg.mxu0
    %v3744 = vadd.f32 %v2495, %v3730
    %v3745 = vadd.f32 %v2498, %v3733
    %v3746 = vadd.f32 %v2503, %v3738
    %v3747 = vadd.f32 %v2506, %v3741
    %v3748 = vld [vmem:[%s1 + $0x300] sm:$0xf]
    %v3749 = vld [vmem:[%s1 + $0x304] sm:$0xf]
    %v3750 = vld [vmem:[%s1 + $0x308] sm:$0xf]
    %v3751 = vld [vmem:[%s1 + $0x30c] sm:$0xf]
    %v3752 = vld [vmem:[%s1 + $0x310] sm:$0xf]
    %v3753 = vld [vmem:[%s1 + $0x314] sm:$0xf]
    %v3754 = vld [vmem:[%s1 + $0x318] sm:$0xf]
    %v3755 = vld [vmem:[%s1 + $0x31c] sm:$0xf]
    %v3756 = vld [vmem:[%s1 + $0x320] sm:$0xf]
    %v3757 = vld [vmem:[%s1 + $0x324] sm:$0xf]
    %v3758 = vld [vmem:[%s1 + $0x328] sm:$0xf]
    %v3759 = vld [vmem:[%s1 + $0x32c] sm:$0xf]
    %v3760 = vld [vmem:[%s1 + $0x330] sm:$0xf]
    %v3761 = vld [vmem:[%s1 + $0x334] sm:$0xf]
    %v3762 = vld [vmem:[%s1 + $0x338] sm:$0xf]
    %v3763 = vld [vmem:[%s1 + $0x33c] sm:$0xf]
    %v3764 = vld [vmem:[%s1 + $0x340] sm:$0xf]
    %v3765 = vld [vmem:[%s1 + $0x344] sm:$0xf]
    %v3766 = vld [vmem:[%s1 + $0x348] sm:$0xf]
    %v3767 = vld [vmem:[%s1 + $0x34c] sm:$0xf]
    %v3768 = vld [vmem:[%s1 + $0x350] sm:$0xf]
    %v3769 = vld [vmem:[%s1 + $0x354] sm:$0xf]
    %v3770 = vld [vmem:[%s1 + $0x358] sm:$0xf]
    %v3771 = vld [vmem:[%s1 + $0x35c] sm:$0xf]
    %v3772 = vld [vmem:[%s1 + $0x360] sm:$0xf]
    %v3773 = vld [vmem:[%s1 + $0x364] sm:$0xf]
    %v3774 = vld [vmem:[%s1 + $0x368] sm:$0xf]
    %v3775 = vld [vmem:[%s1 + $0x36c] sm:$0xf]
    %v3776 = vld [vmem:[%s1 + $0x370] sm:$0xf]
    %v3777 = vld [vmem:[%s1 + $0x374] sm:$0xf]
    %v3778 = vld [vmem:[%s1 + $0x378] sm:$0xf]
    %v3779 = vld [vmem:[%s1 + $0x37c] sm:$0xf]
    %v3780 = vld [vmem:[%s1 + $0x380] sm:$0xf]
    %v3781 = vld [vmem:[%s1 + $0x384] sm:$0xf]
    %v3782 = vld [vmem:[%s1 + $0x388] sm:$0xf]
    %v3783 = vld [vmem:[%s1 + $0x38c] sm:$0xf]
    %v3784 = vld [vmem:[%s1 + $0x390] sm:$0xf]
    %v3785 = vld [vmem:[%s1 + $0x394] sm:$0xf]
    %v3786 = vld [vmem:[%s1 + $0x398] sm:$0xf]
    %v3787 = vld [vmem:[%s1 + $0x39c] sm:$0xf]
    %v3788 = vld [vmem:[%s1 + $0x3a0] sm:$0xf]
    %v3789 = vld [vmem:[%s1 + $0x3a4] sm:$0xf]
    %v3790 = vld [vmem:[%s1 + $0x3a8] sm:$0xf]
    %v3791 = vld [vmem:[%s1 + $0x3ac] sm:$0xf]
    %v3792 = vld [vmem:[%s1 + $0x3b0] sm:$0xf]
    %v3793 = vld [vmem:[%s1 + $0x3b4] sm:$0xf]
    %v3794 = vld [vmem:[%s1 + $0x3b8] sm:$0xf]
    %v3795 = vld [vmem:[%s1 + $0x3bc] sm:$0xf]
    %v3796 = vld [vmem:[%s1 + $0x3c0] sm:$0xf]
    %v3797 = vld [vmem:[%s1 + $0x3c4] sm:$0xf]
    %v3798 = vld [vmem:[%s1 + $0x3c8] sm:$0xf]
    %v3799 = vld [vmem:[%s1 + $0x3cc] sm:$0xf]
    %v3800 = vld [vmem:[%s1 + $0x3d0] sm:$0xf]
    %v3801 = vld [vmem:[%s1 + $0x3d4] sm:$0xf]
    %v3802 = vld [vmem:[%s1 + $0x3d8] sm:$0xf]
    %v3803 = vld [vmem:[%s1 + $0x3dc] sm:$0xf]
    %v3804 = vld [vmem:[%s1 + $0x3e0] sm:$0xf]
    %v3805 = vld [vmem:[%s1 + $0x3e4] sm:$0xf]
    %v3806 = vld [vmem:[%s1 + $0x3e8] sm:$0xf]
    %v3807 = vld [vmem:[%s1 + $0x3ec] sm:$0xf]
    %v3808 = vld [vmem:[%s1 + $0x3f0] sm:$0xf]
    %v3809 = vld [vmem:[%s1 + $0x3f4] sm:$0xf]
    %v3810 = vld [vmem:[%s1 + $0x3f8] sm:$0xf]
    %v3811 = vld [vmem:[%s1 + $0x3fc] sm:$0xf]
    %v3812 = vld [vmem:[%s2 + $0x600] sm:$0xff]
    %v3813 = vld [vmem:[%s2 + $0x608] sm:$0xff]
    %v3814 = vld [vmem:[%s2 + $0x610] sm:$0xff]
    %v3815 = vld [vmem:[%s2 + $0x618] sm:$0xff]
    %v3816 = vld [vmem:[%s2 + $0x620] sm:$0xff]
    %v3817 = vld [vmem:[%s2 + $0x628] sm:$0xff]
    %v3818 = vld [vmem:[%s2 + $0x630] sm:$0xff]
    %v3819 = vld [vmem:[%s2 + $0x638] sm:$0xff]
    %v3820 = vld [vmem:[%s2 + $0x640] sm:$0xff]
    %v3821 = vld [vmem:[%s2 + $0x648] sm:$0xff]
    %v3822 = vld [vmem:[%s2 + $0x650] sm:$0xff]
    %v3823 = vld [vmem:[%s2 + $0x658] sm:$0xff]
    %v3824 = vld [vmem:[%s2 + $0x660] sm:$0xff]
    %v3825 = vld [vmem:[%s2 + $0x668] sm:$0xff]
    %v3826 = vld [vmem:[%s2 + $0x670] sm:$0xff]
    %v3827 = vld [vmem:[%s2 + $0x678] sm:$0xff]
    %v3828 = vld [vmem:[%s2 + $0x680] sm:$0xff]
    %v3829 = vld [vmem:[%s2 + $0x688] sm:$0xff]
    %v3830 = vld [vmem:[%s2 + $0x690] sm:$0xff]
    %v3831 = vld [vmem:[%s2 + $0x698] sm:$0xff]
    %v3832 = vld [vmem:[%s2 + $0x6a0] sm:$0xff]
    %v3833 = vld [vmem:[%s2 + $0x6a8] sm:$0xff]
    %v3834 = vld [vmem:[%s2 + $0x6b0] sm:$0xff]
    %v3835 = vld [vmem:[%s2 + $0x6b8] sm:$0xff]
    %v3836 = vld [vmem:[%s2 + $0x6c0] sm:$0xff]
    %v3837 = vld [vmem:[%s2 + $0x6c8] sm:$0xff]
    %v3838 = vld [vmem:[%s2 + $0x6d0] sm:$0xff]
    %v3839 = vld [vmem:[%s2 + $0x6d8] sm:$0xff]
    %v3840 = vld [vmem:[%s2 + $0x6e0] sm:$0xff]
    %v3841 = vld [vmem:[%s2 + $0x6e8] sm:$0xff]
    %v3842 = vld [vmem:[%s2 + $0x6f0] sm:$0xff]
    %v3843 = vld [vmem:[%s2 + $0x6f8] sm:$0xff]
    %v3844 = vld [vmem:[%s2 + $0x700] sm:$0xff]
    %v3845 = vld [vmem:[%s2 + $0x708] sm:$0xff]
    %v3846 = vld [vmem:[%s2 + $0x710] sm:$0xff]
    %v3847 = vld [vmem:[%s2 + $0x718] sm:$0xff]
    %v3848 = vld [vmem:[%s2 + $0x720] sm:$0xff]
    %v3849 = vld [vmem:[%s2 + $0x728] sm:$0xff]
    %v3850 = vld [vmem:[%s2 + $0x730] sm:$0xff]
    %v3851 = vld [vmem:[%s2 + $0x738] sm:$0xff]
    %v3852 = vld [vmem:[%s2 + $0x740] sm:$0xff]
    %v3853 = vld [vmem:[%s2 + $0x748] sm:$0xff]
    %v3854 = vld [vmem:[%s2 + $0x750] sm:$0xff]
    %v3855 = vld [vmem:[%s2 + $0x758] sm:$0xff]
    %v3856 = vld [vmem:[%s2 + $0x760] sm:$0xff]
    %v3857 = vld [vmem:[%s2 + $0x768] sm:$0xff]
    %v3858 = vld [vmem:[%s2 + $0x770] sm:$0xff]
    %v3859 = vld [vmem:[%s2 + $0x778] sm:$0xff]
    %v3860 = vld [vmem:[%s2 + $0x780] sm:$0xff]
    %v3861 = vld [vmem:[%s2 + $0x788] sm:$0xff]
    %v3862 = vld [vmem:[%s2 + $0x790] sm:$0xff]
    %v3863 = vld [vmem:[%s2 + $0x798] sm:$0xff]
    %v3864 = vld [vmem:[%s2 + $0x7a0] sm:$0xff]
    %v3865 = vld [vmem:[%s2 + $0x7a8] sm:$0xff]
    %v3866 = vld [vmem:[%s2 + $0x7b0] sm:$0xff]
    %v3867 = vld [vmem:[%s2 + $0x7b8] sm:$0xff]
    %v3868 = vld [vmem:[%s2 + $0x7c0] sm:$0xff]
    %v3869 = vld [vmem:[%s2 + $0x7c8] sm:$0xff]
    %v3870 = vld [vmem:[%s2 + $0x7d0] sm:$0xff]
    %v3871 = vld [vmem:[%s2 + $0x7d8] sm:$0xff]
    %v3872 = vld [vmem:[%s2 + $0x7e0] sm:$0xff]
    %v3873 = vld [vmem:[%s2 + $0x7e8] sm:$0xff]
    %v3874 = vld [vmem:[%s2 + $0x7f0] sm:$0xff]
    %v3875 = vld [vmem:[%s2 + $0x7f8] sm:$0xff]
    %3877 = vset.pattern.permute.xlu0 0
    %3878 = vperm.xlu0 %3877, %v3812
    %v3879 = vpop.permute.xlu0 %3878
    %3882 = vset.pattern.permute.xlu0 0
    %3883 = vperm.xlu0 %3882, %v3813
    %v3884 = vpop.permute.xlu0 %3883
    %3887 = vset.pattern.permute.xlu0 0
    %3888 = vperm.xlu0 %3887, %v3814
    %v3889 = vpop.permute.xlu0 %3888
    %3892 = vset.pattern.permute.xlu0 0
    %3893 = vperm.xlu0 %3892, %v3815
    %v3894 = vpop.permute.xlu0 %3893
    %3897 = vset.pattern.permute.xlu0 0
    %3898 = vperm.xlu0 %3897, %v3816
    %v3899 = vpop.permute.xlu0 %3898
    %3902 = vset.pattern.permute.xlu0 0
    %3903 = vperm.xlu0 %3902, %v3817
    %v3904 = vpop.permute.xlu0 %3903
    %3907 = vset.pattern.permute.xlu0 0
    %3908 = vperm.xlu0 %3907, %v3818
    %v3909 = vpop.permute.xlu0 %3908
    %3912 = vset.pattern.permute.xlu0 0
    %3913 = vperm.xlu0 %3912, %v3819
    %v3914 = vpop.permute.xlu0 %3913
    %3917 = vset.pattern.permute.xlu0 0
    %3918 = vperm.xlu0 %3917, %v3820
    %v3919 = vpop.permute.xlu0 %3918
    %3922 = vset.pattern.permute.xlu0 0
    %3923 = vperm.xlu0 %3922, %v3821
    %v3924 = vpop.permute.xlu0 %3923
    %3927 = vset.pattern.permute.xlu0 0
    %3928 = vperm.xlu0 %3927, %v3822
    %v3929 = vpop.permute.xlu0 %3928
    %3932 = vset.pattern.permute.xlu0 0
    %3933 = vperm.xlu0 %3932, %v3823
    %v3934 = vpop.permute.xlu0 %3933
    %3937 = vset.pattern.permute.xlu0 0
    %3938 = vperm.xlu0 %3937, %v3824
    %v3939 = vpop.permute.xlu0 %3938
    %3942 = vset.pattern.permute.xlu0 0
    %3943 = vperm.xlu0 %3942, %v3825
    %v3944 = vpop.permute.xlu0 %3943
    %3947 = vset.pattern.permute.xlu0 0
    %3948 = vperm.xlu0 %3947, %v3826
    %v3949 = vpop.permute.xlu0 %3948
    %3952 = vset.pattern.permute.xlu0 0
    %3953 = vperm.xlu0 %3952, %v3827
    %v3954 = vpop.permute.xlu0 %3953
    %3957 = vset.pattern.permute.xlu0 0
    %3958 = vperm.xlu0 %3957, %v3828
    %v3959 = vpop.permute.xlu0 %3958
    %3962 = vset.pattern.permute.xlu0 0
    %3963 = vperm.xlu0 %3962, %v3829
    %v3964 = vpop.permute.xlu0 %3963
    %3967 = vset.pattern.permute.xlu0 0
    %3968 = vperm.xlu0 %3967, %v3830
    %v3969 = vpop.permute.xlu0 %3968
    %3972 = vset.pattern.permute.xlu0 0
    %3973 = vperm.xlu0 %3972, %v3831
    %v3974 = vpop.permute.xlu0 %3973
    %3977 = vset.pattern.permute.xlu0 0
    %3978 = vperm.xlu0 %3977, %v3832
    %v3979 = vpop.permute.xlu0 %3978
    %3982 = vset.pattern.permute.xlu0 0
    %3983 = vperm.xlu0 %3982, %v3833
    %v3984 = vpop.permute.xlu0 %3983
    %3987 = vset.pattern.permute.xlu0 0
    %3988 = vperm.xlu0 %3987, %v3834
    %v3989 = vpop.permute.xlu0 %3988
    %3992 = vset.pattern.permute.xlu0 0
    %3993 = vperm.xlu0 %3992, %v3835
    %v3994 = vpop.permute.xlu0 %3993
    %3997 = vset.pattern.permute.xlu0 0
    %3998 = vperm.xlu0 %3997, %v3836
    %v3999 = vpop.permute.xlu0 %3998
    %4002 = vset.pattern.permute.xlu0 0
    %4003 = vperm.xlu0 %4002, %v3837
    %v4004 = vpop.permute.xlu0 %4003
    %4007 = vset.pattern.permute.xlu0 0
    %4008 = vperm.xlu0 %4007, %v3838
    %v4009 = vpop.permute.xlu0 %4008
    %4012 = vset.pattern.permute.xlu0 0
    %4013 = vperm.xlu0 %4012, %v3839
    %v4014 = vpop.permute.xlu0 %4013
    %4017 = vset.pattern.permute.xlu0 0
    %4018 = vperm.xlu0 %4017, %v3840
    %v4019 = vpop.permute.xlu0 %4018
    %4022 = vset.pattern.permute.xlu0 0
    %4023 = vperm.xlu0 %4022, %v3841
    %v4024 = vpop.permute.xlu0 %4023
    %4027 = vset.pattern.permute.xlu0 0
    %4028 = vperm.xlu0 %4027, %v3842
    %v4029 = vpop.permute.xlu0 %4028
    %4032 = vset.pattern.permute.xlu0 0
    %4033 = vperm.xlu0 %4032, %v3843
    %v4034 = vpop.permute.xlu0 %4033
    %4037 = vset.pattern.permute.xlu0 0
    %4038 = vperm.xlu0 %4037, %v3844
    %v4039 = vpop.permute.xlu0 %4038
    %4042 = vset.pattern.permute.xlu0 0
    %4043 = vperm.xlu0 %4042, %v3845
    %v4044 = vpop.permute.xlu0 %4043
    %4047 = vset.pattern.permute.xlu0 0
    %4048 = vperm.xlu0 %4047, %v3846
    %v4049 = vpop.permute.xlu0 %4048
    %4052 = vset.pattern.permute.xlu0 0
    %4053 = vperm.xlu0 %4052, %v3847
    %v4054 = vpop.permute.xlu0 %4053
    %4057 = vset.pattern.permute.xlu0 0
    %4058 = vperm.xlu0 %4057, %v3848
    %v4059 = vpop.permute.xlu0 %4058
    %4062 = vset.pattern.permute.xlu0 0
    %4063 = vperm.xlu0 %4062, %v3849
    %v4064 = vpop.permute.xlu0 %4063
    %4067 = vset.pattern.permute.xlu0 0
    %4068 = vperm.xlu0 %4067, %v3850
    %v4069 = vpop.permute.xlu0 %4068
    %4072 = vset.pattern.permute.xlu0 0
    %4073 = vperm.xlu0 %4072, %v3851
    %v4074 = vpop.permute.xlu0 %4073
    %4077 = vset.pattern.permute.xlu0 0
    %4078 = vperm.xlu0 %4077, %v3852
    %v4079 = vpop.permute.xlu0 %4078
    %4082 = vset.pattern.permute.xlu0 0
    %4083 = vperm.xlu0 %4082, %v3853
    %v4084 = vpop.permute.xlu0 %4083
    %4087 = vset.pattern.permute.xlu0 0
    %4088 = vperm.xlu0 %4087, %v3854
    %v4089 = vpop.permute.xlu0 %4088
    %4092 = vset.pattern.permute.xlu0 0
    %4093 = vperm.xlu0 %4092, %v3855
    %v4094 = vpop.permute.xlu0 %4093
    %4097 = vset.pattern.permute.xlu0 0
    %4098 = vperm.xlu0 %4097, %v3856
    %v4099 = vpop.permute.xlu0 %4098
    %4102 = vset.pattern.permute.xlu0 0
    %4103 = vperm.xlu0 %4102, %v3857
    %v4104 = vpop.permute.xlu0 %4103
    %4107 = vset.pattern.permute.xlu0 0
    %4108 = vperm.xlu0 %4107, %v3858
    %v4109 = vpop.permute.xlu0 %4108
    %4112 = vset.pattern.permute.xlu0 0
    %4113 = vperm.xlu0 %4112, %v3859
    %v4114 = vpop.permute.xlu0 %4113
    %4117 = vset.pattern.permute.xlu0 0
    %4118 = vperm.xlu0 %4117, %v3860
    %v4119 = vpop.permute.xlu0 %4118
    %4122 = vset.pattern.permute.xlu0 0
    %4123 = vperm.xlu0 %4122, %v3861
    %v4124 = vpop.permute.xlu0 %4123
    %4127 = vset.pattern.permute.xlu0 0
    %4128 = vperm.xlu0 %4127, %v3862
    %v4129 = vpop.permute.xlu0 %4128
    %4132 = vset.pattern.permute.xlu0 0
    %4133 = vperm.xlu0 %4132, %v3863
    %v4134 = vpop.permute.xlu0 %4133
    %4137 = vset.pattern.permute.xlu0 0
    %4138 = vperm.xlu0 %4137, %v3864
    %v4139 = vpop.permute.xlu0 %4138
    %4142 = vset.pattern.permute.xlu0 0
    %4143 = vperm.xlu0 %4142, %v3865
    %v4144 = vpop.permute.xlu0 %4143
    %4147 = vset.pattern.permute.xlu0 0
    %4148 = vperm.xlu0 %4147, %v3866
    %v4149 = vpop.permute.xlu0 %4148
    %4152 = vset.pattern.permute.xlu0 0
    %4153 = vperm.xlu0 %4152, %v3867
    %v4154 = vpop.permute.xlu0 %4153
    %4157 = vset.pattern.permute.xlu0 0
    %4158 = vperm.xlu0 %4157, %v3868
    %v4159 = vpop.permute.xlu0 %4158
    %4162 = vset.pattern.permute.xlu0 0
    %4163 = vperm.xlu0 %4162, %v3869
    %v4164 = vpop.permute.xlu0 %4163
    %4167 = vset.pattern.permute.xlu0 0
    %4168 = vperm.xlu0 %4167, %v3870
    %v4169 = vpop.permute.xlu0 %4168
    %4172 = vset.pattern.permute.xlu0 0
    %4173 = vperm.xlu0 %4172, %v3871
    %v4174 = vpop.permute.xlu0 %4173
    %4177 = vset.pattern.permute.xlu0 0
    %4178 = vperm.xlu0 %4177, %v3872
    %v4179 = vpop.permute.xlu0 %4178
    %4182 = vset.pattern.permute.xlu0 0
    %4183 = vperm.xlu0 %4182, %v3873
    %v4184 = vpop.permute.xlu0 %4183
    %4187 = vset.pattern.permute.xlu0 0
    %4188 = vperm.xlu0 %4187, %v3874
    %v4189 = vpop.permute.xlu0 %4188
    %4192 = vset.pattern.permute.xlu0 0
    %4193 = vperm.xlu0 %4192, %v3875
    %v4194 = vpop.permute.xlu0 %4193
    %v4260 = vunpack.c.l.b16 %v3748
    %v4261 = vunpack.c.l.b16 %v3749
    %v4262 = vunpack.c.l.b16 %v3750
    %v4263 = vunpack.c.l.b16 %v3751
    %v4264 = vunpack.c.l.b16 %v3752
    %v4265 = vunpack.c.l.b16 %v3753
    %v4266 = vunpack.c.l.b16 %v3754
    %v4267 = vunpack.c.l.b16 %v3755
    %v4268 = vunpack.c.l.b16 %v3756
    %v4269 = vunpack.c.l.b16 %v3757
    %v4270 = vunpack.c.l.b16 %v3758
    %v4271 = vunpack.c.l.b16 %v3759
    %v4272 = vunpack.c.l.b16 %v3760
    %v4273 = vunpack.c.l.b16 %v3761
    %v4274 = vunpack.c.l.b16 %v3762
    %v4275 = vunpack.c.l.b16 %v3763
    %v4276 = vunpack.c.l.b16 %v3764
    %v4277 = vunpack.c.l.b16 %v3765
    %v4278 = vunpack.c.l.b16 %v3766
    %v4279 = vunpack.c.l.b16 %v3767
    %v4280 = vunpack.c.l.b16 %v3768
    %v4281 = vunpack.c.l.b16 %v3769
    %v4282 = vunpack.c.l.b16 %v3770
    %v4283 = vunpack.c.l.b16 %v3771
    %v4284 = vunpack.c.l.b16 %v3772
    %v4285 = vunpack.c.l.b16 %v3773
    %v4286 = vunpack.c.l.b16 %v3774
    %v4287 = vunpack.c.l.b16 %v3775
    %v4288 = vunpack.c.l.b16 %v3776
    %v4289 = vunpack.c.l.b16 %v3777
    %v4290 = vunpack.c.l.b16 %v3778
    %v4291 = vunpack.c.l.b16 %v3779
    %v4292 = vunpack.c.l.b16 %v3780
    %v4293 = vunpack.c.l.b16 %v3781
    %v4294 = vunpack.c.l.b16 %v3782
    %v4295 = vunpack.c.l.b16 %v3783
    %v4296 = vunpack.c.l.b16 %v3784
    %v4297 = vunpack.c.l.b16 %v3785
    %v4298 = vunpack.c.l.b16 %v3786
    %v4299 = vunpack.c.l.b16 %v3787
    %v4300 = vunpack.c.l.b16 %v3788
    %v4301 = vunpack.c.l.b16 %v3789
    %v4302 = vunpack.c.l.b16 %v3790
    %v4303 = vunpack.c.l.b16 %v3791
    %v4304 = vunpack.c.l.b16 %v3792
    %v4305 = vunpack.c.l.b16 %v3793
    %v4306 = vunpack.c.l.b16 %v3794
    %v4307 = vunpack.c.l.b16 %v3795
    %v4308 = vunpack.c.l.b16 %v3796
    %v4309 = vunpack.c.l.b16 %v3797
    %v4310 = vunpack.c.l.b16 %v3798
    %v4311 = vunpack.c.l.b16 %v3799
    %v4312 = vunpack.c.l.b16 %v3800
    %v4313 = vunpack.c.l.b16 %v3801
    %v4314 = vunpack.c.l.b16 %v3802
    %v4315 = vunpack.c.l.b16 %v3803
    %v4316 = vunpack.c.l.b16 %v3804
    %v4317 = vunpack.c.l.b16 %v3805
    %v4318 = vunpack.c.l.b16 %v3806
    %v4319 = vunpack.c.l.b16 %v3807
    %v4320 = vunpack.c.l.b16 %v3808
    %v4321 = vunpack.c.l.b16 %v3809
    %v4322 = vunpack.c.l.b16 %v3810
    %v4323 = vunpack.c.l.b16 %v3811
    %v4324 = vpack.c.b16 %v4261, %v4260
    %v4325 = vpack.c.b16 %v4263, %v4262
    %v4326 = vpack.c.b16 %v4265, %v4264
    %v4327 = vpack.c.b16 %v4267, %v4266
    %v4328 = vpack.c.b16 %v4269, %v4268
    %v4329 = vpack.c.b16 %v4271, %v4270
    %v4330 = vpack.c.b16 %v4273, %v4272
    %v4331 = vpack.c.b16 %v4275, %v4274
    %v4332 = vpack.c.b16 %v4277, %v4276
    %v4333 = vpack.c.b16 %v4279, %v4278
    %v4334 = vpack.c.b16 %v4281, %v4280
    %v4335 = vpack.c.b16 %v4283, %v4282
    %v4336 = vpack.c.b16 %v4285, %v4284
    %v4337 = vpack.c.b16 %v4287, %v4286
    %v4338 = vpack.c.b16 %v4289, %v4288
    %v4339 = vpack.c.b16 %v4291, %v4290
    %v4340 = vpack.c.b16 %v4293, %v4292
    %v4341 = vpack.c.b16 %v4295, %v4294
    %v4342 = vpack.c.b16 %v4297, %v4296
    %v4343 = vpack.c.b16 %v4299, %v4298
    %v4344 = vpack.c.b16 %v4301, %v4300
    %v4345 = vpack.c.b16 %v4303, %v4302
    %v4346 = vpack.c.b16 %v4305, %v4304
    %v4347 = vpack.c.b16 %v4307, %v4306
    %v4348 = vpack.c.b16 %v4309, %v4308
    %v4349 = vpack.c.b16 %v4311, %v4310
    %v4350 = vpack.c.b16 %v4313, %v4312
    %v4351 = vpack.c.b16 %v4315, %v4314
    %v4352 = vpack.c.b16 %v4317, %v4316
    %v4353 = vpack.c.b16 %v4319, %v4318
    %v4354 = vpack.c.b16 %v4321, %v4320
    %v4355 = vpack.c.b16 %v4323, %v4322
    %v4357 = vsel %vm646, %v4324, 0
    %v4360 = vsel %vm646, %v4325, 0
    %v4363 = vsel %vm646, %v4326, 0
    %v4366 = vsel %vm646, %v4327, 0
    %v4369 = vsel %vm646, %v4328, 0
    %v4372 = vsel %vm646, %v4329, 0
    %v4375 = vsel %vm646, %v4330, 0
    %v4378 = vsel %vm646, %v4331, 0
    %v4381 = vsel %vm646, %v4332, 0
    %v4384 = vsel %vm646, %v4333, 0
    %v4387 = vsel %vm646, %v4334, 0
    %v4390 = vsel %vm646, %v4335, 0
    %v4393 = vsel %vm646, %v4336, 0
    %v4396 = vsel %vm646, %v4337, 0
    %v4399 = vsel %vm646, %v4338, 0
    %v4402 = vsel %vm646, %v4339, 0
    %v4405 = vsel %vm646, %v4340, 0
    %v4408 = vsel %vm646, %v4341, 0
    %v4411 = vsel %vm646, %v4342, 0
    %v4414 = vsel %vm646, %v4343, 0
    %v4417 = vsel %vm646, %v4344, 0
    %v4420 = vsel %vm646, %v4345, 0
    %v4423 = vsel %vm646, %v4346, 0
    %v4426 = vsel %vm646, %v4347, 0
    %v4429 = vsel %vm646, %v4348, 0
    %v4432 = vsel %vm646, %v4349, 0
    %v4435 = vsel %vm646, %v4350, 0
    %v4438 = vsel %vm646, %v4351, 0
    %v4441 = vsel %vm646, %v4352, 0
    %v4444 = vsel %vm646, %v4353, 0
    %v4447 = vsel %vm646, %v4354, 0
    %v4450 = vsel %vm646, %v4355, 0
    %4452 = vmatprep.subr.bf16.mxu0 0
    %4453 = vmatpush1.bf16.msra.mxu0 %v642
    %4454 = vmatprep.subr.bf16.mxu0 0
    %4455 = vmatpush1.bf16.msra.mxu0 %v643
    %4456 = vmatprep.subr.bf16.mxu0 0
    %4457 = vmatpush1.bf16.msra.mxu0 0
    %4458 = vmatprep.subr.bf16.mxu0 0
    %4459 = vmatpush1.bf16.msra.mxu0 0
    %4460 = vmatprep.subr.bf16.mxu0 0
    %4461 = vmatpush1.bf16.msra.mxu0 0
    %4462 = vmatprep.subr.bf16.mxu0 0
    %4463 = vmatpush1.bf16.msra.mxu0 0
    %4464 = vmatprep.subr.bf16.mxu0 0
    %4465 = vmatpush1.bf16.msra.mxu0 0
    %4466 = vmatprep.subr.bf16.mxu0 0
    %4467 = vmatpush1.bf16.msra.mxu0 0
    %4468 = vmatprep.subr.bf16.mxu0 0
    %4469 = vmatpush1.bf16.msra.mxu0 0
    %4470 = vmatprep.subr.bf16.mxu0 0
    %4471 = vmatpush1.bf16.msra.mxu0 0
    %4472 = vmatprep.subr.bf16.mxu0 0
    %4473 = vmatpush1.bf16.msra.mxu0 0
    %4474 = vmatprep.subr.bf16.mxu0 0
    %4475 = vmatpush1.bf16.msra.mxu0 0
    %4476 = vmatprep.subr.bf16.mxu0 0
    %4477 = vmatpush1.bf16.msra.mxu0 0
    %4478 = vmatprep.subr.bf16.mxu0 0
    %4479 = vmatpush1.bf16.msra.mxu0 0
    %4480 = vmatprep.subr.bf16.mxu0 0
    %4481 = vmatpush1.bf16.msra.mxu0 0
    %4482 = vmatprep.subr.bf16.mxu0 0
    %4483 = vmatpush1.bf16.msra.mxu0 0
    %4484 = vmatprep.mubr.bf16.mxu0 0
    %4485 = vmatmul.mubr.bf16.gmra.mrb[0].mxu0 %v4357
    %v4486 = vpop.f32.mrb[0].mxu0
    %v4487 = vadd.f32 %v3879, %v4486
    %v4488 = vpop.f32.mrb[0].mxu0
    %v4489 = vpop.f32.mrb[0].mxu0
    %v4490 = vadd.f32 %v3884, %v4489
    %v4491 = vpop.f32.mrb[0].mxu0
    %4492 = vmatprep.mubr.bf16.mxu0 0
    %4493 = vmatmul.mubr.bf16.gmra.mrb[0].mxu0 %v4360
    %v4494 = vpop.f32.mrb[0].mxu0
    %v4495 = vadd.f32 %v3889, %v4494
    %v4496 = vpop.f32.mrb[0].mxu0
    %v4497 = vpop.f32.mrb[0].mxu0
    %v4498 = vadd.f32 %v3894, %v4497
    %v4499 = vpop.f32.mrb[0].mxu0
    %4500 = vmatprep.mubr.bf16.mxu0 0
    %4501 = vmatmul.mubr.bf16.gmra.mrb[0].mxu0 %v4363
    %v4502 = vpop.f32.mrb[0].mxu0
    %v4503 = vadd.f32 %v3899, %v4502
    %v4504 = vpop.f32.mrb[0].mxu0
    %v4505 = vpop.f32.mrb[0].mxu0
    %v4506 = vadd.f32 %v3904, %v4505
    %v4507 = vpop.f32.mrb[0].mxu0
    %4508 = vmatprep.mubr.bf16.mxu0 0
    %4509 = vmatmul.mubr.bf16.gmra.mrb[0].mxu0 %v4366
    %v4510 = vpop.f32.mrb[0].mxu0
    %v4511 = vadd.f32 %v3909, %v4510
    %v4512 = vpop.f32.mrb[0].mxu0
    %v4513 = vpop.f32.mrb[0].mxu0
    %v4514 = vadd.f32 %v3914, %v4513
    %v4515 = vpop.f32.mrb[0].mxu0
    %4516 = vmatprep.mubr.bf16.mxu0 0
    %4517 = vmatmul.mubr.bf16.gmra.mrb[0].mxu0 %v4369
    %v4518 = vpop.f32.mrb[0].mxu0
    %v4519 = vadd.f32 %v3919, %v4518
    %v4520 = vpop.f32.mrb[0].mxu0
    %v4521 = vpop.f32.mrb[0].mxu0
    %v4522 = vadd.f32 %v3924, %v4521
    %v4523 = vpop.f32.mrb[0].mxu0
    %4524 = vmatprep.mubr.bf16.mxu0 0
    %4525 = vmatmul.mubr.bf16.gmra.mrb[0].mxu0 %v4372
    %v4526 = vpop.f32.mrb[0].mxu0
    %v4527 = vadd.f32 %v3929, %v4526
    %v4528 = vpop.f32.mrb[0].mxu0
    %v4529 = vpop.f32.mrb[0].mxu0
    %v4530 = vadd.f32 %v3934, %v4529
    %v4531 = vpop.f32.mrb[0].mxu0
    %4532 = vmatprep.mubr.bf16.mxu0 0
    %4533 = vmatmul.mubr.bf16.gmra.mrb[0].mxu0 %v4375
    %v4534 = vpop.f32.mrb[0].mxu0
    %v4535 = vadd.f32 %v3939, %v4534
    %v4536 = vpop.f32.mrb[0].mxu0
    %v4537 = vpop.f32.mrb[0].mxu0
    %v4538 = vadd.f32 %v3944, %v4537
    %v4539 = vpop.f32.mrb[0].mxu0
    %4540 = vmatprep.mubr.bf16.mxu0 0
    %4541 = vmatmul.mubr.bf16.gmra.mrb[0].mxu0 %v4378
    %v4542 = vpop.f32.mrb[0].mxu0
    %v4543 = vadd.f32 %v3949, %v4542
    %v4544 = vpop.f32.mrb[0].mxu0
    %v4545 = vpop.f32.mrb[0].mxu0
    %v4546 = vadd.f32 %v3954, %v4545
    %v4547 = vpop.f32.mrb[0].mxu0
    %4548 = vmatprep.mubr.bf16.mxu0 0
    %4549 = vmatmul.mubr.bf16.gmra.mrb[0].mxu0 %v4381
    %v4550 = vpop.f32.mrb[0].mxu0
    %v4551 = vadd.f32 %v3959, %v4550
    %v4552 = vpop.f32.mrb[0].mxu0
    %v4553 = vpop.f32.mrb[0].mxu0
    %v4554 = vadd.f32 %v3964, %v4553
    %v4555 = vpop.f32.mrb[0].mxu0
    %4556 = vmatprep.mubr.bf16.mxu0 0
    %4557 = vmatmul.mubr.bf16.gmra.mrb[0].mxu0 %v4384
    %v4558 = vpop.f32.mrb[0].mxu0
    %v4559 = vadd.f32 %v3969, %v4558
    %v4560 = vpop.f32.mrb[0].mxu0
    %v4561 = vpop.f32.mrb[0].mxu0
    %v4562 = vadd.f32 %v3974, %v4561
    %v4563 = vpop.f32.mrb[0].mxu0
    %4564 = vmatprep.mubr.bf16.mxu0 0
    %4565 = vmatmul.mubr.bf16.gmra.mrb[0].mxu0 %v4387
    %v4566 = vpop.f32.mrb[0].mxu0
    %v4567 = vadd.f32 %v3979, %v4566
    %v4568 = vpop.f32.mrb[0].mxu0
    %v4569 = vpop.f32.mrb[0].mxu0
    %v4570 = vadd.f32 %v3984, %v4569
    %v4571 = vpop.f32.mrb[0].mxu0
    %4572 = vmatprep.mubr.bf16.mxu0 0
    %4573 = vmatmul.mubr.bf16.gmra.mrb[0].mxu0 %v4390
    %v4574 = vpop.f32.mrb[0].mxu0
    %v4575 = vadd.f32 %v3989, %v4574
    %v4576 = vpop.f32.mrb[0].mxu0
    %v4577 = vpop.f32.mrb[0].mxu0
    %v4578 = vadd.f32 %v3994, %v4577
    %v4579 = vpop.f32.mrb[0].mxu0
    %4580 = vmatprep.mubr.bf16.mxu0 0
    %4581 = vmatmul.mubr.bf16.gmra.mrb[0].mxu0 %v4393
    %v4582 = vpop.f32.mrb[0].mxu0
    %v4583 = vadd.f32 %v3999, %v4582
    %v4584 = vpop.f32.mrb[0].mxu0
    %v4585 = vpop.f32.mrb[0].mxu0
    %v4586 = vadd.f32 %v4004, %v4585
    %v4587 = vpop.f32.mrb[0].mxu0
    %4588 = vmatprep.mubr.bf16.mxu0 0
    %4589 = vmatmul.mubr.bf16.gmra.mrb[0].mxu0 %v4396
    %v4590 = vpop.f32.mrb[0].mxu0
    %v4591 = vadd.f32 %v4009, %v4590
    %v4592 = vpop.f32.mrb[0].mxu0
    %v4593 = vpop.f32.mrb[0].mxu0
    %v4594 = vadd.f32 %v4014, %v4593
    %v4595 = vpop.f32.mrb[0].mxu0
    %4596 = vmatprep.mubr.bf16.mxu0 0
    %4597 = vmatmul.mubr.bf16.gmra.mrb[0].mxu0 %v4399
    %v4598 = vpop.f32.mrb[0].mxu0
    %v4599 = vadd.f32 %v4019, %v4598
    %v4600 = vpop.f32.mrb[0].mxu0
    %v4601 = vpop.f32.mrb[0].mxu0
    %v4602 = vadd.f32 %v4024, %v4601
    %v4603 = vpop.f32.mrb[0].mxu0
    %4604 = vmatprep.mubr.bf16.mxu0 0
    %4605 = vmatmul.mubr.bf16.gmra.mrb[0].mxu0 %v4402
    %v4606 = vpop.f32.mrb[0].mxu0
    %v4607 = vadd.f32 %v4029, %v4606
    %v4608 = vpop.f32.mrb[0].mxu0
    %v4609 = vpop.f32.mrb[0].mxu0
    %v4610 = vadd.f32 %v4034, %v4609
    %v4611 = vpop.f32.mrb[0].mxu0
    %4612 = vmatprep.mubr.bf16.mxu0 0
    %4613 = vmatmul.mubr.bf16.gmra.mrb[0].mxu0 %v4405
    %v4614 = vpop.f32.mrb[0].mxu0
    %v4615 = vadd.f32 %v4039, %v4614
    %v4616 = vpop.f32.mrb[0].mxu0
    %v4617 = vpop.f32.mrb[0].mxu0
    %v4618 = vadd.f32 %v4044, %v4617
    %v4619 = vpop.f32.mrb[0].mxu0
    %4620 = vmatprep.mubr.bf16.mxu0 0
    %4621 = vmatmul.mubr.bf16.gmra.mrb[0].mxu0 %v4408
    %v4622 = vpop.f32.mrb[0].mxu0
    %v4623 = vadd.f32 %v4049, %v4622
    %v4624 = vpop.f32.mrb[0].mxu0
    %v4625 = vpop.f32.mrb[0].mxu0
    %v4626 = vadd.f32 %v4054, %v4625
    %v4627 = vpop.f32.mrb[0].mxu0
    %4628 = vmatprep.mubr.bf16.mxu0 0
    %4629 = vmatmul.mubr.bf16.gmra.mrb[0].mxu0 %v4411
    %v4630 = vpop.f32.mrb[0].mxu0
    %v4631 = vadd.f32 %v4059, %v4630
    %v4632 = vpop.f32.mrb[0].mxu0
    %v4633 = vpop.f32.mrb[0].mxu0
    %v4634 = vadd.f32 %v4064, %v4633
    %v4635 = vpop.f32.mrb[0].mxu0
    %4636 = vmatprep.mubr.bf16.mxu0 0
    %4637 = vmatmul.mubr.bf16.gmra.mrb[0].mxu0 %v4414
    %v4638 = vpop.f32.mrb[0].mxu0
    %v4639 = vadd.f32 %v4069, %v4638
    %v4640 = vpop.f32.mrb[0].mxu0
    %v4641 = vpop.f32.mrb[0].mxu0
    %v4642 = vadd.f32 %v4074, %v4641
    %v4643 = vpop.f32.mrb[0].mxu0
    %4644 = vmatprep.mubr.bf16.mxu0 0
    %4645 = vmatmul.mubr.bf16.gmra.mrb[0].mxu0 %v4417
    %v4646 = vpop.f32.mrb[0].mxu0
    %v4647 = vadd.f32 %v4079, %v4646
    %v4648 = vpop.f32.mrb[0].mxu0
    %v4649 = vpop.f32.mrb[0].mxu0
    %v4650 = vadd.f32 %v4084, %v4649
    %v4651 = vpop.f32.mrb[0].mxu0
    %4652 = vmatprep.mubr.bf16.mxu0 0
    %4653 = vmatmul.mubr.bf16.gmra.mrb[0].mxu0 %v4420
    %v4654 = vpop.f32.mrb[0].mxu0
    %v4655 = vadd.f32 %v4089, %v4654
    %v4656 = vpop.f32.mrb[0].mxu0
    %v4657 = vpop.f32.mrb[0].mxu0
    %v4658 = vadd.f32 %v4094, %v4657
    %v4659 = vpop.f32.mrb[0].mxu0
    %4660 = vmatprep.mubr.bf16.mxu0 0
    %4661 = vmatmul.mubr.bf16.gmra.mrb[0].mxu0 %v4423
    %v4662 = vpop.f32.mrb[0].mxu0
    %v4663 = vadd.f32 %v4099, %v4662
    %v4664 = vpop.f32.mrb[0].mxu0
    %v4665 = vpop.f32.mrb[0].mxu0
    %v4666 = vadd.f32 %v4104, %v4665
    %v4667 = vpop.f32.mrb[0].mxu0
    %4668 = vmatprep.mubr.bf16.mxu0 0
    %4669 = vmatmul.mubr.bf16.gmra.mrb[0].mxu0 %v4426
    %v4670 = vpop.f32.mrb[0].mxu0
    %v4671 = vadd.f32 %v4109, %v4670
    %v4672 = vpop.f32.mrb[0].mxu0
    %v4673 = vpop.f32.mrb[0].mxu0
    %v4674 = vadd.f32 %v4114, %v4673
    %v4675 = vpop.f32.mrb[0].mxu0
    %4676 = vmatprep.mubr.bf16.mxu0 0
    %4677 = vmatmul.mubr.bf16.gmra.mrb[0].mxu0 %v4429
    %v4678 = vpop.f32.mrb[0].mxu0
    %v4679 = vadd.f32 %v4119, %v4678
    %v4680 = vpop.f32.mrb[0].mxu0
    %v4681 = vpop.f32.mrb[0].mxu0
    %v4682 = vadd.f32 %v4124, %v4681
    %v4683 = vpop.f32.mrb[0].mxu0
    %4684 = vmatprep.mubr.bf16.mxu0 0
    %4685 = vmatmul.mubr.bf16.gmra.mrb[0].mxu0 %v4432
    %v4686 = vpop.f32.mrb[0].mxu0
    %v4687 = vadd.f32 %v4129, %v4686
    %v4688 = vpop.f32.mrb[0].mxu0
    %v4689 = vpop.f32.mrb[0].mxu0
    %v4690 = vadd.f32 %v4134, %v4689
    %v4691 = vpop.f32.mrb[0].mxu0
    %4692 = vmatprep.mubr.bf16.mxu0 0
    %4693 = vmatmul.mubr.bf16.gmra.mrb[0].mxu0 %v4435
    %v4694 = vpop.f32.mrb[0].mxu0
    %v4695 = vadd.f32 %v4139, %v4694
    %v4696 = vpop.f32.mrb[0].mxu0
    %v4697 = vpop.f32.mrb[0].mxu0
    %v4698 = vadd.f32 %v4144, %v4697
    %v4699 = vpop.f32.mrb[0].mxu0
    %4700 = vmatprep.mubr.bf16.mxu0 0
    %4701 = vmatmul.mubr.bf16.gmra.mrb[0].mxu0 %v4438
    %v4702 = vpop.f32.mrb[0].mxu0
    %v4703 = vadd.f32 %v4149, %v4702
    %v4704 = vpop.f32.mrb[0].mxu0
    %v4705 = vpop.f32.mrb[0].mxu0
    %v4706 = vadd.f32 %v4154, %v4705
    %v4707 = vpop.f32.mrb[0].mxu0
    %4708 = vmatprep.mubr.bf16.mxu0 0
    %4709 = vmatmul.mubr.bf16.gmra.mrb[0].mxu0 %v4441
    %v4710 = vpop.f32.mrb[0].mxu0
    %v4711 = vadd.f32 %v4159, %v4710
    %v4712 = vpop.f32.mrb[0].mxu0
    %v4713 = vpop.f32.mrb[0].mxu0
    %v4714 = vadd.f32 %v4164, %v4713
    %v4715 = vpop.f32.mrb[0].mxu0
    %4716 = vmatprep.mubr.bf16.mxu0 0
    %4717 = vmatmul.mubr.bf16.gmra.mrb[0].mxu0 %v4444
    %v4718 = vpop.f32.mrb[0].mxu0
    %v4719 = vadd.f32 %v4169, %v4718
    %v4720 = vpop.f32.mrb[0].mxu0
    %v4721 = vpop.f32.mrb[0].mxu0
    %v4722 = vadd.f32 %v4174, %v4721
    %v4723 = vpop.f32.mrb[0].mxu0
    %4724 = vmatprep.mubr.bf16.mxu0 0
    %4725 = vmatmul.mubr.bf16.gmra.mrb[0].mxu0 %v4447
    %v4726 = vpop.f32.mrb[0].mxu0
    %v4727 = vadd.f32 %v4179, %v4726
    %v4728 = vpop.f32.mrb[0].mxu0
    %v4729 = vpop.f32.mrb[0].mxu0
    %v4730 = vadd.f32 %v4184, %v4729
    %v4731 = vpop.f32.mrb[0].mxu0
    %4732 = vmatprep.mubr.bf16.mxu0 0
    %4733 = vmatmul.mubr.bf16.gmra.mrb[0].mxu0 %v4450
    %v4734 = vpop.f32.mrb[0].mxu0
    %v4735 = vadd.f32 %v4189, %v4734
    %v4736 = vpop.f32.mrb[0].mxu0
    %v4737 = vpop.f32.mrb[0].mxu0
    %v4738 = vadd.f32 %v4194, %v4737
    %v4739 = vpop.f32.mrb[0].mxu0
    %4740 = vdwg.mxu0
    %v4741 = vmax.f32 %v4487, 0.0
    %v4742 = vmax.f32 %v4490, 0.0
    %v4743 = vmax.f32 %v4495, 0.0
    %v4744 = vmax.f32 %v4498, 0.0
    %v4745 = vmax.f32 %v4503, 0.0
    %v4746 = vmax.f32 %v4506, 0.0
    %v4747 = vmax.f32 %v4511, 0.0
    %v4748 = vmax.f32 %v4514, 0.0
    %v4749 = vmax.f32 %v4519, 0.0
    %v4750 = vmax.f32 %v4522, 0.0
    %v4751 = vmax.f32 %v4527, 0.0
    %v4752 = vmax.f32 %v4530, 0.0
    %v4753 = vmax.f32 %v4535, 0.0
    %v4754 = vmax.f32 %v4538, 0.0
    %v4755 = vmax.f32 %v4543, 0.0
    %v4756 = vmax.f32 %v4546, 0.0
    %v4757 = vmax.f32 %v4551, 0.0
    %v4758 = vmax.f32 %v4554, 0.0
    %v4759 = vmax.f32 %v4559, 0.0
    %v4760 = vmax.f32 %v4562, 0.0
    %v4761 = vmax.f32 %v4567, 0.0
    %v4762 = vmax.f32 %v4570, 0.0
    %v4763 = vmax.f32 %v4575, 0.0
    %v4764 = vmax.f32 %v4578, 0.0
    %v4765 = vmax.f32 %v4583, 0.0
    %v4766 = vmax.f32 %v4586, 0.0
    %v4767 = vmax.f32 %v4591, 0.0
    %v4768 = vmax.f32 %v4594, 0.0
    %v4769 = vmax.f32 %v4599, 0.0
    %v4770 = vmax.f32 %v4602, 0.0
    %v4771 = vmax.f32 %v4607, 0.0
    %v4772 = vmax.f32 %v4610, 0.0
    %v4773 = vmax.f32 %v4615, 0.0
    %v4774 = vmax.f32 %v4618, 0.0
    %v4775 = vmax.f32 %v4623, 0.0
    %v4776 = vmax.f32 %v4626, 0.0
    %v4777 = vmax.f32 %v4631, 0.0
    %v4778 = vmax.f32 %v4634, 0.0
    %v4779 = vmax.f32 %v4639, 0.0
    %v4780 = vmax.f32 %v4642, 0.0
    %v4781 = vmax.f32 %v4647, 0.0
    %v4782 = vmax.f32 %v4650, 0.0
    %v4783 = vmax.f32 %v4655, 0.0
    %v4784 = vmax.f32 %v4658, 0.0
    %v4785 = vmax.f32 %v4663, 0.0
    %v4786 = vmax.f32 %v4666, 0.0
    %v4787 = vmax.f32 %v4671, 0.0
    %v4788 = vmax.f32 %v4674, 0.0
    %v4789 = vmax.f32 %v4679, 0.0
    %v4790 = vmax.f32 %v4682, 0.0
    %v4791 = vmax.f32 %v4687, 0.0
    %v4792 = vmax.f32 %v4690, 0.0
    %v4793 = vmax.f32 %v4695, 0.0
    %v4794 = vmax.f32 %v4698, 0.0
    %v4795 = vmax.f32 %v4703, 0.0
    %v4796 = vmax.f32 %v4706, 0.0
    %v4797 = vmax.f32 %v4711, 0.0
    %v4798 = vmax.f32 %v4714, 0.0
    %v4799 = vmax.f32 %v4719, 0.0
    %v4800 = vmax.f32 %v4722, 0.0
    %v4801 = vmax.f32 %v4727, 0.0
    %v4802 = vmax.f32 %v4730, 0.0
    %v4803 = vmax.f32 %v4735, 0.0
    %v4804 = vmax.f32 %v4738, 0.0
    %v4805 = vld [vmem:[%s3 + $0x30] sm:$0xff]
    %v4806 = vld [vmem:[%s3 + $0x38] sm:$0xff]
    %v4807 = vld [vmem:[%s3 + $0x70] sm:$0xff]
    %v4808 = vld [vmem:[%s3 + $0x78] sm:$0xff]
    %v4809 = vld [vmem:[%s3 + $0xb0] sm:$0xff]
    %v4810 = vld [vmem:[%s3 + $0xb8] sm:$0xff]
    %v4811 = vld [vmem:[%s3 + $0xf0] sm:$0xff]
    %v4812 = vld [vmem:[%s3 + $0xf8] sm:$0xff]
    %v4813 = vpack.c.bf16 %v4742, %v4741
    %v4814 = vpack.c.bf16 %v4744, %v4743
    %v4815 = vpack.c.bf16 %v4746, %v4745
    %v4816 = vpack.c.bf16 %v4748, %v4747
    %v4817 = vpack.c.bf16 %v4750, %v4749
    %v4818 = vpack.c.bf16 %v4752, %v4751
    %v4819 = vpack.c.bf16 %v4754, %v4753
    %v4820 = vpack.c.bf16 %v4756, %v4755
    %v4821 = vpack.c.bf16 %v4758, %v4757
    %v4822 = vpack.c.bf16 %v4760, %v4759
    %v4823 = vpack.c.bf16 %v4762, %v4761
    %v4824 = vpack.c.bf16 %v4764, %v4763
    %v4825 = vpack.c.bf16 %v4766, %v4765
    %v4826 = vpack.c.bf16 %v4768, %v4767
    %v4827 = vpack.c.bf16 %v4770, %v4769
    %v4828 = vpack.c.bf16 %v4772, %v4771
    %v4829 = vpack.c.bf16 %v4774, %v4773
    %v4830 = vpack.c.bf16 %v4776, %v4775
    %v4831 = vpack.c.bf16 %v4778, %v4777
    %v4832 = vpack.c.bf16 %v4780, %v4779
    %v4833 = vpack.c.bf16 %v4782, %v4781
    %v4834 = vpack.c.bf16 %v4784, %v4783
    %v4835 = vpack.c.bf16 %v4786, %v4785
    %v4836 = vpack.c.bf16 %v4788, %v4787
    %v4837 = vpack.c.bf16 %v4790, %v4789
    %v4838 = vpack.c.bf16 %v4792, %v4791
    %v4839 = vpack.c.bf16 %v4794, %v4793
    %v4840 = vpack.c.bf16 %v4796, %v4795
    %v4841 = vpack.c.bf16 %v4798, %v4797
    %v4842 = vpack.c.bf16 %v4800, %v4799
    %v4843 = vpack.c.bf16 %v4802, %v4801
    %v4844 = vpack.c.bf16 %v4804, %v4803
    %v4853 = vunpack.c.l.b16 %v4805
    %v4854 = vunpack.c.h.b16 %v4805
    %v4855 = vunpack.c.l.b16 %v4806
    %v4856 = vunpack.c.h.b16 %v4806
    %v4857 = vunpack.c.l.b16 %v4807
    %v4858 = vunpack.c.h.b16 %v4807
    %v4859 = vunpack.c.l.b16 %v4808
    %v4860 = vunpack.c.h.b16 %v4808
    %v4861 = vunpack.c.l.b16 %v4809
    %v4862 = vunpack.c.h.b16 %v4809
    %v4863 = vunpack.c.l.b16 %v4810
    %v4864 = vunpack.c.h.b16 %v4810
    %v4865 = vunpack.c.l.b16 %v4811
    %v4866 = vunpack.c.h.b16 %v4811
    %v4867 = vunpack.c.l.b16 %v4812
    %v4868 = vunpack.c.h.b16 %v4812
    %v4869 = vpack.c.b16 %v4857, %v4853
    %v4870 = vpack.c.b16 %v4858, %v4854
    %v4871 = vpack.c.b16 %v4859, %v4855
    %v4872 = vpack.c.b16 %v4860, %v4856
    %v4873 = vpack.c.b16 %v4865, %v4861
    %v4874 = vpack.c.b16 %v4866, %v4862
    %v4875 = vpack.c.b16 %v4867, %v4863
    %v4876 = vpack.c.b16 %v4868, %v4864
    %4885 = vmatprep.subr.bf16.mxu0 0
    %4886 = vmatpush1.bf16.msra.mxu0 %v4813
    %4887 = vmatprep.subr.bf16.mxu0 0
    %4888 = vmatpush1.bf16.msra.mxu0 %v4814
    %4889 = vmatprep.subr.bf16.mxu0 0
    %4890 = vmatpush1.bf16.msra.mxu0 %v4815
    %4891 = vmatprep.subr.bf16.mxu0 0
    %4892 = vmatpush1.bf16.msra.mxu0 %v4816
    %4893 = vmatprep.subr.bf16.mxu0 0
    %4894 = vmatpush1.bf16.msra.mxu0 %v4817
    %4895 = vmatprep.subr.bf16.mxu0 0
    %4896 = vmatpush1.bf16.msra.mxu0 %v4818
    %4897 = vmatprep.subr.bf16.mxu0 0
    %4898 = vmatpush1.bf16.msra.mxu0 %v4819
    %4899 = vmatprep.subr.bf16.mxu0 0
    %4900 = vmatpush1.bf16.msra.mxu0 %v4820
    %4901 = vmatprep.subr.bf16.mxu0 0
    %4902 = vmatpush1.bf16.msra.mxu0 %v4821
    %4903 = vmatprep.subr.bf16.mxu0 0
    %4904 = vmatpush1.bf16.msra.mxu0 %v4822
    %4905 = vmatprep.subr.bf16.mxu0 0
    %4906 = vmatpush1.bf16.msra.mxu0 %v4823
    %4907 = vmatprep.subr.bf16.mxu0 0
    %4908 = vmatpush1.bf16.msra.mxu0 %v4824
    %4909 = vmatprep.subr.bf16.mxu0 0
    %4910 = vmatpush1.bf16.msra.mxu0 %v4825
    %4911 = vmatprep.subr.bf16.mxu0 0
    %4912 = vmatpush1.bf16.msra.mxu0 %v4826
    %4913 = vmatprep.subr.bf16.mxu0 0
    %4914 = vmatpush1.bf16.msra.mxu0 %v4827
    %4915 = vmatprep.subr.bf16.mxu0 0
    %4916 = vmatpush1.bf16.msra.mxu0 %v4828
    %4917 = vmatprep.mubr.bf16.mxu0 %v4870
    %4918 = vmatmul.mubr.bf16.gmra.mrb[0].mxu0 %v4869
    %v4919 = vpop.f32.mrb[0].mxu0
    %v4920 = vadd.f32 0.0, %v4919
    %v4921 = vpop.f32.mrb[0].mxu0
    %v4922 = vpop.f32.mrb[0].mxu0
    %v4923 = vadd.f32 0.0, %v4922
    %v4924 = vpop.f32.mrb[0].mxu0
    %4925 = vmatprep.mubr.bf16.mxu0 %v4874
    %4926 = vmatmul.mubr.bf16.gmra.mrb[0].mxu0 %v4873
    %v4927 = vpop.f32.mrb[0].mxu0
    %v4928 = vadd.f32 0.0, %v4927
    %v4929 = vpop.f32.mrb[0].mxu0
    %v4930 = vpop.f32.mrb[0].mxu0
    %v4931 = vadd.f32 0.0, %v4930
    %v4932 = vpop.f32.mrb[0].mxu0
    %4933 = vdwg.mxu0
    %4934 = vmatprep.subr.bf16.mxu0 0
    %4935 = vmatpush1.bf16.msra.mxu0 %v4829
    %4936 = vmatprep.subr.bf16.mxu0 0
    %4937 = vmatpush1.bf16.msra.mxu0 %v4830
    %4938 = vmatprep.subr.bf16.mxu0 0
    %4939 = vmatpush1.bf16.msra.mxu0 %v4831
    %4940 = vmatprep.subr.bf16.mxu0 0
    %4941 = vmatpush1.bf16.msra.mxu0 %v4832
    %4942 = vmatprep.subr.bf16.mxu0 0
    %4943 = vmatpush1.bf16.msra.mxu0 %v4833
    %4944 = vmatprep.subr.bf16.mxu0 0
    %4945 = vmatpush1.bf16.msra.mxu0 %v4834
    %4946 = vmatprep.subr.bf16.mxu0 0
    %4947 = vmatpush1.bf16.msra.mxu0 %v4835
    %4948 = vmatprep.subr.bf16.mxu0 0
    %4949 = vmatpush1.bf16.msra.mxu0 %v4836
    %4950 = vmatprep.subr.bf16.mxu0 0
    %4951 = vmatpush1.bf16.msra.mxu0 %v4837
    %4952 = vmatprep.subr.bf16.mxu0 0
    %4953 = vmatpush1.bf16.msra.mxu0 %v4838
    %4954 = vmatprep.subr.bf16.mxu0 0
    %4955 = vmatpush1.bf16.msra.mxu0 %v4839
    %4956 = vmatprep.subr.bf16.mxu0 0
    %4957 = vmatpush1.bf16.msra.mxu0 %v4840
    %4958 = vmatprep.subr.bf16.mxu0 0
    %4959 = vmatpush1.bf16.msra.mxu0 %v4841
    %4960 = vmatprep.subr.bf16.mxu0 0
    %4961 = vmatpush1.bf16.msra.mxu0 %v4842
    %4962 = vmatprep.subr.bf16.mxu0 0
    %4963 = vmatpush1.bf16.msra.mxu0 %v4843
    %4964 = vmatprep.subr.bf16.mxu0 0
    %4965 = vmatpush1.bf16.msra.mxu0 %v4844
    %4966 = vmatprep.mubr.bf16.mxu0 %v4872
    %4967 = vmatmul.mubr.bf16.gmra.mrb[0].mxu0 %v4871
    %v4968 = vpop.f32.mrb[0].mxu0
    %v4969 = vadd.f32 %v4920, %v4968
    %v4970 = vpop.f32.mrb[0].mxu0
    %v4971 = vpop.f32.mrb[0].mxu0
    %v4972 = vadd.f32 %v4923, %v4971
    %v4973 = vpop.f32.mrb[0].mxu0
    %4974 = vmatprep.mubr.bf16.mxu0 %v4876
    %4975 = vmatmul.mubr.bf16.gmra.mrb[0].mxu0 %v4875
    %v4976 = vpop.f32.mrb[0].mxu0
    %v4977 = vadd.f32 %v4928, %v4976
    %v4978 = vpop.f32.mrb[0].mxu0
    %v4979 = vpop.f32.mrb[0].mxu0
    %v4980 = vadd.f32 %v4931, %v4979
    %v4981 = vpop.f32.mrb[0].mxu0
    %4982 = vdwg.mxu0
    %v4983 = vadd.f32 %v3744, %v4969
    %v4984 = vadd.f32 %v3745, %v4972
    %v4985 = vadd.f32 %v3746, %v4977
    %v4986 = vadd.f32 %v3747, %v4980
    %v4987 = vld [vmem:[%s4] sm:$0xff]
    %v4988 = vld [vmem:[%s4 + $0x8] sm:$0xff]
    %v4989 = vld [vmem:[%s4 + $0x10] sm:$0xff]
    %v4990 = vld [vmem:[%s4 + $0x18] sm:$0xff]
    %4992 = vset.pattern.permute.xlu0 0
    %4993 = vperm.xlu0 %4992, %v4987
    %v4994 = vpop.permute.xlu0 %4993
    %4997 = vset.pattern.permute.xlu0 0
    %4998 = vperm.xlu0 %4997, %v4988
    %v4999 = vpop.permute.xlu0 %4998
    %5002 = vset.pattern.permute.xlu0 0
    %5003 = vperm.xlu0 %5002, %v4989
    %v5004 = vpop.permute.xlu0 %5003
    %5007 = vset.pattern.permute.xlu0 0
    %5008 = vperm.xlu0 %5007, %v4990
    %v5009 = vpop.permute.xlu0 %5008
    %v5011 = vadd.f32 %v4983, %v4994
    %v5012 = vadd.f32 %v4984, %v4999
    %v5013 = vadd.f32 %v4985, %v5004
    %v5014 = vadd.f32 %v4986, %v5009
    %5015 = vst [vmem:[#allocation2] sm:$0xff] %v5011
    %5016 = vst [vmem:[#allocation2 + $0x8] sm:$0xff] %v5012
    %5017 = vst [vmem:[#allocation2 + $0x10] sm:$0xff] %v5013
    %5018 = vst [vmem:[#allocation2 + $0x18] sm:$0xff] %v5014
    // Predicated region
    $region22: #{tpu_custom_call.1} parent=1 // pred_check
      _
    $region23: #{tpu_custom_call.1} parent=1 // pred_check_branch
      %5020 = sbr.rel (0) target = $region25
    $region24: #{tpu_custom_call.1} parent=1 // pred_region
      %s5022 = ssub.s32 512, 512
      %5023 = vsyncadd [#allocation3], %s5022
      %s5024 = sshll.u32 [#allocation2], 4
      %s5025 = int_to_ptr.vmem [resolvable:$true] %s5024
      %5030 = dma.vmem_to_hbm [thread:$0]  %s5025, 512, %s5, [#allocation3], 128, 128, 8
    $region25: #{tpu_custom_call.1} parent=1 // pred_fallthru
      _
    // Predicated region
    $region26: #{tpu_custom_call.1} parent=1 // pred_check
      _
    $region27: #{tpu_custom_call.1} parent=1 // pred_check_branch
      %5032 = sbr.rel (0) target = $region29
    $region28: #{tpu_custom_call.1} parent=1 // pred_region
      %5033 = dma.done [#allocation3], 512
    $region29: #{tpu_custom_call.1} parent=1 // pred_fallthru
      _
    %5034 = vsyncpa [#allocation3], 1

</llo_original>
